<compile_context>
chip_gen: v7x
topology: tpu7x:2x2x1
jax: 0.10.0
libtpu: 0.0.40
codegen_flags: <defaults>
</compile_context>

<pallas_src>
import jax
import jax.numpy as jnp
from jax.experimental import pallas as pl
from jax.experimental.pallas import tpu as pltpu

CONDITION_SIZE = 10
NOISE_SIZE = 100
IN_SIZE = NOISE_SIZE + CONDITION_SIZE          # 110
H1, H2, H3 = 256, 512, 1024
OUT_SIZE = 784

K1_PAD = 128                                    # 110 -> 128 (zero-padded K of fc1)
OUT_PAD = 896                                   # 784 -> 896 = 7*128 (lane-dense output)
OUT_CHUNK = 128                                 # layer-4 N-chunk (7 chunks)


def _ceil_div(a, b):
    return -(-a // b)


def _round_up(a, m):
    return _ceil_div(a, m) * m


def _pick_tile(b):
    """Balanced batch tile: <=512 rows, >=2 tiles once b>=16, sublane-aligned."""
    if b < 16:
        return _round_up(max(b, 1), 8)
    n_tiles = max(2, _ceil_div(b, 512))
    return _round_up(_ceil_div(b, n_tiles), 8)


def _generator_kernel(x_ref,
                      w1_ref, b1_ref,
                      w2_ref, b2_ref,
                      w3_ref, b3_ref,
                      w4_ref, b4_ref,
                      y_ref):
    """One batch tile of the fused 4-layer MLP (Linear+ReLU x3, Linear+tanh).

    x arrives as bf16 (pre-cast in the wrapper); weights are resident bf16; every
    jnp.dot accumulates in f32 on the MXU, biases/activations run in f32.
    """
    h = x_ref[...]                                                    # bf16 (tm, 128)

    h = jnp.dot(h, w1_ref[...], preferred_element_type=jnp.float32) + b1_ref[...]
    h = jnp.maximum(h, 0.0)

    h = jnp.dot(h.astype(jnp.bfloat16), w2_ref[...],
                preferred_element_type=jnp.float32) + b2_ref[...]
    h = jnp.maximum(h, 0.0)

    h = jnp.dot(h.astype(jnp.bfloat16), w3_ref[...],
                preferred_element_type=jnp.float32) + b3_ref[...]
    h = jnp.maximum(h, 0.0).astype(jnp.bfloat16)                      # bf16 (tm, 1024)

    # Layer 4 chunked over N (7 x 128, lane-aligned) so the EUP tanh of chunk j
    # overlaps the MXU pushes of chunk j+1 instead of serializing at the end.
    for j in range(OUT_PAD // OUT_CHUNK):
        sl = slice(j * OUT_CHUNK, (j + 1) * OUT_CHUNK)
        cj = jnp.dot(h, w4_ref[:, sl],
                     preferred_element_type=jnp.float32) + b4_ref[:, sl]
        y_ref[:, sl] = jnp.tanh(cj).astype(y_ref.dtype)


@jax.jit
def generator_forward_padded(x, prep_params):
    """Runs the fused kernel; returns the padded (b_pad, 896) bf16 output buffer.

    The un-pad slice is intentionally left to the consumer so it can be fused
    there instead of materializing an extra HBM round-trip inside this jit.
    """
    (w1, b1), (w2, b2), (w3, b3), (w4, b4) = prep_params
    b = x.shape[0]

    tm = _pick_tile(b)
    n_tiles = _ceil_div(b, tm)
    b_pad = n_tiles * tm

    # Pad batch + K to lane/sublane-aligned sizes, cast to bf16 once in the wrapper.
    x = jnp.pad(x, ((0, b_pad - b), (0, K1_PAD - x.shape[1]))).astype(jnp.bfloat16)

    # Advisory cost estimate for XLA scheduling.
    weight_elems = K1_PAD * H1 + H1 * H2 + H2 * H3 + H3 * OUT_PAD
    cost = pl.CostEstimate(
        flops=2 * b_pad * weight_elems,
        transcendentals=b_pad * OUT_PAD,
        bytes_accessed=2 * weight_elems                     # bf16 weights
        + 4 * (H1 + H2 + H3 + OUT_PAD)                      # f32 biases
        + 2 * b_pad * (K1_PAD + OUT_PAD),                   # bf16 x + y
    )

    def resident(shape):
        # Constant block index + single buffering: DMA'd once, stays in VMEM,
        # no wasted second buffer for data that is never revisited.
        return pl.BlockSpec(shape, lambda i: (0, 0),
                            pipeline_mode=pl.Buffered(1))

    y = pl.pallas_call(
        _generator_kernel,
        out_shape=jax.ShapeDtypeStruct((b_pad, OUT_PAD), jnp.bfloat16),
        grid=(n_tiles,),
        in_specs=[
            pl.BlockSpec((tm, K1_PAD), lambda i: (i, 0)),   # x tile (pipelined)
            resident((K1_PAD, H1)), resident((1, H1)),
            resident((H1, H2)), resident((1, H2)),
            resident((H2, H3)), resident((1, H3)),
            resident((H3, OUT_PAD)), resident((1, OUT_PAD)),
        ],
        out_specs=pl.BlockSpec((tm, OUT_PAD), lambda i: (i, 0)),
        compiler_params=pltpu.CompilerParams(
            dimension_semantics=("parallel",),
            vmem_limit_bytes=48 << 20,
        ),
        cost_estimate=cost,
    )(x, w1, b1, w2, b2, w3, b3, w4, b4)

    return y


def generator_forward(x, prep_params):
    """Convenience wrapper matching the PyTorch module's (B, 784) f32 output."""
    y_pad = generator_forward_padded(x, prep_params)
    return y_pad[: x.shape[0], :OUT_SIZE].astype(jnp.float32)


def init_params(key):
    """Deterministic init matching nn.Linear's U(-1/sqrt(fan_in), 1/sqrt(fan_in)).

    Weights are stored as (in_features, out_features) — transposed relative to
    PyTorch's (out, in) layout — so the kernel computes x @ W + b directly.
    Total ~1.49M params (~5.7 MiB f32 / ~2.9 MiB bf16).
    """
    dims = [(IN_SIZE, H1), (H1, H2), (H2, H3), (H3, OUT_SIZE)]
    params = []
    for fan_in, fan_out in dims:
        key, kw, kb = jax.random.split(key, 3)
        bound = 1.0 / jnp.sqrt(fan_in)
        w = jax.random.uniform(kw, (fan_in, fan_out), jnp.float32, -bound, bound)
        b = jax.random.uniform(kb, (fan_out,), jnp.float32, -bound, bound)
        params.append((w, b))
    return params


def prepare_params(params):
    """Cast weights to bf16 and zero-pad to lane-aligned kernel shapes."""
    (w1, b1), (w2, b2), (w3, b3), (w4, b4) = params
    w1p = jnp.pad(w1, ((0, K1_PAD - IN_SIZE), (0, 0))).astype(jnp.bfloat16)
    w2p = w2.astype(jnp.bfloat16)
    w3p = w3.astype(jnp.bfloat16)
    w4p = jnp.pad(w4, ((0, 0), (0, OUT_PAD - OUT_SIZE))).astype(jnp.bfloat16)
    b1p = b1.reshape(1, -1)
    b2p = b2.reshape(1, -1)
    b3p = b3.reshape(1, -1)
    b4p = jnp.pad(b4, (0, OUT_PAD - OUT_SIZE)).reshape(1, -1)
    return [(w1p, b1p), (w2p, b2p), (w3p, b3p), (w4p, b4p)]


def reference_forward(x, prep_params):
    """Pure-JAX reference with identical numerics (bf16 operands, f32 accumulation)."""
    (w1, b1), (w2, b2), (w3, b3), (w4, b4) = prep_params
    h = jnp.pad(x, ((0, 0), (0, K1_PAD - x.shape[1]))).astype(jnp.bfloat16)
    h = jnp.maximum(jnp.dot(h, w1, preferred_element_type=jnp.float32) + b1, 0.0)
    h = jnp.maximum(jnp.dot(h.astype(jnp.bfloat16), w2,
                            preferred_element_type=jnp.float32) + b2, 0.0)
    h = jnp.maximum(jnp.dot(h.astype(jnp.bfloat16), w3,
                            preferred_element_type=jnp.float32) + b3, 0.0)
    y = jnp.tanh(jnp.dot(h.astype(jnp.bfloat16), w4,
                         preferred_element_type=jnp.float32) + b4)
    return y[:, :OUT_SIZE]


if __name__ == "__main__":
    key = jax.random.PRNGKey(0)
    key, kx = jax.random.split(key)

    batch = 2
    x = jax.random.normal(kx, (batch, IN_SIZE), jnp.float32)
    params = init_params(key)
    prep = prepare_params(params)

    y = generator_forward(x, prep)
    y = jax.block_until_ready(y)

    y_ref = reference_forward(x, prep)
    assert y.shape == (batch, OUT_SIZE), y.shape
    # Kernel output is bf16 (tanh in [-1,1]); compare against the f32-output reference
    # with a bf16-appropriate tolerance.
    assert jnp.allclose(y, y_ref, atol=1.5e-2, rtol=1.5e-2), "mismatch vs reference"

    print("KERNEL_OK")
</pallas_src>

<mosaic_0001>
module attributes {stable_mosaic.version = 11 : i64} {
  func.func @_generator_kernel(%arg0: i32, %arg1: memref<8x128xbf16, #tpu.memory_space<vmem>>, %arg2: memref<128x256xbf16, #tpu.memory_space<vmem>>, %arg3: memref<1x256xf32, #tpu.memory_space<vmem>>, %arg4: memref<256x512xbf16, #tpu.memory_space<vmem>>, %arg5: memref<1x512xf32, #tpu.memory_space<vmem>>, %arg6: memref<512x1024xbf16, #tpu.memory_space<vmem>>, %arg7: memref<1x1024xf32, #tpu.memory_space<vmem>>, %arg8: memref<1024x896xbf16, #tpu.memory_space<vmem>>, %arg9: memref<1x896xf32, #tpu.memory_space<vmem>>, %arg10: memref<8x896xbf16, #tpu.memory_space<vmem>>) attributes {dimension_semantics = [#tpu.dimension_semantics<parallel>], iteration_bounds = array<i64: 1>, scalar_prefetch = 0 : i64, scratch_operands = 0 : i64, tpu.core_type = #tpu.core_type<tc>, window_params = [{transform_indices = @transform_0, window_bounds = array<i64: 8, 128>}, {pipeline_mode = #tpu.pipeline_mode<synchronous>, transform_indices = @transform_1, window_bounds = array<i64: 128, 256>}, {pipeline_mode = #tpu.pipeline_mode<synchronous>, transform_indices = @transform_2, window_bounds = array<i64: 1, 256>}, {pipeline_mode = #tpu.pipeline_mode<synchronous>, transform_indices = @transform_3, window_bounds = array<i64: 256, 512>}, {pipeline_mode = #tpu.pipeline_mode<synchronous>, transform_indices = @transform_4, window_bounds = array<i64: 1, 512>}, {pipeline_mode = #tpu.pipeline_mode<synchronous>, transform_indices = @transform_5, window_bounds = array<i64: 512, 1024>}, {pipeline_mode = #tpu.pipeline_mode<synchronous>, transform_indices = @transform_6, window_bounds = array<i64: 1, 1024>}, {pipeline_mode = #tpu.pipeline_mode<synchronous>, transform_indices = @transform_7, window_bounds = array<i64: 1024, 896>}, {pipeline_mode = #tpu.pipeline_mode<synchronous>, transform_indices = @transform_8, window_bounds = array<i64: 1, 896>}, {transform_indices = @transform_9, window_bounds = array<i64: 8, 896>}]} {
    %c0 = arith.constant 0 : index
    %c0_0 = arith.constant 0 : index
    %0 = vector.load %arg1[%c0, %c0_0] : memref<8x128xbf16, #tpu.memory_space<vmem>>, vector<8x128xbf16>
    %c0_1 = arith.constant 0 : index
    %c0_2 = arith.constant 0 : index
    %1 = vector.load %arg2[%c0_1, %c0_2] : memref<128x256xbf16, #tpu.memory_space<vmem>>, vector<128x256xbf16>
    %cst = arith.constant dense<0.000000e+00> : vector<8x256xf32>
    %2 = tpu.matmul %0, %1, %cst {dimension_numbers = #tpu.dot_dimension_numbers<[1], [0], [0], [1], [0, 0, 1, 1], [], []>} : vector<8x128xbf16>, vector<128x256xbf16>, vector<8x256xf32> -> vector<8x256xf32>
    %c0_3 = arith.constant 0 : index
    %c0_4 = arith.constant 0 : index
    %3 = vector.load %arg3[%c0_3, %c0_4] : memref<1x256xf32, #tpu.memory_space<vmem>>, vector<1x256xf32>
    %4 = vector.broadcast %3 : vector<1x256xf32> to vector<8x256xf32>
    %5 = arith.addf %2, %4 : vector<8x256xf32>
    %cst_5 = arith.constant 0.000000e+00 : f32
    %6 = vector.broadcast %cst_5 : f32 to vector<8x256xf32>
    %7 = arith.maximumf %5, %6 : vector<8x256xf32>
    %8 = arith.truncf %7 : vector<8x256xf32> to vector<8x256xbf16>
    %c0_6 = arith.constant 0 : index
    %c0_7 = arith.constant 0 : index
    %9 = vector.load %arg4[%c0_6, %c0_7] : memref<256x512xbf16, #tpu.memory_space<vmem>>, vector<256x512xbf16>
    %cst_8 = arith.constant dense<0.000000e+00> : vector<8x512xf32>
    %10 = tpu.matmul %8, %9, %cst_8 {dimension_numbers = #tpu.dot_dimension_numbers<[1], [0], [0], [1], [0, 0, 1, 1], [], []>} : vector<8x256xbf16>, vector<256x512xbf16>, vector<8x512xf32> -> vector<8x512xf32>
    %c0_9 = arith.constant 0 : index
    %c0_10 = arith.constant 0 : index
    %11 = vector.load %arg5[%c0_9, %c0_10] : memref<1x512xf32, #tpu.memory_space<vmem>>, vector<1x512xf32>
    %12 = vector.broadcast %11 : vector<1x512xf32> to vector<8x512xf32>
    %13 = arith.addf %10, %12 : vector<8x512xf32>
    %cst_11 = arith.constant 0.000000e+00 : f32
    %14 = vector.broadcast %cst_11 : f32 to vector<8x512xf32>
    %15 = arith.maximumf %13, %14 : vector<8x512xf32>
    %16 = arith.truncf %15 : vector<8x512xf32> to vector<8x512xbf16>
    %c0_12 = arith.constant 0 : index
    %c0_13 = arith.constant 0 : index
    %17 = vector.load %arg6[%c0_12, %c0_13] : memref<512x1024xbf16, #tpu.memory_space<vmem>>, vector<512x1024xbf16>
    %cst_14 = arith.constant dense<0.000000e+00> : vector<8x1024xf32>
    %18 = tpu.matmul %16, %17, %cst_14 {dimension_numbers = #tpu.dot_dimension_numbers<[1], [0], [0], [1], [0, 0, 1, 1], [], []>} : vector<8x512xbf16>, vector<512x1024xbf16>, vector<8x1024xf32> -> vector<8x1024xf32>
    %c0_15 = arith.constant 0 : index
    %c0_16 = arith.constant 0 : index
    %19 = vector.load %arg7[%c0_15, %c0_16] : memref<1x1024xf32, #tpu.memory_space<vmem>>, vector<1x1024xf32>
    %20 = vector.broadcast %19 : vector<1x1024xf32> to vector<8x1024xf32>
    %21 = arith.addf %18, %20 : vector<8x1024xf32>
    %cst_17 = arith.constant 0.000000e+00 : f32
    %22 = vector.broadcast %cst_17 : f32 to vector<8x1024xf32>
    %23 = arith.maximumf %21, %22 : vector<8x1024xf32>
    %24 = arith.truncf %23 : vector<8x1024xf32> to vector<8x1024xbf16>
    %c0_18 = arith.constant 0 : index
    %c0_19 = arith.constant 0 : index
    %25 = vector.load %arg8[%c0_18, %c0_19] : memref<1024x896xbf16, #tpu.memory_space<vmem>>, vector<1024x128xbf16>
    %cst_20 = arith.constant dense<0.000000e+00> : vector<8x128xf32>
    %26 = tpu.matmul %24, %25, %cst_20 {dimension_numbers = #tpu.dot_dimension_numbers<[1], [0], [0], [1], [0, 0, 1, 1], [], []>} : vector<8x1024xbf16>, vector<1024x128xbf16>, vector<8x128xf32> -> vector<8x128xf32>
    %c0_21 = arith.constant 0 : index
    %c0_22 = arith.constant 0 : index
    %27 = vector.load %arg9[%c0_21, %c0_22] : memref<1x896xf32, #tpu.memory_space<vmem>>, vector<1x128xf32>
    %28 = vector.broadcast %27 : vector<1x128xf32> to vector<8x128xf32>
    %29 = arith.addf %26, %28 : vector<8x128xf32>
    %30 = math.tanh %29 : vector<8x128xf32>
    %31 = arith.truncf %30 : vector<8x128xf32> to vector<8x128xbf16>
    %c0_23 = arith.constant 0 : index
    %c0_24 = arith.constant 0 : index
    %32 = vector.load %arg10[%c0_23, %c0_24] : memref<8x896xbf16, #tpu.memory_space<vmem>>, vector<8x128xbf16>
    tpu.vector_store %arg10[%c0_23, %c0_24], %31 {strides = array<i32>} : memref<8x896xbf16, #tpu.memory_space<vmem>>, vector<8x128xbf16>,
    %c0_25 = arith.constant 0 : index
    %c128 = arith.constant 128 : index
    %33 = vector.load %arg8[%c0_25, %c128] : memref<1024x896xbf16, #tpu.memory_space<vmem>>, vector<1024x128xbf16>
    %cst_26 = arith.constant dense<0.000000e+00> : vector<8x128xf32>
    %34 = tpu.matmul %24, %33, %cst_26 {dimension_numbers = #tpu.dot_dimension_numbers<[1], [0], [0], [1], [0, 0, 1, 1], [], []>} : vector<8x1024xbf16>, vector<1024x128xbf16>, vector<8x128xf32> -> vector<8x128xf32>
    %c0_27 = arith.constant 0 : index
    %c128_28 = arith.constant 128 : index
    %35 = vector.load %arg9[%c0_27, %c128_28] : memref<1x896xf32, #tpu.memory_space<vmem>>, vector<1x128xf32>
    %36 = vector.broadcast %35 : vector<1x128xf32> to vector<8x128xf32>
    %37 = arith.addf %34, %36 : vector<8x128xf32>
    %38 = math.tanh %37 : vector<8x128xf32>
    %39 = arith.truncf %38 : vector<8x128xf32> to vector<8x128xbf16>
    %c0_29 = arith.constant 0 : index
    %c128_30 = arith.constant 128 : index
    %40 = vector.load %arg10[%c0_29, %c128_30] : memref<8x896xbf16, #tpu.memory_space<vmem>>, vector<8x128xbf16>
    tpu.vector_store %arg10[%c0_29, %c128_30], %39 {strides = array<i32>} : memref<8x896xbf16, #tpu.memory_space<vmem>>, vector<8x128xbf16>,
    %c0_31 = arith.constant 0 : index
    %c256 = arith.constant 256 : index
    %41 = vector.load %arg8[%c0_31, %c256] : memref<1024x896xbf16, #tpu.memory_space<vmem>>, vector<1024x128xbf16>
    %cst_32 = arith.constant dense<0.000000e+00> : vector<8x128xf32>
    %42 = tpu.matmul %24, %41, %cst_32 {dimension_numbers = #tpu.dot_dimension_numbers<[1], [0], [0], [1], [0, 0, 1, 1], [], []>} : vector<8x1024xbf16>, vector<1024x128xbf16>, vector<8x128xf32> -> vector<8x128xf32>
    %c0_33 = arith.constant 0 : index
    %c256_34 = arith.constant 256 : index
    %43 = vector.load %arg9[%c0_33, %c256_34] : memref<1x896xf32, #tpu.memory_space<vmem>>, vector<1x128xf32>
    %44 = vector.broadcast %43 : vector<1x128xf32> to vector<8x128xf32>
    %45 = arith.addf %42, %44 : vector<8x128xf32>
    %46 = math.tanh %45 : vector<8x128xf32>
    %47 = arith.truncf %46 : vector<8x128xf32> to vector<8x128xbf16>
    %c0_35 = arith.constant 0 : index
    %c256_36 = arith.constant 256 : index
    %48 = vector.load %arg10[%c0_35, %c256_36] : memref<8x896xbf16, #tpu.memory_space<vmem>>, vector<8x128xbf16>
    tpu.vector_store %arg10[%c0_35, %c256_36], %47 {strides = array<i32>} : memref<8x896xbf16, #tpu.memory_space<vmem>>, vector<8x128xbf16>,
    %c0_37 = arith.constant 0 : index
    %c384 = arith.constant 384 : index
    %49 = vector.load %arg8[%c0_37, %c384] : memref<1024x896xbf16, #tpu.memory_space<vmem>>, vector<1024x128xbf16>
    %cst_38 = arith.constant dense<0.000000e+00> : vector<8x128xf32>
    %50 = tpu.matmul %24, %49, %cst_38 {dimension_numbers = #tpu.dot_dimension_numbers<[1], [0], [0], [1], [0, 0, 1, 1], [], []>} : vector<8x1024xbf16>, vector<1024x128xbf16>, vector<8x128xf32> -> vector<8x128xf32>
    %c0_39 = arith.constant 0 : index
    %c384_40 = arith.constant 384 : index
    %51 = vector.load %arg9[%c0_39, %c384_40] : memref<1x896xf32, #tpu.memory_space<vmem>>, vector<1x128xf32>
    %52 = vector.broadcast %51 : vector<1x128xf32> to vector<8x128xf32>
    %53 = arith.addf %50, %52 : vector<8x128xf32>
    %54 = math.tanh %53 : vector<8x128xf32>
    %55 = arith.truncf %54 : vector<8x128xf32> to vector<8x128xbf16>
    %c0_41 = arith.constant 0 : index
    %c384_42 = arith.constant 384 : index
    %56 = vector.load %arg10[%c0_41, %c384_42] : memref<8x896xbf16, #tpu.memory_space<vmem>>, vector<8x128xbf16>
    tpu.vector_store %arg10[%c0_41, %c384_42], %55 {strides = array<i32>} : memref<8x896xbf16, #tpu.memory_space<vmem>>, vector<8x128xbf16>,
    %c0_43 = arith.constant 0 : index
    %c512 = arith.constant 512 : index
    %57 = vector.load %arg8[%c0_43, %c512] : memref<1024x896xbf16, #tpu.memory_space<vmem>>, vector<1024x128xbf16>
    %cst_44 = arith.constant dense<0.000000e+00> : vector<8x128xf32>
    %58 = tpu.matmul %24, %57, %cst_44 {dimension_numbers = #tpu.dot_dimension_numbers<[1], [0], [0], [1], [0, 0, 1, 1], [], []>} : vector<8x1024xbf16>, vector<1024x128xbf16>, vector<8x128xf32> -> vector<8x128xf32>
    %c0_45 = arith.constant 0 : index
    %c512_46 = arith.constant 512 : index
    %59 = vector.load %arg9[%c0_45, %c512_46] : memref<1x896xf32, #tpu.memory_space<vmem>>, vector<1x128xf32>
    %60 = vector.broadcast %59 : vector<1x128xf32> to vector<8x128xf32>
    %61 = arith.addf %58, %60 : vector<8x128xf32>
    %62 = math.tanh %61 : vector<8x128xf32>
    %63 = arith.truncf %62 : vector<8x128xf32> to vector<8x128xbf16>
    %c0_47 = arith.constant 0 : index
    %c512_48 = arith.constant 512 : index
    %64 = vector.load %arg10[%c0_47, %c512_48] : memref<8x896xbf16, #tpu.memory_space<vmem>>, vector<8x128xbf16>
    tpu.vector_store %arg10[%c0_47, %c512_48], %63 {strides = array<i32>} : memref<8x896xbf16, #tpu.memory_space<vmem>>, vector<8x128xbf16>,
    %c0_49 = arith.constant 0 : index
    %c640 = arith.constant 640 : index
    %65 = vector.load %arg8[%c0_49, %c640] : memref<1024x896xbf16, #tpu.memory_space<vmem>>, vector<1024x128xbf16>
    %cst_50 = arith.constant dense<0.000000e+00> : vector<8x128xf32>
    %66 = tpu.matmul %24, %65, %cst_50 {dimension_numbers = #tpu.dot_dimension_numbers<[1], [0], [0], [1], [0, 0, 1, 1], [], []>} : vector<8x1024xbf16>, vector<1024x128xbf16>, vector<8x128xf32> -> vector<8x128xf32>
    %c0_51 = arith.constant 0 : index
    %c640_52 = arith.constant 640 : index
    %67 = vector.load %arg9[%c0_51, %c640_52] : memref<1x896xf32, #tpu.memory_space<vmem>>, vector<1x128xf32>
    %68 = vector.broadcast %67 : vector<1x128xf32> to vector<8x128xf32>
    %69 = arith.addf %66, %68 : vector<8x128xf32>
    %70 = math.tanh %69 : vector<8x128xf32>
    %71 = arith.truncf %70 : vector<8x128xf32> to vector<8x128xbf16>
    %c0_53 = arith.constant 0 : index
    %c640_54 = arith.constant 640 : index
    %72 = vector.load %arg10[%c0_53, %c640_54] : memref<8x896xbf16, #tpu.memory_space<vmem>>, vector<8x128xbf16>
    tpu.vector_store %arg10[%c0_53, %c640_54], %71 {strides = array<i32>} : memref<8x896xbf16, #tpu.memory_space<vmem>>, vector<8x128xbf16>,
    %c0_55 = arith.constant 0 : index
    %c768 = arith.constant 768 : index
    %73 = vector.load %arg8[%c0_55, %c768] : memref<1024x896xbf16, #tpu.memory_space<vmem>>, vector<1024x128xbf16>
    %cst_56 = arith.constant dense<0.000000e+00> : vector<8x128xf32>
    %74 = tpu.matmul %24, %73, %cst_56 {dimension_numbers = #tpu.dot_dimension_numbers<[1], [0], [0], [1], [0, 0, 1, 1], [], []>} : vector<8x1024xbf16>, vector<1024x128xbf16>, vector<8x128xf32> -> vector<8x128xf32>
    %c0_57 = arith.constant 0 : index
    %c768_58 = arith.constant 768 : index
    %75 = vector.load %arg9[%c0_57, %c768_58] : memref<1x896xf32, #tpu.memory_space<vmem>>, vector<1x128xf32>
    %76 = vector.broadcast %75 : vector<1x128xf32> to vector<8x128xf32>
    %77 = arith.addf %74, %76 : vector<8x128xf32>
    %78 = math.tanh %77 : vector<8x128xf32>
    %79 = arith.truncf %78 : vector<8x128xf32> to vector<8x128xbf16>
    %c0_59 = arith.constant 0 : index
    %c768_60 = arith.constant 768 : index
    %80 = vector.load %arg10[%c0_59, %c768_60] : memref<8x896xbf16, #tpu.memory_space<vmem>>, vector<8x128xbf16>
    tpu.vector_store %arg10[%c0_59, %c768_60], %79 {strides = array<i32>} : memref<8x896xbf16, #tpu.memory_space<vmem>>, vector<8x128xbf16>,
    return
  }
  func.func @transform_0(%arg0: i32) -> (i32, i32) {
    %c0_i32 = arith.constant 0 : i32
    %c0_i32_0 = arith.constant 0 : i32
    return %arg0, %c0_i32 : i32, i32
  }
  func.func @transform_1(%arg0: i32) -> (i32, i32) {
    %c0_i32 = arith.constant 0 : i32
    %c0_i32_0 = arith.constant 0 : i32
    %c0_i32_1 = arith.constant 0 : i32
    return %c0_i32, %c0_i32_0 : i32, i32
  }
  func.func @transform_2(%arg0: i32) -> (i32, i32) {
    %c0_i32 = arith.constant 0 : i32
    %c0_i32_0 = arith.constant 0 : i32
    %c0_i32_1 = arith.constant 0 : i32
    return %c0_i32, %c0_i32_0 : i32, i32
  }
  func.func @transform_3(%arg0: i32) -> (i32, i32) {
    %c0_i32 = arith.constant 0 : i32
    %c0_i32_0 = arith.constant 0 : i32
    %c0_i32_1 = arith.constant 0 : i32
    return %c0_i32, %c0_i32_0 : i32, i32
  }
  func.func @transform_4(%arg0: i32) -> (i32, i32) {
    %c0_i32 = arith.constant 0 : i32
    %c0_i32_0 = arith.constant 0 : i32
    %c0_i32_1 = arith.constant 0 : i32
    return %c0_i32, %c0_i32_0 : i32, i32
  }
  func.func @transform_5(%arg0: i32) -> (i32, i32) {
    %c0_i32 = arith.constant 0 : i32
    %c0_i32_0 = arith.constant 0 : i32
    %c0_i32_1 = arith.constant 0 : i32
    return %c0_i32, %c0_i32_0 : i32, i32
  }
  func.func @transform_6(%arg0: i32) -> (i32, i32) {
    %c0_i32 = arith.constant 0 : i32
    %c0_i32_0 = arith.constant 0 : i32
    %c0_i32_1 = arith.constant 0 : i32
    return %c0_i32, %c0_i32_0 : i32, i32
  }
  func.func @transform_7(%arg0: i32) -> (i32, i32) {
    %c0_i32 = arith.constant 0 : i32
    %c0_i32_0 = arith.constant 0 : i32
    %c0_i32_1 = arith.constant 0 : i32
    return %c0_i32, %c0_i32_0 : i32, i32
  }
  func.func @transform_8(%arg0: i32) -> (i32, i32) {
    %c0_i32 = arith.constant 0 : i32
    %c0_i32_0 = arith.constant 0 : i32
    %c0_i32_1 = arith.constant 0 : i32
    return %c0_i32, %c0_i32_0 : i32, i32
  }
  func.func @transform_9(%arg0: i32) -> (i32, i32) {
    %c0_i32 = arith.constant 0 : i32
    %c0_i32_0 = arith.constant 0 : i32
    return %arg0, %c0_i32 : i32, i32
  }
}

</mosaic_0001>

<llo_original>
// kernel: generator_forward_padded.1
$region0: #{generator_forward_padded.1}
  #allocation0 [shape = 'u32[]', space=smem, size = 0x4, offset = 0x4, fixed_abs, tag = 'smem constant byte address 0x4 - core index']
  #allocation1 [shape = 'u32[144,128]{1,0:T(1,128)}', space=vmem, size = 0x12000, scoped, tag = 'internal scratch']
  %s0 = inlined_call_operand.vmem [shape: bf16[8,128], index: 0, kind: input, shape index: {}]
  %s1 = inlined_call_operand.hbm [shape: bf16[128,256], index: 1, kind: input, shape index: {}]
  %s2 = inlined_call_operand.hbm [shape: f32[1,256], index: 2, kind: input, shape index: {}]
  %s3 = inlined_call_operand.hbm [shape: bf16[256,512], index: 3, kind: input, shape index: {}]
  %s4 = inlined_call_operand.hbm [shape: f32[1,512], index: 4, kind: input, shape index: {}]
  %s5 = inlined_call_operand.hbm [shape: bf16[512,1024], index: 5, kind: input, shape index: {}]
  %s6 = inlined_call_operand.hbm [shape: f32[1,1024], index: 6, kind: input, shape index: {}]
  %s7 = inlined_call_operand.hbm [shape: bf16[1024,896], index: 7, kind: input, shape index: {}]
  %s8 = inlined_call_operand.hbm [shape: f32[1,896], index: 8, kind: input, shape index: {}]
  %s9 = inlined_call_operand.hbm [shape: bf16[8,896], index: 9, kind: output, shape index: {}]
  %s10 = sld [smem:[#allocation0]]
  $region78: #{generator_forward_padded.1} parent=0
    _
  %s12 = ssub.s32 1, %s10
  %s13 = scalar_select 0, %s12, %s10
  $region1: #{generator_forward_padded.1} parent=0
    #allocation2 [shape = 'u8[65536]{0}', space=vmem, size = 0x10000, scoped, tag = 'input window, operand 1, single buffered']
    #allocation3 [shape = 's32[1]{0}', space=sflag, size = 0x4, scoped, tag = 'scoped memory for generator_forward_padded.1']
    #allocation4 [shape = 's32[1]{0}', space=sflag, size = 0x4, scoped, tag = 'scoped memory for generator_forward_padded.1']
    #allocation5 [shape = 'u8[1024]{0}', space=vmem, size = 0x400, scoped, tag = 'input window, operand 2, single buffered']
    #allocation6 [shape = 's32[1]{0}', space=sflag, size = 0x4, scoped, tag = 'scoped memory for generator_forward_padded.1']
    #allocation7 [shape = 'u8[262144]{0}', space=vmem, size = 0x40000, scoped, tag = 'input window, operand 3, single buffered']
    #allocation8 [shape = 'u8[2048]{0}', space=vmem, size = 0x800, scoped, tag = 'input window, operand 4, single buffered']
    #allocation9 [shape = 's32[1]{0}', space=sflag, size = 0x4, scoped, tag = 'scoped memory for generator_forward_padded.1']
    #allocation10 [shape = 'u8[1048576]{0}', space=vmem, size = 0x100000, scoped, tag = 'input window, operand 5, single buffered']
    #allocation11 [shape = 'u8[4096]{0}', space=vmem, size = 0x1000, scoped, tag = 'input window, operand 6, single buffered']
    #allocation12 [shape = 's32[1]{0}', space=sflag, size = 0x4, scoped, tag = 'scoped memory for generator_forward_padded.1']
    #allocation13 [shape = 'u8[1835008]{0}', space=vmem, size = 0x1c0000, scoped, tag = 'input window, operand 7, single buffered']
    #allocation14 [shape = 'u8[3584]{0}', space=vmem, size = 0x1000, scoped, tag = 'input window, operand 8, single buffered']
    #allocation15 [shape = 's32[1]{0}', space=sflag, size = 0x4, scoped, tag = 'scoped memory for generator_forward_padded.1']
    #allocation16 [shape = 'u8[14336]{0}', space=vmem, size = 0x3800, scoped, tag = 'output window, operand 0, single buffered']
    %14 = vsyncpa [#allocation3], 0
    %15 = vsyncpa [#allocation6], 0
    %16 = vsyncpa [#allocation9], 0
    %17 = vsyncpa [#allocation12], 0
    %18 = vsyncpa [#allocation15], 0
    %19 = vsyncpa [#allocation4], 0
    // Predicated region
    $region2: #{generator_forward_padded.1} parent=1 // pred_check
      _
    $region3: #{generator_forward_padded.1} parent=1 // pred_check_branch
      %21 = sbr.rel (0) target = $region5
    $region4: #{generator_forward_padded.1} parent=1 // pred_region
      _
    $region5: #{generator_forward_padded.1} parent=1 // pred_fallthru
      _
    // Predicated region
    $region6: #{generator_forward_padded.1} parent=1 // pred_check
      _
    $region7: #{generator_forward_padded.1} parent=1 // pred_check_branch
      %23 = sbr.rel (0) target = $region9
    $region8: #{generator_forward_padded.1} parent=1 // pred_region
      %s25 = ssub.s32 2048, 2048
      %26 = vsyncadd [#allocation3], %s25
      %s27 = sshll.u32 [#allocation2], 4
      %s28 = int_to_ptr.vmem [resolvable:$true] %s27
      %33 = dma.hbm_to_vmem [thread:$0]  %s1, 2048, %s28, [#allocation3], 128, 128, 8
    $region9: #{generator_forward_padded.1} parent=1 // pred_fallthru
      _
    // Predicated region
    $region10: #{generator_forward_padded.1} parent=1 // pred_check
      _
    $region11: #{generator_forward_padded.1} parent=1 // pred_check_branch
      %35 = sbr.rel (0) target = $region13
    $region12: #{generator_forward_padded.1} parent=1 // pred_region
      %s37 = ssub.s32 32, 32
      %38 = vsyncadd [#allocation6], %s37
      %s40 = sshll.u32 [#allocation5], 4
      %s41 = int_to_ptr.vmem [resolvable:$true] %s40
      %43 = dma.hbm_to_vmem [thread:$0]  %s2, 32, %s41, [#allocation6]
    $region13: #{generator_forward_padded.1} parent=1 // pred_fallthru
      _
    // Predicated region
    $region14: #{generator_forward_padded.1} parent=1 // pred_check
      _
    $region15: #{generator_forward_padded.1} parent=1 // pred_check_branch
      %45 = sbr.rel (0) target = $region17
    $region16: #{generator_forward_padded.1} parent=1 // pred_region
      %s47 = ssub.s32 8192, 8192
      %48 = vsyncadd [#allocation6], %s47
      %s49 = sshll.u32 [#allocation7], 4
      %s50 = int_to_ptr.vmem [resolvable:$true] %s49
      %55 = dma.hbm_to_vmem [thread:$0]  %s3, 8192, %s50, [#allocation6], 256, 256, 16
    $region17: #{generator_forward_padded.1} parent=1 // pred_fallthru
      _
    // Predicated region
    $region18: #{generator_forward_padded.1} parent=1 // pred_check
      _
    $region19: #{generator_forward_padded.1} parent=1 // pred_check_branch
      %57 = sbr.rel (0) target = $region21
    $region20: #{generator_forward_padded.1} parent=1 // pred_region
      %s59 = ssub.s32 64, 64
      %60 = vsyncadd [#allocation9], %s59
      %s62 = sshll.u32 [#allocation8], 4
      %s63 = int_to_ptr.vmem [resolvable:$true] %s62
      %65 = dma.hbm_to_vmem [thread:$0]  %s4, 64, %s63, [#allocation9]
    $region21: #{generator_forward_padded.1} parent=1 // pred_fallthru
      _
    // Predicated region
    $region22: #{generator_forward_padded.1} parent=1 // pred_check
      _
    $region23: #{generator_forward_padded.1} parent=1 // pred_check_branch
      %67 = sbr.rel (0) target = $region25
    $region24: #{generator_forward_padded.1} parent=1 // pred_region
      %s69 = ssub.s32 32768, 32768
      %70 = vsyncadd [#allocation9], %s69
      %s71 = sshll.u32 [#allocation10], 4
      %s72 = int_to_ptr.vmem [resolvable:$true] %s71
      %77 = dma.hbm_to_vmem [thread:$0]  %s5, 32768, %s72, [#allocation9], 512, 512, 32
    $region25: #{generator_forward_padded.1} parent=1 // pred_fallthru
      _
    // Predicated region
    $region26: #{generator_forward_padded.1} parent=1 // pred_check
      _
    $region27: #{generator_forward_padded.1} parent=1 // pred_check_branch
      %79 = sbr.rel (0) target = $region29
    $region28: #{generator_forward_padded.1} parent=1 // pred_region
      %s81 = ssub.s32 128, 128
      %82 = vsyncadd [#allocation12], %s81
      %s84 = sshll.u32 [#allocation11], 4
      %s85 = int_to_ptr.vmem [resolvable:$true] %s84
      %87 = dma.hbm_to_vmem [thread:$0]  %s6, 128, %s85, [#allocation12]
    $region29: #{generator_forward_padded.1} parent=1 // pred_fallthru
      _
    // Predicated region
    $region30: #{generator_forward_padded.1} parent=1 // pred_check
      _
    $region31: #{generator_forward_padded.1} parent=1 // pred_check_branch
      %89 = sbr.rel (0) target = $region33
    $region32: #{generator_forward_padded.1} parent=1 // pred_region
      %s91 = ssub.s32 57344, 57344
      %92 = vsyncadd [#allocation12], %s91
      %s93 = sshll.u32 [#allocation13], 4
      %s94 = int_to_ptr.vmem [resolvable:$true] %s93
      %99 = dma.hbm_to_vmem [thread:$0]  %s7, 57344, %s94, [#allocation12], 448, 448, 28
    $region33: #{generator_forward_padded.1} parent=1 // pred_fallthru
      _
    // Predicated region
    $region34: #{generator_forward_padded.1} parent=1 // pred_check
      _
    $region35: #{generator_forward_padded.1} parent=1 // pred_check_branch
      %101 = sbr.rel (0) target = $region37
    $region36: #{generator_forward_padded.1} parent=1 // pred_region
      %s103 = ssub.s32 112, 112
      %104 = vsyncadd [#allocation15], %s103
      %s106 = sshll.u32 [#allocation14], 4
      %s107 = int_to_ptr.vmem [resolvable:$true] %s106
      %109 = dma.hbm_to_vmem [thread:$0]  %s8, 112, %s107, [#allocation15]
    $region37: #{generator_forward_padded.1} parent=1 // pred_fallthru
      _
    // Predicated region
    $region38: #{generator_forward_padded.1} parent=1 // pred_check
      _
    $region39: #{generator_forward_padded.1} parent=1 // pred_check_branch
      %111 = sbr.rel (0) target = $region41
    $region40: #{generator_forward_padded.1} parent=1 // pred_region
      %112 = dma.done [#allocation3], 2048
    $region41: #{generator_forward_padded.1} parent=1 // pred_fallthru
      _
    // Predicated region
    $region42: #{generator_forward_padded.1} parent=1 // pred_check
      _
    $region43: #{generator_forward_padded.1} parent=1 // pred_check_branch
      %114 = sbr.rel (0) target = $region45
    $region44: #{generator_forward_padded.1} parent=1 // pred_region
      %115 = dma.done [#allocation6], 32
    $region45: #{generator_forward_padded.1} parent=1 // pred_fallthru
      _
    // Predicated region
    $region46: #{generator_forward_padded.1} parent=1 // pred_check
      _
    $region47: #{generator_forward_padded.1} parent=1 // pred_check_branch
      %117 = sbr.rel (0) target = $region49
    $region48: #{generator_forward_padded.1} parent=1 // pred_region
      %118 = dma.done [#allocation6], 8192
    $region49: #{generator_forward_padded.1} parent=1 // pred_fallthru
      _
    // Predicated region
    $region50: #{generator_forward_padded.1} parent=1 // pred_check
      _
    $region51: #{generator_forward_padded.1} parent=1 // pred_check_branch
      %120 = sbr.rel (0) target = $region53
    $region52: #{generator_forward_padded.1} parent=1 // pred_region
      %121 = dma.done [#allocation9], 64
    $region53: #{generator_forward_padded.1} parent=1 // pred_fallthru
      _
    // Predicated region
    $region54: #{generator_forward_padded.1} parent=1 // pred_check
      _
    $region55: #{generator_forward_padded.1} parent=1 // pred_check_branch
      %123 = sbr.rel (0) target = $region57
    $region56: #{generator_forward_padded.1} parent=1 // pred_region
      %124 = dma.done [#allocation9], 32768
    $region57: #{generator_forward_padded.1} parent=1 // pred_fallthru
      _
    // Predicated region
    $region58: #{generator_forward_padded.1} parent=1 // pred_check
      _
    $region59: #{generator_forward_padded.1} parent=1 // pred_check_branch
      %126 = sbr.rel (0) target = $region61
    $region60: #{generator_forward_padded.1} parent=1 // pred_region
      %127 = dma.done [#allocation12], 128
    $region61: #{generator_forward_padded.1} parent=1 // pred_fallthru
      _
    // Predicated region
    $region62: #{generator_forward_padded.1} parent=1 // pred_check
      _
    $region63: #{generator_forward_padded.1} parent=1 // pred_check_branch
      %129 = sbr.rel (0) target = $region65
    $region64: #{generator_forward_padded.1} parent=1 // pred_region
      %130 = dma.done [#allocation12], 57344
    $region65: #{generator_forward_padded.1} parent=1 // pred_fallthru
      _
    // Predicated region
    $region66: #{generator_forward_padded.1} parent=1 // pred_check
      _
    $region67: #{generator_forward_padded.1} parent=1 // pred_check_branch
      %132 = sbr.rel (0) target = $region69
    $region68: #{generator_forward_padded.1} parent=1 // pred_region
      %133 = dma.done [#allocation15], 112
    $region69: #{generator_forward_padded.1} parent=1 // pred_fallthru
      _
    %v135 = vld [vmem:[%s0] sm:$0xf]
    %v136 = vld [vmem:[#allocation2] sm:$0xff]
    %v137 = vld [vmem:[#allocation2 + $0x8] sm:$0xff]
    %v138 = vld [vmem:[#allocation2 + $0x10] sm:$0xff]
    %v139 = vld [vmem:[#allocation2 + $0x18] sm:$0xff]
    %v140 = vld [vmem:[#allocation2 + $0x20] sm:$0xff]
    %v141 = vld [vmem:[#allocation2 + $0x28] sm:$0xff]
    %v142 = vld [vmem:[#allocation2 + $0x30] sm:$0xff]
    %v143 = vld [vmem:[#allocation2 + $0x38] sm:$0xff]
    %v144 = vld [vmem:[#allocation2 + $0x40] sm:$0xff]
    %v145 = vld [vmem:[#allocation2 + $0x48] sm:$0xff]
    %v146 = vld [vmem:[#allocation2 + $0x50] sm:$0xff]
    %v147 = vld [vmem:[#allocation2 + $0x58] sm:$0xff]
    %v148 = vld [vmem:[#allocation2 + $0x60] sm:$0xff]
    %v149 = vld [vmem:[#allocation2 + $0x68] sm:$0xff]
    %v150 = vld [vmem:[#allocation2 + $0x70] sm:$0xff]
    %v151 = vld [vmem:[#allocation2 + $0x78] sm:$0xff]
    %v152 = vld [vmem:[#allocation5] sm:$0x3]
    %v154 = vlaneseq
    %v155 = vshrl.u32 %v154, 7
    %v156 = vsub.s32 0, %v155
    %v157 = vrot.slane %v152, %v156
    %v158 = vlaneseq
    %v159 = vshrl.u32 %v158, 7
    %v160 = vsub.s32 1, %v159
    %v161 = vrot.slane %v152, %v160
    %v180 = vunpack.c.l.b16 %v136
    %v181 = vunpack.c.h.b16 %v136
    %v182 = vunpack.c.l.b16 %v137
    %v183 = vunpack.c.h.b16 %v137
    %v184 = vunpack.c.l.b16 %v138
    %v185 = vunpack.c.h.b16 %v138
    %v186 = vunpack.c.l.b16 %v139
    %v187 = vunpack.c.h.b16 %v139
    %v188 = vunpack.c.l.b16 %v140
    %v189 = vunpack.c.h.b16 %v140
    %v190 = vunpack.c.l.b16 %v141
    %v191 = vunpack.c.h.b16 %v141
    %v192 = vunpack.c.l.b16 %v142
    %v193 = vunpack.c.h.b16 %v142
    %v194 = vunpack.c.l.b16 %v143
    %v195 = vunpack.c.h.b16 %v143
    %v196 = vunpack.c.l.b16 %v144
    %v197 = vunpack.c.h.b16 %v144
    %v198 = vunpack.c.l.b16 %v145
    %v199 = vunpack.c.h.b16 %v145
    %v200 = vunpack.c.l.b16 %v146
    %v201 = vunpack.c.h.b16 %v146
    %v202 = vunpack.c.l.b16 %v147
    %v203 = vunpack.c.h.b16 %v147
    %v204 = vunpack.c.l.b16 %v148
    %v205 = vunpack.c.h.b16 %v148
    %v206 = vunpack.c.l.b16 %v149
    %v207 = vunpack.c.h.b16 %v149
    %v208 = vunpack.c.l.b16 %v150
    %v209 = vunpack.c.h.b16 %v150
    %v210 = vunpack.c.l.b16 %v151
    %v211 = vunpack.c.h.b16 %v151
    %v212 = vpack.c.b16 %v182, %v180
    %v213 = vpack.c.b16 %v183, %v181
    %v214 = vpack.c.b16 %v186, %v184
    %v215 = vpack.c.b16 %v187, %v185
    %v216 = vpack.c.b16 %v190, %v188
    %v217 = vpack.c.b16 %v191, %v189
    %v218 = vpack.c.b16 %v194, %v192
    %v219 = vpack.c.b16 %v195, %v193
    %v220 = vpack.c.b16 %v198, %v196
    %v221 = vpack.c.b16 %v199, %v197
    %v222 = vpack.c.b16 %v202, %v200
    %v223 = vpack.c.b16 %v203, %v201
    %v224 = vpack.c.b16 %v206, %v204
    %v225 = vpack.c.b16 %v207, %v205
    %v226 = vpack.c.b16 %v210, %v208
    %v227 = vpack.c.b16 %v211, %v209
    %244 = vmatprep.subr.bf16.mxu0 %v213
    %245 = vmatpush1.bf16.msra.mxu0 %v212
    %246 = vmatprep.subr.bf16.mxu0 %v215
    %247 = vmatpush1.bf16.msra.mxu0 %v214
    %248 = vmatprep.subr.bf16.mxu0 %v217
    %249 = vmatpush1.bf16.msra.mxu0 %v216
    %250 = vmatprep.subr.bf16.mxu0 %v219
    %251 = vmatpush1.bf16.msra.mxu0 %v218
    %252 = vmatprep.subr.bf16.mxu0 %v221
    %253 = vmatpush1.bf16.msra.mxu0 %v220
    %254 = vmatprep.subr.bf16.mxu0 %v223
    %255 = vmatpush1.bf16.msra.mxu0 %v222
    %256 = vmatprep.subr.bf16.mxu0 %v225
    %257 = vmatpush1.bf16.msra.mxu0 %v224
    %258 = vmatprep.subr.bf16.mxu0 %v227
    %259 = vmatpush1.bf16.msra.mxu0 %v226
    %260 = vmatprep.subr.bf16.mxu0 0
    %261 = vmatpush1.bf16.msra.mxu0 0
    %262 = vmatprep.subr.bf16.mxu0 0
    %263 = vmatpush1.bf16.msra.mxu0 0
    %264 = vmatprep.subr.bf16.mxu0 0
    %265 = vmatpush1.bf16.msra.mxu0 0
    %266 = vmatprep.subr.bf16.mxu0 0
    %267 = vmatpush1.bf16.msra.mxu0 0
    %268 = vmatprep.subr.bf16.mxu0 0
    %269 = vmatpush1.bf16.msra.mxu0 0
    %270 = vmatprep.subr.bf16.mxu0 0
    %271 = vmatpush1.bf16.msra.mxu0 0
    %272 = vmatprep.subr.bf16.mxu0 0
    %273 = vmatpush1.bf16.msra.mxu0 0
    %274 = vmatprep.subr.bf16.mxu0 0
    %275 = vmatpush1.bf16.msra.mxu0 0
    %276 = vmatprep.mubr.bf16.mxu0 0
    %277 = vmatmul.mubr.bf16.gmra.mrb[0].mxu0 %v135
    %v278 = vpop.f32.mrb[0].mxu0
    %v279 = vadd.f32 %v157, %v278
    %v280 = vpop.f32.mrb[0].mxu0
    %v281 = vadd.f32 %v161, %v280
    %v282 = vpop.f32.mrb[0].mxu0
    %v283 = vpop.f32.mrb[0].mxu0
    %284 = vdwg.mxu0
    %v285 = vmax.f32 %v279, 0.0
    %v286 = vmax.f32 %v281, 0.0
    %v287 = vpack.c.bf16 %v285, %v285
    %v288 = vpack.c.bf16 %v286, %v286
    %v289 = vld [vmem:[#allocation7] sm:$0xff]
    %v290 = vld [vmem:[#allocation7 + $0x8] sm:$0xff]
    %v291 = vld [vmem:[#allocation7 + $0x10] sm:$0xff]
    %v292 = vld [vmem:[#allocation7 + $0x18] sm:$0xff]
    %v293 = vld [vmem:[#allocation7 + $0x20] sm:$0xff]
    %v294 = vld [vmem:[#allocation7 + $0x28] sm:$0xff]
    %v295 = vld [vmem:[#allocation7 + $0x30] sm:$0xff]
    %v296 = vld [vmem:[#allocation7 + $0x38] sm:$0xff]
    %v297 = vld [vmem:[#allocation7 + $0x40] sm:$0xff]
    %v298 = vld [vmem:[#allocation7 + $0x48] sm:$0xff]
    %v299 = vld [vmem:[#allocation7 + $0x50] sm:$0xff]
    %v300 = vld [vmem:[#allocation7 + $0x58] sm:$0xff]
    %v301 = vld [vmem:[#allocation7 + $0x60] sm:$0xff]
    %v302 = vld [vmem:[#allocation7 + $0x68] sm:$0xff]
    %v303 = vld [vmem:[#allocation7 + $0x70] sm:$0xff]
    %v304 = vld [vmem:[#allocation7 + $0x78] sm:$0xff]
    %v305 = vld [vmem:[#allocation7 + $0x80] sm:$0xff]
    %v306 = vld [vmem:[#allocation7 + $0x88] sm:$0xff]
    %v307 = vld [vmem:[#allocation7 + $0x90] sm:$0xff]
    %v308 = vld [vmem:[#allocation7 + $0x98] sm:$0xff]
    %v309 = vld [vmem:[#allocation7 + $0xa0] sm:$0xff]
    %v310 = vld [vmem:[#allocation7 + $0xa8] sm:$0xff]
    %v311 = vld [vmem:[#allocation7 + $0xb0] sm:$0xff]
    %v312 = vld [vmem:[#allocation7 + $0xb8] sm:$0xff]
    %v313 = vld [vmem:[#allocation7 + $0xc0] sm:$0xff]
    %v314 = vld [vmem:[#allocation7 + $0xc8] sm:$0xff]
    %v315 = vld [vmem:[#allocation7 + $0xd0] sm:$0xff]
    %v316 = vld [vmem:[#allocation7 + $0xd8] sm:$0xff]
    %v317 = vld [vmem:[#allocation7 + $0xe0] sm:$0xff]
    %v318 = vld [vmem:[#allocation7 + $0xe8] sm:$0xff]
    %v319 = vld [vmem:[#allocation7 + $0xf0] sm:$0xff]
    %v320 = vld [vmem:[#allocation7 + $0xf8] sm:$0xff]
    %v321 = vld [vmem:[#allocation7 + $0x100] sm:$0xff]
    %v322 = vld [vmem:[#allocation7 + $0x108] sm:$0xff]
    %v323 = vld [vmem:[#allocation7 + $0x110] sm:$0xff]
    %v324 = vld [vmem:[#allocation7 + $0x118] sm:$0xff]
    %v325 = vld [vmem:[#allocation7 + $0x120] sm:$0xff]
    %v326 = vld [vmem:[#allocation7 + $0x128] sm:$0xff]
    %v327 = vld [vmem:[#allocation7 + $0x130] sm:$0xff]
    %v328 = vld [vmem:[#allocation7 + $0x138] sm:$0xff]
    %v329 = vld [vmem:[#allocation7 + $0x140] sm:$0xff]
    %v330 = vld [vmem:[#allocation7 + $0x148] sm:$0xff]
    %v331 = vld [vmem:[#allocation7 + $0x150] sm:$0xff]
    %v332 = vld [vmem:[#allocation7 + $0x158] sm:$0xff]
    %v333 = vld [vmem:[#allocation7 + $0x160] sm:$0xff]
    %v334 = vld [vmem:[#allocation7 + $0x168] sm:$0xff]
    %v335 = vld [vmem:[#allocation7 + $0x170] sm:$0xff]
    %v336 = vld [vmem:[#allocation7 + $0x178] sm:$0xff]
    %v337 = vld [vmem:[#allocation7 + $0x180] sm:$0xff]
    %v338 = vld [vmem:[#allocation7 + $0x188] sm:$0xff]
    %v339 = vld [vmem:[#allocation7 + $0x190] sm:$0xff]
    %v340 = vld [vmem:[#allocation7 + $0x198] sm:$0xff]
    %v341 = vld [vmem:[#allocation7 + $0x1a0] sm:$0xff]
    %v342 = vld [vmem:[#allocation7 + $0x1a8] sm:$0xff]
    %v343 = vld [vmem:[#allocation7 + $0x1b0] sm:$0xff]
    %v344 = vld [vmem:[#allocation7 + $0x1b8] sm:$0xff]
    %v345 = vld [vmem:[#allocation7 + $0x1c0] sm:$0xff]
    %v346 = vld [vmem:[#allocation7 + $0x1c8] sm:$0xff]
    %v347 = vld [vmem:[#allocation7 + $0x1d0] sm:$0xff]
    %v348 = vld [vmem:[#allocation7 + $0x1d8] sm:$0xff]
    %v349 = vld [vmem:[#allocation7 + $0x1e0] sm:$0xff]
    %v350 = vld [vmem:[#allocation7 + $0x1e8] sm:$0xff]
    %v351 = vld [vmem:[#allocation7 + $0x1f0] sm:$0xff]
    %v352 = vld [vmem:[#allocation7 + $0x1f8] sm:$0xff]
    %v353 = vld [vmem:[#allocation8] sm:$0xf]
    %v355 = vlaneseq
    %v356 = vshrl.u32 %v355, 7
    %v357 = vsub.s32 0, %v356
    %v358 = vrot.slane %v353, %v357
    %v359 = vlaneseq
    %v360 = vshrl.u32 %v359, 7
    %v361 = vsub.s32 1, %v360
    %v362 = vrot.slane %v353, %v361
    %v363 = vlaneseq
    %v364 = vshrl.u32 %v363, 7
    %v365 = vsub.s32 2, %v364
    %v366 = vrot.slane %v353, %v365
    %v367 = vlaneseq
    %v368 = vshrl.u32 %v367, 7
    %v369 = vsub.s32 3, %v368
    %v370 = vrot.slane %v353, %v369
    %v439 = vunpack.c.l.b16 %v289
    %v440 = vunpack.c.h.b16 %v289
    %v441 = vunpack.c.l.b16 %v290
    %v442 = vunpack.c.h.b16 %v290
    %v443 = vunpack.c.l.b16 %v291
    %v444 = vunpack.c.h.b16 %v291
    %v445 = vunpack.c.l.b16 %v292
    %v446 = vunpack.c.h.b16 %v292
    %v447 = vunpack.c.l.b16 %v293
    %v448 = vunpack.c.h.b16 %v293
    %v449 = vunpack.c.l.b16 %v294
    %v450 = vunpack.c.h.b16 %v294
    %v451 = vunpack.c.l.b16 %v295
    %v452 = vunpack.c.h.b16 %v295
    %v453 = vunpack.c.l.b16 %v296
    %v454 = vunpack.c.h.b16 %v296
    %v455 = vunpack.c.l.b16 %v297
    %v456 = vunpack.c.h.b16 %v297
    %v457 = vunpack.c.l.b16 %v298
    %v458 = vunpack.c.h.b16 %v298
    %v459 = vunpack.c.l.b16 %v299
    %v460 = vunpack.c.h.b16 %v299
    %v461 = vunpack.c.l.b16 %v300
    %v462 = vunpack.c.h.b16 %v300
    %v463 = vunpack.c.l.b16 %v301
    %v464 = vunpack.c.h.b16 %v301
    %v465 = vunpack.c.l.b16 %v302
    %v466 = vunpack.c.h.b16 %v302
    %v467 = vunpack.c.l.b16 %v303
    %v468 = vunpack.c.h.b16 %v303
    %v469 = vunpack.c.l.b16 %v304
    %v470 = vunpack.c.h.b16 %v304
    %v471 = vunpack.c.l.b16 %v305
    %v472 = vunpack.c.h.b16 %v305
    %v473 = vunpack.c.l.b16 %v306
    %v474 = vunpack.c.h.b16 %v306
    %v475 = vunpack.c.l.b16 %v307
    %v476 = vunpack.c.h.b16 %v307
    %v477 = vunpack.c.l.b16 %v308
    %v478 = vunpack.c.h.b16 %v308
    %v479 = vunpack.c.l.b16 %v309
    %v480 = vunpack.c.h.b16 %v309
    %v481 = vunpack.c.l.b16 %v310
    %v482 = vunpack.c.h.b16 %v310
    %v483 = vunpack.c.l.b16 %v311
    %v484 = vunpack.c.h.b16 %v311
    %v485 = vunpack.c.l.b16 %v312
    %v486 = vunpack.c.h.b16 %v312
    %v487 = vunpack.c.l.b16 %v313
    %v488 = vunpack.c.h.b16 %v313
    %v489 = vunpack.c.l.b16 %v314
    %v490 = vunpack.c.h.b16 %v314
    %v491 = vunpack.c.l.b16 %v315
    %v492 = vunpack.c.h.b16 %v315
    %v493 = vunpack.c.l.b16 %v316
    %v494 = vunpack.c.h.b16 %v316
    %v495 = vunpack.c.l.b16 %v317
    %v496 = vunpack.c.h.b16 %v317
    %v497 = vunpack.c.l.b16 %v318
    %v498 = vunpack.c.h.b16 %v318
    %v499 = vunpack.c.l.b16 %v319
    %v500 = vunpack.c.h.b16 %v319
    %v501 = vunpack.c.l.b16 %v320
    %v502 = vunpack.c.h.b16 %v320
    %v503 = vunpack.c.l.b16 %v321
    %v504 = vunpack.c.h.b16 %v321
    %v505 = vunpack.c.l.b16 %v322
    %v506 = vunpack.c.h.b16 %v322
    %v507 = vunpack.c.l.b16 %v323
    %v508 = vunpack.c.h.b16 %v323
    %v509 = vunpack.c.l.b16 %v324
    %v510 = vunpack.c.h.b16 %v324
    %v511 = vunpack.c.l.b16 %v325
    %v512 = vunpack.c.h.b16 %v325
    %v513 = vunpack.c.l.b16 %v326
    %v514 = vunpack.c.h.b16 %v326
    %v515 = vunpack.c.l.b16 %v327
    %v516 = vunpack.c.h.b16 %v327
    %v517 = vunpack.c.l.b16 %v328
    %v518 = vunpack.c.h.b16 %v328
    %v519 = vunpack.c.l.b16 %v329
    %v520 = vunpack.c.h.b16 %v329
    %v521 = vunpack.c.l.b16 %v330
    %v522 = vunpack.c.h.b16 %v330
    %v523 = vunpack.c.l.b16 %v331
    %v524 = vunpack.c.h.b16 %v331
    %v525 = vunpack.c.l.b16 %v332
    %v526 = vunpack.c.h.b16 %v332
    %v527 = vunpack.c.l.b16 %v333
    %v528 = vunpack.c.h.b16 %v333
    %v529 = vunpack.c.l.b16 %v334
    %v530 = vunpack.c.h.b16 %v334
    %v531 = vunpack.c.l.b16 %v335
    %v532 = vunpack.c.h.b16 %v335
    %v533 = vunpack.c.l.b16 %v336
    %v534 = vunpack.c.h.b16 %v336
    %v535 = vunpack.c.l.b16 %v337
    %v536 = vunpack.c.h.b16 %v337
    %v537 = vunpack.c.l.b16 %v338
    %v538 = vunpack.c.h.b16 %v338
    %v539 = vunpack.c.l.b16 %v339
    %v540 = vunpack.c.h.b16 %v339
    %v541 = vunpack.c.l.b16 %v340
    %v542 = vunpack.c.h.b16 %v340
    %v543 = vunpack.c.l.b16 %v341
    %v544 = vunpack.c.h.b16 %v341
    %v545 = vunpack.c.l.b16 %v342
    %v546 = vunpack.c.h.b16 %v342
    %v547 = vunpack.c.l.b16 %v343
    %v548 = vunpack.c.h.b16 %v343
    %v549 = vunpack.c.l.b16 %v344
    %v550 = vunpack.c.h.b16 %v344
    %v551 = vunpack.c.l.b16 %v345
    %v552 = vunpack.c.h.b16 %v345
    %v553 = vunpack.c.l.b16 %v346
    %v554 = vunpack.c.h.b16 %v346
    %v555 = vunpack.c.l.b16 %v347
    %v556 = vunpack.c.h.b16 %v347
    %v557 = vunpack.c.l.b16 %v348
    %v558 = vunpack.c.h.b16 %v348
    %v559 = vunpack.c.l.b16 %v349
    %v560 = vunpack.c.h.b16 %v349
    %v561 = vunpack.c.l.b16 %v350
    %v562 = vunpack.c.h.b16 %v350
    %v563 = vunpack.c.l.b16 %v351
    %v564 = vunpack.c.h.b16 %v351
    %v565 = vunpack.c.l.b16 %v352
    %v566 = vunpack.c.h.b16 %v352
    %v567 = vpack.c.b16 %v443, %v439
    %v568 = vpack.c.b16 %v444, %v440
    %v569 = vpack.c.b16 %v445, %v441
    %v570 = vpack.c.b16 %v446, %v442
    %v571 = vpack.c.b16 %v451, %v447
    %v572 = vpack.c.b16 %v452, %v448
    %v573 = vpack.c.b16 %v453, %v449
    %v574 = vpack.c.b16 %v454, %v450
    %v575 = vpack.c.b16 %v459, %v455
    %v576 = vpack.c.b16 %v460, %v456
    %v577 = vpack.c.b16 %v461, %v457
    %v578 = vpack.c.b16 %v462, %v458
    %v579 = vpack.c.b16 %v467, %v463
    %v580 = vpack.c.b16 %v468, %v464
    %v581 = vpack.c.b16 %v469, %v465
    %v582 = vpack.c.b16 %v470, %v466
    %v583 = vpack.c.b16 %v475, %v471
    %v584 = vpack.c.b16 %v476, %v472
    %v585 = vpack.c.b16 %v477, %v473
    %v586 = vpack.c.b16 %v478, %v474
    %v587 = vpack.c.b16 %v483, %v479
    %v588 = vpack.c.b16 %v484, %v480
    %v589 = vpack.c.b16 %v485, %v481
    %v590 = vpack.c.b16 %v486, %v482
    %v591 = vpack.c.b16 %v491, %v487
    %v592 = vpack.c.b16 %v492, %v488
    %v593 = vpack.c.b16 %v493, %v489
    %v594 = vpack.c.b16 %v494, %v490
    %v595 = vpack.c.b16 %v499, %v495
    %v596 = vpack.c.b16 %v500, %v496
    %v597 = vpack.c.b16 %v501, %v497
    %v598 = vpack.c.b16 %v502, %v498
    %v599 = vpack.c.b16 %v507, %v503
    %v600 = vpack.c.b16 %v508, %v504
    %v601 = vpack.c.b16 %v509, %v505
    %v602 = vpack.c.b16 %v510, %v506
    %v603 = vpack.c.b16 %v515, %v511
    %v604 = vpack.c.b16 %v516, %v512
    %v605 = vpack.c.b16 %v517, %v513
    %v606 = vpack.c.b16 %v518, %v514
    %v607 = vpack.c.b16 %v523, %v519
    %v608 = vpack.c.b16 %v524, %v520
    %v609 = vpack.c.b16 %v525, %v521
    %v610 = vpack.c.b16 %v526, %v522
    %v611 = vpack.c.b16 %v531, %v527
    %v612 = vpack.c.b16 %v532, %v528
    %v613 = vpack.c.b16 %v533, %v529
    %v614 = vpack.c.b16 %v534, %v530
    %v615 = vpack.c.b16 %v539, %v535
    %v616 = vpack.c.b16 %v540, %v536
    %v617 = vpack.c.b16 %v541, %v537
    %v618 = vpack.c.b16 %v542, %v538
    %v619 = vpack.c.b16 %v547, %v543
    %v620 = vpack.c.b16 %v548, %v544
    %v621 = vpack.c.b16 %v549, %v545
    %v622 = vpack.c.b16 %v550, %v546
    %v623 = vpack.c.b16 %v555, %v551
    %v624 = vpack.c.b16 %v556, %v552
    %v625 = vpack.c.b16 %v557, %v553
    %v626 = vpack.c.b16 %v558, %v554
    %v627 = vpack.c.b16 %v563, %v559
    %v628 = vpack.c.b16 %v564, %v560
    %v629 = vpack.c.b16 %v565, %v561
    %v630 = vpack.c.b16 %v566, %v562
    %695 = vmatprep.subr.bf16.mxu0 %v568
    %696 = vmatpush1.bf16.msra.mxu0 %v567
    %697 = vmatprep.subr.bf16.mxu0 %v572
    %698 = vmatpush1.bf16.msra.mxu0 %v571
    %699 = vmatprep.subr.bf16.mxu0 %v576
    %700 = vmatpush1.bf16.msra.mxu0 %v575
    %701 = vmatprep.subr.bf16.mxu0 %v580
    %702 = vmatpush1.bf16.msra.mxu0 %v579
    %703 = vmatprep.subr.bf16.mxu0 %v584
    %704 = vmatpush1.bf16.msra.mxu0 %v583
    %705 = vmatprep.subr.bf16.mxu0 %v588
    %706 = vmatpush1.bf16.msra.mxu0 %v587
    %707 = vmatprep.subr.bf16.mxu0 %v592
    %708 = vmatpush1.bf16.msra.mxu0 %v591
    %709 = vmatprep.subr.bf16.mxu0 %v596
    %710 = vmatpush1.bf16.msra.mxu0 %v595
    %711 = vmatprep.subr.bf16.mxu0 %v600
    %712 = vmatpush1.bf16.msra.mxu0 %v599
    %713 = vmatprep.subr.bf16.mxu0 %v604
    %714 = vmatpush1.bf16.msra.mxu0 %v603
    %715 = vmatprep.subr.bf16.mxu0 %v608
    %716 = vmatpush1.bf16.msra.mxu0 %v607
    %717 = vmatprep.subr.bf16.mxu0 %v612
    %718 = vmatpush1.bf16.msra.mxu0 %v611
    %719 = vmatprep.subr.bf16.mxu0 %v616
    %720 = vmatpush1.bf16.msra.mxu0 %v615
    %721 = vmatprep.subr.bf16.mxu0 %v620
    %722 = vmatpush1.bf16.msra.mxu0 %v619
    %723 = vmatprep.subr.bf16.mxu0 %v624
    %724 = vmatpush1.bf16.msra.mxu0 %v623
    %725 = vmatprep.subr.bf16.mxu0 %v628
    %726 = vmatpush1.bf16.msra.mxu0 %v627
    %727 = vmatprep.mubr.bf16.mxu0 %v288
    %728 = vmatmul.mubr.bf16.gmra.mrb[0].mxu0 %v287
    %v729 = vpop.f32.mrb[0].mxu0
    %v730 = vadd.f32 %v358, %v729
    %v731 = vpop.f32.mrb[0].mxu0
    %v732 = vadd.f32 %v362, %v731
    %v733 = vpop.f32.mrb[0].mxu0
    %v734 = vpop.f32.mrb[0].mxu0
    %735 = vdwg.mxu0
    %736 = vmatprep.subr.bf16.mxu0 %v570
    %737 = vmatpush1.bf16.msra.mxu0 %v569
    %738 = vmatprep.subr.bf16.mxu0 %v574
    %739 = vmatpush1.bf16.msra.mxu0 %v573
    %740 = vmatprep.subr.bf16.mxu0 %v578
    %741 = vmatpush1.bf16.msra.mxu0 %v577
    %742 = vmatprep.subr.bf16.mxu0 %v582
    %743 = vmatpush1.bf16.msra.mxu0 %v581
    %744 = vmatprep.subr.bf16.mxu0 %v586
    %745 = vmatpush1.bf16.msra.mxu0 %v585
    %746 = vmatprep.subr.bf16.mxu0 %v590
    %747 = vmatpush1.bf16.msra.mxu0 %v589
    %748 = vmatprep.subr.bf16.mxu0 %v594
    %749 = vmatpush1.bf16.msra.mxu0 %v593
    %750 = vmatprep.subr.bf16.mxu0 %v598
    %751 = vmatpush1.bf16.msra.mxu0 %v597
    %752 = vmatprep.subr.bf16.mxu0 %v602
    %753 = vmatpush1.bf16.msra.mxu0 %v601
    %754 = vmatprep.subr.bf16.mxu0 %v606
    %755 = vmatpush1.bf16.msra.mxu0 %v605
    %756 = vmatprep.subr.bf16.mxu0 %v610
    %757 = vmatpush1.bf16.msra.mxu0 %v609
    %758 = vmatprep.subr.bf16.mxu0 %v614
    %759 = vmatpush1.bf16.msra.mxu0 %v613
    %760 = vmatprep.subr.bf16.mxu0 %v618
    %761 = vmatpush1.bf16.msra.mxu0 %v617
    %762 = vmatprep.subr.bf16.mxu0 %v622
    %763 = vmatpush1.bf16.msra.mxu0 %v621
    %764 = vmatprep.subr.bf16.mxu0 %v626
    %765 = vmatpush1.bf16.msra.mxu0 %v625
    %766 = vmatprep.subr.bf16.mxu0 %v630
    %767 = vmatpush1.bf16.msra.mxu0 %v629
    %768 = vmatprep.mubr.bf16.mxu0 %v288
    %769 = vmatmul.mubr.bf16.gmra.mrb[0].mxu0 %v287
    %v770 = vpop.f32.mrb[0].mxu0
    %v771 = vadd.f32 %v366, %v770
    %v772 = vpop.f32.mrb[0].mxu0
    %v773 = vadd.f32 %v370, %v772
    %v774 = vpop.f32.mrb[0].mxu0
    %v775 = vpop.f32.mrb[0].mxu0
    %776 = vdwg.mxu0
    %v777 = vmax.f32 %v730, 0.0
    %v778 = vmax.f32 %v732, 0.0
    %v779 = vmax.f32 %v771, 0.0
    %v780 = vmax.f32 %v773, 0.0
    %v781 = vpack.c.bf16 %v777, %v777
    %v782 = vpack.c.bf16 %v778, %v778
    %v783 = vpack.c.bf16 %v779, %v779
    %v784 = vpack.c.bf16 %v780, %v780
    %v785 = vld [vmem:[#allocation10] sm:$0xff]
    %v786 = vld [vmem:[#allocation10 + $0x8] sm:$0xff]
    %v787 = vld [vmem:[#allocation10 + $0x10] sm:$0xff]
    %v788 = vld [vmem:[#allocation10 + $0x18] sm:$0xff]
    %v789 = vld [vmem:[#allocation10 + $0x20] sm:$0xff]
    %v790 = vld [vmem:[#allocation10 + $0x28] sm:$0xff]
    %v791 = vld [vmem:[#allocation10 + $0x30] sm:$0xff]
    %v792 = vld [vmem:[#allocation10 + $0x38] sm:$0xff]
    %v793 = vld [vmem:[#allocation10 + $0x40] sm:$0xff]
    %v794 = vld [vmem:[#allocation10 + $0x48] sm:$0xff]
    %v795 = vld [vmem:[#allocation10 + $0x50] sm:$0xff]
    %v796 = vld [vmem:[#allocation10 + $0x58] sm:$0xff]
    %v797 = vld [vmem:[#allocation10 + $0x60] sm:$0xff]
    %v798 = vld [vmem:[#allocation10 + $0x68] sm:$0xff]
    %v799 = vld [vmem:[#allocation10 + $0x70] sm:$0xff]
    %v800 = vld [vmem:[#allocation10 + $0x78] sm:$0xff]
    %v801 = vld [vmem:[#allocation10 + $0x80] sm:$0xff]
    %v802 = vld [vmem:[#allocation10 + $0x88] sm:$0xff]
    %v803 = vld [vmem:[#allocation10 + $0x90] sm:$0xff]
    %v804 = vld [vmem:[#allocation10 + $0x98] sm:$0xff]
    %v805 = vld [vmem:[#allocation10 + $0xa0] sm:$0xff]
    %v806 = vld [vmem:[#allocation10 + $0xa8] sm:$0xff]
    %v807 = vld [vmem:[#allocation10 + $0xb0] sm:$0xff]
    %v808 = vld [vmem:[#allocation10 + $0xb8] sm:$0xff]
    %v809 = vld [vmem:[#allocation10 + $0xc0] sm:$0xff]
    %v810 = vld [vmem:[#allocation10 + $0xc8] sm:$0xff]
    %v811 = vld [vmem:[#allocation10 + $0xd0] sm:$0xff]
    %v812 = vld [vmem:[#allocation10 + $0xd8] sm:$0xff]
    %v813 = vld [vmem:[#allocation10 + $0xe0] sm:$0xff]
    %v814 = vld [vmem:[#allocation10 + $0xe8] sm:$0xff]
    %v815 = vld [vmem:[#allocation10 + $0xf0] sm:$0xff]
    %v816 = vld [vmem:[#allocation10 + $0xf8] sm:$0xff]
    %v817 = vld [vmem:[#allocation10 + $0x100] sm:$0xff]
    %v818 = vld [vmem:[#allocation10 + $0x108] sm:$0xff]
    %v819 = vld [vmem:[#allocation10 + $0x110] sm:$0xff]
    %v820 = vld [vmem:[#allocation10 + $0x118] sm:$0xff]
    %v821 = vld [vmem:[#allocation10 + $0x120] sm:$0xff]
    %v822 = vld [vmem:[#allocation10 + $0x128] sm:$0xff]
    %v823 = vld [vmem:[#allocation10 + $0x130] sm:$0xff]
    %v824 = vld [vmem:[#allocation10 + $0x138] sm:$0xff]
    %v825 = vld [vmem:[#allocation10 + $0x140] sm:$0xff]
    %v826 = vld [vmem:[#allocation10 + $0x148] sm:$0xff]
    %v827 = vld [vmem:[#allocation10 + $0x150] sm:$0xff]
    %v828 = vld [vmem:[#allocation10 + $0x158] sm:$0xff]
    %v829 = vld [vmem:[#allocation10 + $0x160] sm:$0xff]
    %v830 = vld [vmem:[#allocation10 + $0x168] sm:$0xff]
    %v831 = vld [vmem:[#allocation10 + $0x170] sm:$0xff]
    %v832 = vld [vmem:[#allocation10 + $0x178] sm:$0xff]
    %v833 = vld [vmem:[#allocation10 + $0x180] sm:$0xff]
    %v834 = vld [vmem:[#allocation10 + $0x188] sm:$0xff]
    %v835 = vld [vmem:[#allocation10 + $0x190] sm:$0xff]
    %v836 = vld [vmem:[#allocation10 + $0x198] sm:$0xff]
    %v837 = vld [vmem:[#allocation10 + $0x1a0] sm:$0xff]
    %v838 = vld [vmem:[#allocation10 + $0x1a8] sm:$0xff]
    %v839 = vld [vmem:[#allocation10 + $0x1b0] sm:$0xff]
    %v840 = vld [vmem:[#allocation10 + $0x1b8] sm:$0xff]
    %v841 = vld [vmem:[#allocation10 + $0x1c0] sm:$0xff]
    %v842 = vld [vmem:[#allocation10 + $0x1c8] sm:$0xff]
    %v843 = vld [vmem:[#allocation10 + $0x1d0] sm:$0xff]
    %v844 = vld [vmem:[#allocation10 + $0x1d8] sm:$0xff]
    %v845 = vld [vmem:[#allocation10 + $0x1e0] sm:$0xff]
    %v846 = vld [vmem:[#allocation10 + $0x1e8] sm:$0xff]
    %v847 = vld [vmem:[#allocation10 + $0x1f0] sm:$0xff]
    %v848 = vld [vmem:[#allocation10 + $0x1f8] sm:$0xff]
    %v849 = vld [vmem:[#allocation10 + $0x200] sm:$0xff]
    %v850 = vld [vmem:[#allocation10 + $0x208] sm:$0xff]
    %v851 = vld [vmem:[#allocation10 + $0x210] sm:$0xff]
    %v852 = vld [vmem:[#allocation10 + $0x218] sm:$0xff]
    %v853 = vld [vmem:[#allocation10 + $0x220] sm:$0xff]
    %v854 = vld [vmem:[#allocation10 + $0x228] sm:$0xff]
    %v855 = vld [vmem:[#allocation10 + $0x230] sm:$0xff]
    %v856 = vld [vmem:[#allocation10 + $0x238] sm:$0xff]
    %v857 = vld [vmem:[#allocation10 + $0x240] sm:$0xff]
    %v858 = vld [vmem:[#allocation10 + $0x248] sm:$0xff]
    %v859 = vld [vmem:[#allocation10 + $0x250] sm:$0xff]
    %v860 = vld [vmem:[#allocation10 + $0x258] sm:$0xff]
    %v861 = vld [vmem:[#allocation10 + $0x260] sm:$0xff]
    %v862 = vld [vmem:[#allocation10 + $0x268] sm:$0xff]
    %v863 = vld [vmem:[#allocation10 + $0x270] sm:$0xff]
    %v864 = vld [vmem:[#allocation10 + $0x278] sm:$0xff]
    %v865 = vld [vmem:[#allocation10 + $0x280] sm:$0xff]
    %v866 = vld [vmem:[#allocation10 + $0x288] sm:$0xff]
    %v867 = vld [vmem:[#allocation10 + $0x290] sm:$0xff]
    %v868 = vld [vmem:[#allocation10 + $0x298] sm:$0xff]
    %v869 = vld [vmem:[#allocation10 + $0x2a0] sm:$0xff]
    %v870 = vld [vmem:[#allocation10 + $0x2a8] sm:$0xff]
    %v871 = vld [vmem:[#allocation10 + $0x2b0] sm:$0xff]
    %v872 = vld [vmem:[#allocation10 + $0x2b8] sm:$0xff]
    %v873 = vld [vmem:[#allocation10 + $0x2c0] sm:$0xff]
    %v874 = vld [vmem:[#allocation10 + $0x2c8] sm:$0xff]
    %v875 = vld [vmem:[#allocation10 + $0x2d0] sm:$0xff]
    %v876 = vld [vmem:[#allocation10 + $0x2d8] sm:$0xff]
    %v877 = vld [vmem:[#allocation10 + $0x2e0] sm:$0xff]
    %v878 = vld [vmem:[#allocation10 + $0x2e8] sm:$0xff]
    %v879 = vld [vmem:[#allocation10 + $0x2f0] sm:$0xff]
    %v880 = vld [vmem:[#allocation10 + $0x2f8] sm:$0xff]
    %v881 = vld [vmem:[#allocation10 + $0x300] sm:$0xff]
    %v882 = vld [vmem:[#allocation10 + $0x308] sm:$0xff]
    %v883 = vld [vmem:[#allocation10 + $0x310] sm:$0xff]
    %v884 = vld [vmem:[#allocation10 + $0x318] sm:$0xff]
    %v885 = vld [vmem:[#allocation10 + $0x320] sm:$0xff]
    %v886 = vld [vmem:[#allocation10 + $0x328] sm:$0xff]
    %v887 = vld [vmem:[#allocation10 + $0x330] sm:$0xff]
    %v888 = vld [vmem:[#allocation10 + $0x338] sm:$0xff]
    %v889 = vld [vmem:[#allocation10 + $0x340] sm:$0xff]
    %v890 = vld [vmem:[#allocation10 + $0x348] sm:$0xff]
    %v891 = vld [vmem:[#allocation10 + $0x350] sm:$0xff]
    %v892 = vld [vmem:[#allocation10 + $0x358] sm:$0xff]
    %v893 = vld [vmem:[#allocation10 + $0x360] sm:$0xff]
    %v894 = vld [vmem:[#allocation10 + $0x368] sm:$0xff]
    %v895 = vld [vmem:[#allocation10 + $0x370] sm:$0xff]
    %v896 = vld [vmem:[#allocation10 + $0x378] sm:$0xff]
    %v897 = vld [vmem:[#allocation10 + $0x380] sm:$0xff]
    %v898 = vld [vmem:[#allocation10 + $0x388] sm:$0xff]
    %v899 = vld [vmem:[#allocation10 + $0x390] sm:$0xff]
    %v900 = vld [vmem:[#allocation10 + $0x398] sm:$0xff]
    %v901 = vld [vmem:[#allocation10 + $0x3a0] sm:$0xff]
    %v902 = vld [vmem:[#allocation10 + $0x3a8] sm:$0xff]
    %v903 = vld [vmem:[#allocation10 + $0x3b0] sm:$0xff]
    %v904 = vld [vmem:[#allocation10 + $0x3b8] sm:$0xff]
    %v905 = vld [vmem:[#allocation10 + $0x3c0] sm:$0xff]
    %v906 = vld [vmem:[#allocation10 + $0x3c8] sm:$0xff]
    %v907 = vld [vmem:[#allocation10 + $0x3d0] sm:$0xff]
    %v908 = vld [vmem:[#allocation10 + $0x3d8] sm:$0xff]
    %v909 = vld [vmem:[#allocation10 + $0x3e0] sm:$0xff]
    %v910 = vld [vmem:[#allocation10 + $0x3e8] sm:$0xff]
    %v911 = vld [vmem:[#allocation10 + $0x3f0] sm:$0xff]
    %v912 = vld [vmem:[#allocation10 + $0x3f8] sm:$0xff]
    %v913 = vld [vmem:[#allocation10 + $0x400] sm:$0xff]
    %v914 = vld [vmem:[#allocation10 + $0x408] sm:$0xff]
    %v915 = vld [vmem:[#allocation10 + $0x410] sm:$0xff]
    %v916 = vld [vmem:[#allocation10 + $0x418] sm:$0xff]
    %v917 = vld [vmem:[#allocation10 + $0x420] sm:$0xff]
    %v918 = vld [vmem:[#allocation10 + $0x428] sm:$0xff]
    %v919 = vld [vmem:[#allocation10 + $0x430] sm:$0xff]
    %v920 = vld [vmem:[#allocation10 + $0x438] sm:$0xff]
    %v921 = vld [vmem:[#allocation10 + $0x440] sm:$0xff]
    %v922 = vld [vmem:[#allocation10 + $0x448] sm:$0xff]
    %v923 = vld [vmem:[#allocation10 + $0x450] sm:$0xff]
    %v924 = vld [vmem:[#allocation10 + $0x458] sm:$0xff]
    %v925 = vld [vmem:[#allocation10 + $0x460] sm:$0xff]
    %v926 = vld [vmem:[#allocation10 + $0x468] sm:$0xff]
    %v927 = vld [vmem:[#allocation10 + $0x470] sm:$0xff]
    %v928 = vld [vmem:[#allocation10 + $0x478] sm:$0xff]
    %v929 = vld [vmem:[#allocation10 + $0x480] sm:$0xff]
    %v930 = vld [vmem:[#allocation10 + $0x488] sm:$0xff]
    %v931 = vld [vmem:[#allocation10 + $0x490] sm:$0xff]
    %v932 = vld [vmem:[#allocation10 + $0x498] sm:$0xff]
    %v933 = vld [vmem:[#allocation10 + $0x4a0] sm:$0xff]
    %v934 = vld [vmem:[#allocation10 + $0x4a8] sm:$0xff]
    %v935 = vld [vmem:[#allocation10 + $0x4b0] sm:$0xff]
    %v936 = vld [vmem:[#allocation10 + $0x4b8] sm:$0xff]
    %v937 = vld [vmem:[#allocation10 + $0x4c0] sm:$0xff]
    %v938 = vld [vmem:[#allocation10 + $0x4c8] sm:$0xff]
    %v939 = vld [vmem:[#allocation10 + $0x4d0] sm:$0xff]
    %v940 = vld [vmem:[#allocation10 + $0x4d8] sm:$0xff]
    %v941 = vld [vmem:[#allocation10 + $0x4e0] sm:$0xff]
    %v942 = vld [vmem:[#allocation10 + $0x4e8] sm:$0xff]
    %v943 = vld [vmem:[#allocation10 + $0x4f0] sm:$0xff]
    %v944 = vld [vmem:[#allocation10 + $0x4f8] sm:$0xff]
    %v945 = vld [vmem:[#allocation10 + $0x500] sm:$0xff]
    %v946 = vld [vmem:[#allocation10 + $0x508] sm:$0xff]
    %v947 = vld [vmem:[#allocation10 + $0x510] sm:$0xff]
    %v948 = vld [vmem:[#allocation10 + $0x518] sm:$0xff]
    %v949 = vld [vmem:[#allocation10 + $0x520] sm:$0xff]
    %v950 = vld [vmem:[#allocation10 + $0x528] sm:$0xff]
    %v951 = vld [vmem:[#allocation10 + $0x530] sm:$0xff]
    %v952 = vld [vmem:[#allocation10 + $0x538] sm:$0xff]
    %v953 = vld [vmem:[#allocation10 + $0x540] sm:$0xff]
    %v954 = vld [vmem:[#allocation10 + $0x548] sm:$0xff]
    %v955 = vld [vmem:[#allocation10 + $0x550] sm:$0xff]
    %v956 = vld [vmem:[#allocation10 + $0x558] sm:$0xff]
    %v957 = vld [vmem:[#allocation10 + $0x560] sm:$0xff]
    %v958 = vld [vmem:[#allocation10 + $0x568] sm:$0xff]
    %v959 = vld [vmem:[#allocation10 + $0x570] sm:$0xff]
    %v960 = vld [vmem:[#allocation10 + $0x578] sm:$0xff]
    %v961 = vld [vmem:[#allocation10 + $0x580] sm:$0xff]
    %v962 = vld [vmem:[#allocation10 + $0x588] sm:$0xff]
    %v963 = vld [vmem:[#allocation10 + $0x590] sm:$0xff]
    %v964 = vld [vmem:[#allocation10 + $0x598] sm:$0xff]
    %v965 = vld [vmem:[#allocation10 + $0x5a0] sm:$0xff]
    %v966 = vld [vmem:[#allocation10 + $0x5a8] sm:$0xff]
    %v967 = vld [vmem:[#allocation10 + $0x5b0] sm:$0xff]
    %v968 = vld [vmem:[#allocation10 + $0x5b8] sm:$0xff]
    %v969 = vld [vmem:[#allocation10 + $0x5c0] sm:$0xff]
    %v970 = vld [vmem:[#allocation10 + $0x5c8] sm:$0xff]
    %v971 = vld [vmem:[#allocation10 + $0x5d0] sm:$0xff]
    %v972 = vld [vmem:[#allocation10 + $0x5d8] sm:$0xff]
    %v973 = vld [vmem:[#allocation10 + $0x5e0] sm:$0xff]
    %v974 = vld [vmem:[#allocation10 + $0x5e8] sm:$0xff]
    %v975 = vld [vmem:[#allocation10 + $0x5f0] sm:$0xff]
    %v976 = vld [vmem:[#allocation10 + $0x5f8] sm:$0xff]
    %v977 = vld [vmem:[#allocation10 + $0x600] sm:$0xff]
    %v978 = vld [vmem:[#allocation10 + $0x608] sm:$0xff]
    %v979 = vld [vmem:[#allocation10 + $0x610] sm:$0xff]
    %v980 = vld [vmem:[#allocation10 + $0x618] sm:$0xff]
    %v981 = vld [vmem:[#allocation10 + $0x620] sm:$0xff]
    %v982 = vld [vmem:[#allocation10 + $0x628] sm:$0xff]
    %v983 = vld [vmem:[#allocation10 + $0x630] sm:$0xff]
    %v984 = vld [vmem:[#allocation10 + $0x638] sm:$0xff]
    %v985 = vld [vmem:[#allocation10 + $0x640] sm:$0xff]
    %v986 = vld [vmem:[#allocation10 + $0x648] sm:$0xff]
    %v987 = vld [vmem:[#allocation10 + $0x650] sm:$0xff]
    %v988 = vld [vmem:[#allocation10 + $0x658] sm:$0xff]
    %v989 = vld [vmem:[#allocation10 + $0x660] sm:$0xff]
    %v990 = vld [vmem:[#allocation10 + $0x668] sm:$0xff]
    %v991 = vld [vmem:[#allocation10 + $0x670] sm:$0xff]
    %v992 = vld [vmem:[#allocation10 + $0x678] sm:$0xff]
    %v993 = vld [vmem:[#allocation10 + $0x680] sm:$0xff]
    %v994 = vld [vmem:[#allocation10 + $0x688] sm:$0xff]
    %v995 = vld [vmem:[#allocation10 + $0x690] sm:$0xff]
    %v996 = vld [vmem:[#allocation10 + $0x698] sm:$0xff]
    %v997 = vld [vmem:[#allocation10 + $0x6a0] sm:$0xff]
    %v998 = vld [vmem:[#allocation10 + $0x6a8] sm:$0xff]
    %v999 = vld [vmem:[#allocation10 + $0x6b0] sm:$0xff]
    %v1000 = vld [vmem:[#allocation10 + $0x6b8] sm:$0xff]
    %v1001 = vld [vmem:[#allocation10 + $0x6c0] sm:$0xff]
    %v1002 = vld [vmem:[#allocation10 + $0x6c8] sm:$0xff]
    %v1003 = vld [vmem:[#allocation10 + $0x6d0] sm:$0xff]
    %v1004 = vld [vmem:[#allocation10 + $0x6d8] sm:$0xff]
    %v1005 = vld [vmem:[#allocation10 + $0x6e0] sm:$0xff]
    %v1006 = vld [vmem:[#allocation10 + $0x6e8] sm:$0xff]
    %v1007 = vld [vmem:[#allocation10 + $0x6f0] sm:$0xff]
    %v1008 = vld [vmem:[#allocation10 + $0x6f8] sm:$0xff]
    %v1009 = vld [vmem:[#allocation10 + $0x700] sm:$0xff]
    %v1010 = vld [vmem:[#allocation10 + $0x708] sm:$0xff]
    %v1011 = vld [vmem:[#allocation10 + $0x710] sm:$0xff]
    %v1012 = vld [vmem:[#allocation10 + $0x718] sm:$0xff]
    %v1013 = vld [vmem:[#allocation10 + $0x720] sm:$0xff]
    %v1014 = vld [vmem:[#allocation10 + $0x728] sm:$0xff]
    %v1015 = vld [vmem:[#allocation10 + $0x730] sm:$0xff]
    %v1016 = vld [vmem:[#allocation10 + $0x738] sm:$0xff]
    %v1017 = vld [vmem:[#allocation10 + $0x740] sm:$0xff]
    %v1018 = vld [vmem:[#allocation10 + $0x748] sm:$0xff]
    %v1019 = vld [vmem:[#allocation10 + $0x750] sm:$0xff]
    %v1020 = vld [vmem:[#allocation10 + $0x758] sm:$0xff]
    %v1021 = vld [vmem:[#allocation10 + $0x760] sm:$0xff]
    %v1022 = vld [vmem:[#allocation10 + $0x768] sm:$0xff]
    %v1023 = vld [vmem:[#allocation10 + $0x770] sm:$0xff]
    %v1024 = vld [vmem:[#allocation10 + $0x778] sm:$0xff]
    %v1025 = vld [vmem:[#allocation10 + $0x780] sm:$0xff]
    %v1026 = vld [vmem:[#allocation10 + $0x788] sm:$0xff]
    %v1027 = vld [vmem:[#allocation10 + $0x790] sm:$0xff]
    %v1028 = vld [vmem:[#allocation10 + $0x798] sm:$0xff]
    %v1029 = vld [vmem:[#allocation10 + $0x7a0] sm:$0xff]
    %v1030 = vld [vmem:[#allocation10 + $0x7a8] sm:$0xff]
    %v1031 = vld [vmem:[#allocation10 + $0x7b0] sm:$0xff]
    %v1032 = vld [vmem:[#allocation10 + $0x7b8] sm:$0xff]
    %v1033 = vld [vmem:[#allocation10 + $0x7c0] sm:$0xff]
    %v1034 = vld [vmem:[#allocation10 + $0x7c8] sm:$0xff]
    %v1035 = vld [vmem:[#allocation10 + $0x7d0] sm:$0xff]
    %v1036 = vld [vmem:[#allocation10 + $0x7d8] sm:$0xff]
    %v1037 = vld [vmem:[#allocation10 + $0x7e0] sm:$0xff]
    %v1038 = vld [vmem:[#allocation10 + $0x7e8] sm:$0xff]
    %v1039 = vld [vmem:[#allocation10 + $0x7f0] sm:$0xff]
    %v1040 = vld [vmem:[#allocation10 + $0x7f8] sm:$0xff]
    %v1041 = vld [vmem:[#allocation11] sm:$0xff]
    %v1043 = vlaneseq
    %v1044 = vshrl.u32 %v1043, 7
    %v1045 = vsub.s32 0, %v1044
    %v1046 = vrot.slane %v1041, %v1045
    %v1047 = vlaneseq
    %v1048 = vshrl.u32 %v1047, 7
    %v1049 = vsub.s32 1, %v1048
    %v1050 = vrot.slane %v1041, %v1049
    %v1051 = vlaneseq
    %v1052 = vshrl.u32 %v1051, 7
    %v1053 = vsub.s32 2, %v1052
    %v1054 = vrot.slane %v1041, %v1053
    %v1055 = vlaneseq
    %v1056 = vshrl.u32 %v1055, 7
    %v1057 = vsub.s32 3, %v1056
    %v1058 = vrot.slane %v1041, %v1057
    %v1059 = vlaneseq
    %v1060 = vshrl.u32 %v1059, 7
    %v1061 = vsub.s32 4, %v1060
    %v1062 = vrot.slane %v1041, %v1061
    %v1063 = vlaneseq
    %v1064 = vshrl.u32 %v1063, 7
    %v1065 = vsub.s32 5, %v1064
    %v1066 = vrot.slane %v1041, %v1065
    %v1067 = vlaneseq
    %v1068 = vshrl.u32 %v1067, 7
    %v1069 = vsub.s32 6, %v1068
    %v1070 = vrot.slane %v1041, %v1069
    %v1071 = vlaneseq
    %v1072 = vshrl.u32 %v1071, 7
    %v1073 = vsub.s32 7, %v1072
    %v1074 = vrot.slane %v1041, %v1073
    %v1339 = vunpack.c.l.b16 %v785
    %v1340 = vunpack.c.h.b16 %v785
    %v1341 = vunpack.c.l.b16 %v786
    %v1342 = vunpack.c.h.b16 %v786
    %v1343 = vunpack.c.l.b16 %v787
    %v1344 = vunpack.c.h.b16 %v787
    %v1345 = vunpack.c.l.b16 %v788
    %v1346 = vunpack.c.h.b16 %v788
    %v1347 = vunpack.c.l.b16 %v789
    %v1348 = vunpack.c.h.b16 %v789
    %v1349 = vunpack.c.l.b16 %v790
    %v1350 = vunpack.c.h.b16 %v790
    %v1351 = vunpack.c.l.b16 %v791
    %v1352 = vunpack.c.h.b16 %v791
    %v1353 = vunpack.c.l.b16 %v792
    %v1354 = vunpack.c.h.b16 %v792
    %v1355 = vunpack.c.l.b16 %v793
    %v1356 = vunpack.c.h.b16 %v793
    %v1357 = vunpack.c.l.b16 %v794
    %v1358 = vunpack.c.h.b16 %v794
    %v1359 = vunpack.c.l.b16 %v795
    %v1360 = vunpack.c.h.b16 %v795
    %v1361 = vunpack.c.l.b16 %v796
    %v1362 = vunpack.c.h.b16 %v796
    %v1363 = vunpack.c.l.b16 %v797
    %v1364 = vunpack.c.h.b16 %v797
    %v1365 = vunpack.c.l.b16 %v798
    %v1366 = vunpack.c.h.b16 %v798
    %v1367 = vunpack.c.l.b16 %v799
    %v1368 = vunpack.c.h.b16 %v799
    %v1369 = vunpack.c.l.b16 %v800
    %v1370 = vunpack.c.h.b16 %v800
    %v1371 = vunpack.c.l.b16 %v801
    %v1372 = vunpack.c.h.b16 %v801
    %v1373 = vunpack.c.l.b16 %v802
    %v1374 = vunpack.c.h.b16 %v802
    %v1375 = vunpack.c.l.b16 %v803
    %v1376 = vunpack.c.h.b16 %v803
    %v1377 = vunpack.c.l.b16 %v804
    %v1378 = vunpack.c.h.b16 %v804
    %v1379 = vunpack.c.l.b16 %v805
    %v1380 = vunpack.c.h.b16 %v805
    %v1381 = vunpack.c.l.b16 %v806
    %v1382 = vunpack.c.h.b16 %v806
    %v1383 = vunpack.c.l.b16 %v807
    %v1384 = vunpack.c.h.b16 %v807
    %v1385 = vunpack.c.l.b16 %v808
    %v1386 = vunpack.c.h.b16 %v808
    %v1387 = vunpack.c.l.b16 %v809
    %v1388 = vunpack.c.h.b16 %v809
    %v1389 = vunpack.c.l.b16 %v810
    %v1390 = vunpack.c.h.b16 %v810
    %v1391 = vunpack.c.l.b16 %v811
    %v1392 = vunpack.c.h.b16 %v811
    %v1393 = vunpack.c.l.b16 %v812
    %v1394 = vunpack.c.h.b16 %v812
    %v1395 = vunpack.c.l.b16 %v813
    %v1396 = vunpack.c.h.b16 %v813
    %v1397 = vunpack.c.l.b16 %v814
    %v1398 = vunpack.c.h.b16 %v814
    %v1399 = vunpack.c.l.b16 %v815
    %v1400 = vunpack.c.h.b16 %v815
    %v1401 = vunpack.c.l.b16 %v816
    %v1402 = vunpack.c.h.b16 %v816
    %v1403 = vunpack.c.l.b16 %v817
    %v1404 = vunpack.c.h.b16 %v817
    %v1405 = vunpack.c.l.b16 %v818
    %v1406 = vunpack.c.h.b16 %v818
    %v1407 = vunpack.c.l.b16 %v819
    %v1408 = vunpack.c.h.b16 %v819
    %v1409 = vunpack.c.l.b16 %v820
    %v1410 = vunpack.c.h.b16 %v820
    %v1411 = vunpack.c.l.b16 %v821
    %v1412 = vunpack.c.h.b16 %v821
    %v1413 = vunpack.c.l.b16 %v822
    %v1414 = vunpack.c.h.b16 %v822
    %v1415 = vunpack.c.l.b16 %v823
    %v1416 = vunpack.c.h.b16 %v823
    %v1417 = vunpack.c.l.b16 %v824
    %v1418 = vunpack.c.h.b16 %v824
    %v1419 = vunpack.c.l.b16 %v825
    %v1420 = vunpack.c.h.b16 %v825
    %v1421 = vunpack.c.l.b16 %v826
    %v1422 = vunpack.c.h.b16 %v826
    %v1423 = vunpack.c.l.b16 %v827
    %v1424 = vunpack.c.h.b16 %v827
    %v1425 = vunpack.c.l.b16 %v828
    %v1426 = vunpack.c.h.b16 %v828
    %v1427 = vunpack.c.l.b16 %v829
    %v1428 = vunpack.c.h.b16 %v829
    %v1429 = vunpack.c.l.b16 %v830
    %v1430 = vunpack.c.h.b16 %v830
    %v1431 = vunpack.c.l.b16 %v831
    %v1432 = vunpack.c.h.b16 %v831
    %v1433 = vunpack.c.l.b16 %v832
    %v1434 = vunpack.c.h.b16 %v832
    %v1435 = vunpack.c.l.b16 %v833
    %v1436 = vunpack.c.h.b16 %v833
    %v1437 = vunpack.c.l.b16 %v834
    %v1438 = vunpack.c.h.b16 %v834
    %v1439 = vunpack.c.l.b16 %v835
    %v1440 = vunpack.c.h.b16 %v835
    %v1441 = vunpack.c.l.b16 %v836
    %v1442 = vunpack.c.h.b16 %v836
    %v1443 = vunpack.c.l.b16 %v837
    %v1444 = vunpack.c.h.b16 %v837
    %v1445 = vunpack.c.l.b16 %v838
    %v1446 = vunpack.c.h.b16 %v838
    %v1447 = vunpack.c.l.b16 %v839
    %v1448 = vunpack.c.h.b16 %v839
    %v1449 = vunpack.c.l.b16 %v840
    %v1450 = vunpack.c.h.b16 %v840
    %v1451 = vunpack.c.l.b16 %v841
    %v1452 = vunpack.c.h.b16 %v841
    %v1453 = vunpack.c.l.b16 %v842
    %v1454 = vunpack.c.h.b16 %v842
    %v1455 = vunpack.c.l.b16 %v843
    %v1456 = vunpack.c.h.b16 %v843
    %v1457 = vunpack.c.l.b16 %v844
    %v1458 = vunpack.c.h.b16 %v844
    %v1459 = vunpack.c.l.b16 %v845
    %v1460 = vunpack.c.h.b16 %v845
    %v1461 = vunpack.c.l.b16 %v846
    %v1462 = vunpack.c.h.b16 %v846
    %v1463 = vunpack.c.l.b16 %v847
    %v1464 = vunpack.c.h.b16 %v847
    %v1465 = vunpack.c.l.b16 %v848
    %v1466 = vunpack.c.h.b16 %v848
    %v1467 = vunpack.c.l.b16 %v849
    %v1468 = vunpack.c.h.b16 %v849
    %v1469 = vunpack.c.l.b16 %v850
    %v1470 = vunpack.c.h.b16 %v850
    %v1471 = vunpack.c.l.b16 %v851
    %v1472 = vunpack.c.h.b16 %v851
    %v1473 = vunpack.c.l.b16 %v852
    %v1474 = vunpack.c.h.b16 %v852
    %v1475 = vunpack.c.l.b16 %v853
    %v1476 = vunpack.c.h.b16 %v853
    %v1477 = vunpack.c.l.b16 %v854
    %v1478 = vunpack.c.h.b16 %v854
    %v1479 = vunpack.c.l.b16 %v855
    %v1480 = vunpack.c.h.b16 %v855
    %v1481 = vunpack.c.l.b16 %v856
    %v1482 = vunpack.c.h.b16 %v856
    %v1483 = vunpack.c.l.b16 %v857
    %v1484 = vunpack.c.h.b16 %v857
    %v1485 = vunpack.c.l.b16 %v858
    %v1486 = vunpack.c.h.b16 %v858
    %v1487 = vunpack.c.l.b16 %v859
    %v1488 = vunpack.c.h.b16 %v859
    %v1489 = vunpack.c.l.b16 %v860
    %v1490 = vunpack.c.h.b16 %v860
    %v1491 = vunpack.c.l.b16 %v861
    %v1492 = vunpack.c.h.b16 %v861
    %v1493 = vunpack.c.l.b16 %v862
    %v1494 = vunpack.c.h.b16 %v862
    %v1495 = vunpack.c.l.b16 %v863
    %v1496 = vunpack.c.h.b16 %v863
    %v1497 = vunpack.c.l.b16 %v864
    %v1498 = vunpack.c.h.b16 %v864
    %v1499 = vunpack.c.l.b16 %v865
    %v1500 = vunpack.c.h.b16 %v865
    %v1501 = vunpack.c.l.b16 %v866
    %v1502 = vunpack.c.h.b16 %v866
    %v1503 = vunpack.c.l.b16 %v867
    %v1504 = vunpack.c.h.b16 %v867
    %v1505 = vunpack.c.l.b16 %v868
    %v1506 = vunpack.c.h.b16 %v868
    %v1507 = vunpack.c.l.b16 %v869
    %v1508 = vunpack.c.h.b16 %v869
    %v1509 = vunpack.c.l.b16 %v870
    %v1510 = vunpack.c.h.b16 %v870
    %v1511 = vunpack.c.l.b16 %v871
    %v1512 = vunpack.c.h.b16 %v871
    %v1513 = vunpack.c.l.b16 %v872
    %v1514 = vunpack.c.h.b16 %v872
    %v1515 = vunpack.c.l.b16 %v873
    %v1516 = vunpack.c.h.b16 %v873
    %v1517 = vunpack.c.l.b16 %v874
    %v1518 = vunpack.c.h.b16 %v874
    %v1519 = vunpack.c.l.b16 %v875
    %v1520 = vunpack.c.h.b16 %v875
    %v1521 = vunpack.c.l.b16 %v876
    %v1522 = vunpack.c.h.b16 %v876
    %v1523 = vunpack.c.l.b16 %v877
    %v1524 = vunpack.c.h.b16 %v877
    %v1525 = vunpack.c.l.b16 %v878
    %v1526 = vunpack.c.h.b16 %v878
    %v1527 = vunpack.c.l.b16 %v879
    %v1528 = vunpack.c.h.b16 %v879
    %v1529 = vunpack.c.l.b16 %v880
    %v1530 = vunpack.c.h.b16 %v880
    %v1531 = vunpack.c.l.b16 %v881
    %v1532 = vunpack.c.h.b16 %v881
    %v1533 = vunpack.c.l.b16 %v882
    %v1534 = vunpack.c.h.b16 %v882
    %v1535 = vunpack.c.l.b16 %v883
    %v1536 = vunpack.c.h.b16 %v883
    %v1537 = vunpack.c.l.b16 %v884
    %v1538 = vunpack.c.h.b16 %v884
    %v1539 = vunpack.c.l.b16 %v885
    %v1540 = vunpack.c.h.b16 %v885
    %v1541 = vunpack.c.l.b16 %v886
    %v1542 = vunpack.c.h.b16 %v886
    %v1543 = vunpack.c.l.b16 %v887
    %v1544 = vunpack.c.h.b16 %v887
    %v1545 = vunpack.c.l.b16 %v888
    %v1546 = vunpack.c.h.b16 %v888
    %v1547 = vunpack.c.l.b16 %v889
    %v1548 = vunpack.c.h.b16 %v889
    %v1549 = vunpack.c.l.b16 %v890
    %v1550 = vunpack.c.h.b16 %v890
    %v1551 = vunpack.c.l.b16 %v891
    %v1552 = vunpack.c.h.b16 %v891
    %v1553 = vunpack.c.l.b16 %v892
    %v1554 = vunpack.c.h.b16 %v892
    %v1555 = vunpack.c.l.b16 %v893
    %v1556 = vunpack.c.h.b16 %v893
    %v1557 = vunpack.c.l.b16 %v894
    %v1558 = vunpack.c.h.b16 %v894
    %v1559 = vunpack.c.l.b16 %v895
    %v1560 = vunpack.c.h.b16 %v895
    %v1561 = vunpack.c.l.b16 %v896
    %v1562 = vunpack.c.h.b16 %v896
    %v1563 = vunpack.c.l.b16 %v897
    %v1564 = vunpack.c.h.b16 %v897
    %v1565 = vunpack.c.l.b16 %v898
    %v1566 = vunpack.c.h.b16 %v898
    %v1567 = vunpack.c.l.b16 %v899
    %v1568 = vunpack.c.h.b16 %v899
    %v1569 = vunpack.c.l.b16 %v900
    %v1570 = vunpack.c.h.b16 %v900
    %v1571 = vunpack.c.l.b16 %v901
    %v1572 = vunpack.c.h.b16 %v901
    %v1573 = vunpack.c.l.b16 %v902
    %v1574 = vunpack.c.h.b16 %v902
    %v1575 = vunpack.c.l.b16 %v903
    %v1576 = vunpack.c.h.b16 %v903
    %v1577 = vunpack.c.l.b16 %v904
    %v1578 = vunpack.c.h.b16 %v904
    %v1579 = vunpack.c.l.b16 %v905
    %v1580 = vunpack.c.h.b16 %v905
    %v1581 = vunpack.c.l.b16 %v906
    %v1582 = vunpack.c.h.b16 %v906
    %v1583 = vunpack.c.l.b16 %v907
    %v1584 = vunpack.c.h.b16 %v907
    %v1585 = vunpack.c.l.b16 %v908
    %v1586 = vunpack.c.h.b16 %v908
    %v1587 = vunpack.c.l.b16 %v909
    %v1588 = vunpack.c.h.b16 %v909
    %v1589 = vunpack.c.l.b16 %v910
    %v1590 = vunpack.c.h.b16 %v910
    %v1591 = vunpack.c.l.b16 %v911
    %v1592 = vunpack.c.h.b16 %v911
    %v1593 = vunpack.c.l.b16 %v912
    %v1594 = vunpack.c.h.b16 %v912
    %v1595 = vunpack.c.l.b16 %v913
    %v1596 = vunpack.c.h.b16 %v913
    %v1597 = vunpack.c.l.b16 %v914
    %v1598 = vunpack.c.h.b16 %v914
    %v1599 = vunpack.c.l.b16 %v915
    %v1600 = vunpack.c.h.b16 %v915
    %v1601 = vunpack.c.l.b16 %v916
    %v1602 = vunpack.c.h.b16 %v916
    %v1603 = vunpack.c.l.b16 %v917
    %v1604 = vunpack.c.h.b16 %v917
    %v1605 = vunpack.c.l.b16 %v918
    %v1606 = vunpack.c.h.b16 %v918
    %v1607 = vunpack.c.l.b16 %v919
    %v1608 = vunpack.c.h.b16 %v919
    %v1609 = vunpack.c.l.b16 %v920
    %v1610 = vunpack.c.h.b16 %v920
    %v1611 = vunpack.c.l.b16 %v921
    %v1612 = vunpack.c.h.b16 %v921
    %v1613 = vunpack.c.l.b16 %v922
    %v1614 = vunpack.c.h.b16 %v922
    %v1615 = vunpack.c.l.b16 %v923
    %v1616 = vunpack.c.h.b16 %v923
    %v1617 = vunpack.c.l.b16 %v924
    %v1618 = vunpack.c.h.b16 %v924
    %v1619 = vunpack.c.l.b16 %v925
    %v1620 = vunpack.c.h.b16 %v925
    %v1621 = vunpack.c.l.b16 %v926
    %v1622 = vunpack.c.h.b16 %v926
    %v1623 = vunpack.c.l.b16 %v927
    %v1624 = vunpack.c.h.b16 %v927
    %v1625 = vunpack.c.l.b16 %v928
    %v1626 = vunpack.c.h.b16 %v928
    %v1627 = vunpack.c.l.b16 %v929
    %v1628 = vunpack.c.h.b16 %v929
    %v1629 = vunpack.c.l.b16 %v930
    %v1630 = vunpack.c.h.b16 %v930
    %v1631 = vunpack.c.l.b16 %v931
    %v1632 = vunpack.c.h.b16 %v931
    %v1633 = vunpack.c.l.b16 %v932
    %v1634 = vunpack.c.h.b16 %v932
    %v1635 = vunpack.c.l.b16 %v933
    %v1636 = vunpack.c.h.b16 %v933
    %v1637 = vunpack.c.l.b16 %v934
    %v1638 = vunpack.c.h.b16 %v934
    %v1639 = vunpack.c.l.b16 %v935
    %v1640 = vunpack.c.h.b16 %v935
    %v1641 = vunpack.c.l.b16 %v936
    %v1642 = vunpack.c.h.b16 %v936
    %v1643 = vunpack.c.l.b16 %v937
    %v1644 = vunpack.c.h.b16 %v937
    %v1645 = vunpack.c.l.b16 %v938
    %v1646 = vunpack.c.h.b16 %v938
    %v1647 = vunpack.c.l.b16 %v939
    %v1648 = vunpack.c.h.b16 %v939
    %v1649 = vunpack.c.l.b16 %v940
    %v1650 = vunpack.c.h.b16 %v940
    %v1651 = vunpack.c.l.b16 %v941
    %v1652 = vunpack.c.h.b16 %v941
    %v1653 = vunpack.c.l.b16 %v942
    %v1654 = vunpack.c.h.b16 %v942
    %v1655 = vunpack.c.l.b16 %v943
    %v1656 = vunpack.c.h.b16 %v943
    %v1657 = vunpack.c.l.b16 %v944
    %v1658 = vunpack.c.h.b16 %v944
    %v1659 = vunpack.c.l.b16 %v945
    %v1660 = vunpack.c.h.b16 %v945
    %v1661 = vunpack.c.l.b16 %v946
    %v1662 = vunpack.c.h.b16 %v946
    %v1663 = vunpack.c.l.b16 %v947
    %v1664 = vunpack.c.h.b16 %v947
    %v1665 = vunpack.c.l.b16 %v948
    %v1666 = vunpack.c.h.b16 %v948
    %v1667 = vunpack.c.l.b16 %v949
    %v1668 = vunpack.c.h.b16 %v949
    %v1669 = vunpack.c.l.b16 %v950
    %v1670 = vunpack.c.h.b16 %v950
    %v1671 = vunpack.c.l.b16 %v951
    %v1672 = vunpack.c.h.b16 %v951
    %v1673 = vunpack.c.l.b16 %v952
    %v1674 = vunpack.c.h.b16 %v952
    %v1675 = vunpack.c.l.b16 %v953
    %v1676 = vunpack.c.h.b16 %v953
    %v1677 = vunpack.c.l.b16 %v954
    %v1678 = vunpack.c.h.b16 %v954
    %v1679 = vunpack.c.l.b16 %v955
    %v1680 = vunpack.c.h.b16 %v955
    %v1681 = vunpack.c.l.b16 %v956
    %v1682 = vunpack.c.h.b16 %v956
    %v1683 = vunpack.c.l.b16 %v957
    %v1684 = vunpack.c.h.b16 %v957
    %v1685 = vunpack.c.l.b16 %v958
    %v1686 = vunpack.c.h.b16 %v958
    %v1687 = vunpack.c.l.b16 %v959
    %v1688 = vunpack.c.h.b16 %v959
    %v1689 = vunpack.c.l.b16 %v960
    %v1690 = vunpack.c.h.b16 %v960
    %v1691 = vunpack.c.l.b16 %v961
    %v1692 = vunpack.c.h.b16 %v961
    %v1693 = vunpack.c.l.b16 %v962
    %v1694 = vunpack.c.h.b16 %v962
    %v1695 = vunpack.c.l.b16 %v963
    %v1696 = vunpack.c.h.b16 %v963
    %v1697 = vunpack.c.l.b16 %v964
    %v1698 = vunpack.c.h.b16 %v964
    %v1699 = vunpack.c.l.b16 %v965
    %v1700 = vunpack.c.h.b16 %v965
    %v1701 = vunpack.c.l.b16 %v966
    %v1702 = vunpack.c.h.b16 %v966
    %v1703 = vunpack.c.l.b16 %v967
    %v1704 = vunpack.c.h.b16 %v967
    %v1705 = vunpack.c.l.b16 %v968
    %v1706 = vunpack.c.h.b16 %v968
    %v1707 = vunpack.c.l.b16 %v969
    %v1708 = vunpack.c.h.b16 %v969
    %v1709 = vunpack.c.l.b16 %v970
    %v1710 = vunpack.c.h.b16 %v970
    %v1711 = vunpack.c.l.b16 %v971
    %v1712 = vunpack.c.h.b16 %v971
    %v1713 = vunpack.c.l.b16 %v972
    %v1714 = vunpack.c.h.b16 %v972
    %v1715 = vunpack.c.l.b16 %v973
    %v1716 = vunpack.c.h.b16 %v973
    %v1717 = vunpack.c.l.b16 %v974
    %v1718 = vunpack.c.h.b16 %v974
    %v1719 = vunpack.c.l.b16 %v975
    %v1720 = vunpack.c.h.b16 %v975
    %v1721 = vunpack.c.l.b16 %v976
    %v1722 = vunpack.c.h.b16 %v976
    %v1723 = vunpack.c.l.b16 %v977
    %v1724 = vunpack.c.h.b16 %v977
    %v1725 = vunpack.c.l.b16 %v978
    %v1726 = vunpack.c.h.b16 %v978
    %v1727 = vunpack.c.l.b16 %v979
    %v1728 = vunpack.c.h.b16 %v979
    %v1729 = vunpack.c.l.b16 %v980
    %v1730 = vunpack.c.h.b16 %v980
    %v1731 = vunpack.c.l.b16 %v981
    %v1732 = vunpack.c.h.b16 %v981
    %v1733 = vunpack.c.l.b16 %v982
    %v1734 = vunpack.c.h.b16 %v982
    %v1735 = vunpack.c.l.b16 %v983
    %v1736 = vunpack.c.h.b16 %v983
    %v1737 = vunpack.c.l.b16 %v984
    %v1738 = vunpack.c.h.b16 %v984
    %v1739 = vunpack.c.l.b16 %v985
    %v1740 = vunpack.c.h.b16 %v985
    %v1741 = vunpack.c.l.b16 %v986
    %v1742 = vunpack.c.h.b16 %v986
    %v1743 = vunpack.c.l.b16 %v987
    %v1744 = vunpack.c.h.b16 %v987
    %v1745 = vunpack.c.l.b16 %v988
    %v1746 = vunpack.c.h.b16 %v988
    %v1747 = vunpack.c.l.b16 %v989
    %v1748 = vunpack.c.h.b16 %v989
    %v1749 = vunpack.c.l.b16 %v990
    %v1750 = vunpack.c.h.b16 %v990
    %v1751 = vunpack.c.l.b16 %v991
    %v1752 = vunpack.c.h.b16 %v991
    %v1753 = vunpack.c.l.b16 %v992
    %v1754 = vunpack.c.h.b16 %v992
    %v1755 = vunpack.c.l.b16 %v993
    %v1756 = vunpack.c.h.b16 %v993
    %v1757 = vunpack.c.l.b16 %v994
    %v1758 = vunpack.c.h.b16 %v994
    %v1759 = vunpack.c.l.b16 %v995
    %v1760 = vunpack.c.h.b16 %v995
    %v1761 = vunpack.c.l.b16 %v996
    %v1762 = vunpack.c.h.b16 %v996
    %v1763 = vunpack.c.l.b16 %v997
    %v1764 = vunpack.c.h.b16 %v997
    %v1765 = vunpack.c.l.b16 %v998
    %v1766 = vunpack.c.h.b16 %v998
    %v1767 = vunpack.c.l.b16 %v999
    %v1768 = vunpack.c.h.b16 %v999
    %v1769 = vunpack.c.l.b16 %v1000
    %v1770 = vunpack.c.h.b16 %v1000
    %v1771 = vunpack.c.l.b16 %v1001
    %v1772 = vunpack.c.h.b16 %v1001
    %v1773 = vunpack.c.l.b16 %v1002
    %v1774 = vunpack.c.h.b16 %v1002
    %v1775 = vunpack.c.l.b16 %v1003
    %v1776 = vunpack.c.h.b16 %v1003
    %v1777 = vunpack.c.l.b16 %v1004
    %v1778 = vunpack.c.h.b16 %v1004
    %v1779 = vunpack.c.l.b16 %v1005
    %v1780 = vunpack.c.h.b16 %v1005
    %v1781 = vunpack.c.l.b16 %v1006
    %v1782 = vunpack.c.h.b16 %v1006
    %v1783 = vunpack.c.l.b16 %v1007
    %v1784 = vunpack.c.h.b16 %v1007
    %v1785 = vunpack.c.l.b16 %v1008
    %v1786 = vunpack.c.h.b16 %v1008
    %v1787 = vunpack.c.l.b16 %v1009
    %v1788 = vunpack.c.h.b16 %v1009
    %v1789 = vunpack.c.l.b16 %v1010
    %v1790 = vunpack.c.h.b16 %v1010
    %v1791 = vunpack.c.l.b16 %v1011
    %v1792 = vunpack.c.h.b16 %v1011
    %v1793 = vunpack.c.l.b16 %v1012
    %v1794 = vunpack.c.h.b16 %v1012
    %v1795 = vunpack.c.l.b16 %v1013
    %v1796 = vunpack.c.h.b16 %v1013
    %v1797 = vunpack.c.l.b16 %v1014
    %v1798 = vunpack.c.h.b16 %v1014
    %v1799 = vunpack.c.l.b16 %v1015
    %v1800 = vunpack.c.h.b16 %v1015
    %v1801 = vunpack.c.l.b16 %v1016
    %v1802 = vunpack.c.h.b16 %v1016
    %v1803 = vunpack.c.l.b16 %v1017
    %v1804 = vunpack.c.h.b16 %v1017
    %v1805 = vunpack.c.l.b16 %v1018
    %v1806 = vunpack.c.h.b16 %v1018
    %v1807 = vunpack.c.l.b16 %v1019
    %v1808 = vunpack.c.h.b16 %v1019
    %v1809 = vunpack.c.l.b16 %v1020
    %v1810 = vunpack.c.h.b16 %v1020
    %v1811 = vunpack.c.l.b16 %v1021
    %v1812 = vunpack.c.h.b16 %v1021
    %v1813 = vunpack.c.l.b16 %v1022
    %v1814 = vunpack.c.h.b16 %v1022
    %v1815 = vunpack.c.l.b16 %v1023
    %v1816 = vunpack.c.h.b16 %v1023
    %v1817 = vunpack.c.l.b16 %v1024
    %v1818 = vunpack.c.h.b16 %v1024
    %v1819 = vunpack.c.l.b16 %v1025
    %v1820 = vunpack.c.h.b16 %v1025
    %v1821 = vunpack.c.l.b16 %v1026
    %v1822 = vunpack.c.h.b16 %v1026
    %v1823 = vunpack.c.l.b16 %v1027
    %v1824 = vunpack.c.h.b16 %v1027
    %v1825 = vunpack.c.l.b16 %v1028
    %v1826 = vunpack.c.h.b16 %v1028
    %v1827 = vunpack.c.l.b16 %v1029
    %v1828 = vunpack.c.h.b16 %v1029
    %v1829 = vunpack.c.l.b16 %v1030
    %v1830 = vunpack.c.h.b16 %v1030
    %v1831 = vunpack.c.l.b16 %v1031
    %v1832 = vunpack.c.h.b16 %v1031
    %v1833 = vunpack.c.l.b16 %v1032
    %v1834 = vunpack.c.h.b16 %v1032
    %v1835 = vunpack.c.l.b16 %v1033
    %v1836 = vunpack.c.h.b16 %v1033
    %v1837 = vunpack.c.l.b16 %v1034
    %v1838 = vunpack.c.h.b16 %v1034
    %v1839 = vunpack.c.l.b16 %v1035
    %v1840 = vunpack.c.h.b16 %v1035
    %v1841 = vunpack.c.l.b16 %v1036
    %v1842 = vunpack.c.h.b16 %v1036
    %v1843 = vunpack.c.l.b16 %v1037
    %v1844 = vunpack.c.h.b16 %v1037
    %v1845 = vunpack.c.l.b16 %v1038
    %v1846 = vunpack.c.h.b16 %v1038
    %v1847 = vunpack.c.l.b16 %v1039
    %v1848 = vunpack.c.h.b16 %v1039
    %v1849 = vunpack.c.l.b16 %v1040
    %v1850 = vunpack.c.h.b16 %v1040
    %v1851 = vpack.c.b16 %v1347, %v1339
    %v1852 = vpack.c.b16 %v1348, %v1340
    %v1853 = vpack.c.b16 %v1349, %v1341
    %v1854 = vpack.c.b16 %v1350, %v1342
    %v1855 = vpack.c.b16 %v1351, %v1343
    %v1856 = vpack.c.b16 %v1352, %v1344
    %v1857 = vpack.c.b16 %v1353, %v1345
    %v1858 = vpack.c.b16 %v1354, %v1346
    %v1859 = vpack.c.b16 %v1363, %v1355
    %v1860 = vpack.c.b16 %v1364, %v1356
    %v1861 = vpack.c.b16 %v1365, %v1357
    %v1862 = vpack.c.b16 %v1366, %v1358
    %v1863 = vpack.c.b16 %v1367, %v1359
    %v1864 = vpack.c.b16 %v1368, %v1360
    %v1865 = vpack.c.b16 %v1369, %v1361
    %v1866 = vpack.c.b16 %v1370, %v1362
    %v1867 = vpack.c.b16 %v1379, %v1371
    %v1868 = vpack.c.b16 %v1380, %v1372
    %v1869 = vpack.c.b16 %v1381, %v1373
    %v1870 = vpack.c.b16 %v1382, %v1374
    %v1871 = vpack.c.b16 %v1383, %v1375
    %v1872 = vpack.c.b16 %v1384, %v1376
    %v1873 = vpack.c.b16 %v1385, %v1377
    %v1874 = vpack.c.b16 %v1386, %v1378
    %v1875 = vpack.c.b16 %v1395, %v1387
    %v1876 = vpack.c.b16 %v1396, %v1388
    %v1877 = vpack.c.b16 %v1397, %v1389
    %v1878 = vpack.c.b16 %v1398, %v1390
    %v1879 = vpack.c.b16 %v1399, %v1391
    %v1880 = vpack.c.b16 %v1400, %v1392
    %v1881 = vpack.c.b16 %v1401, %v1393
    %v1882 = vpack.c.b16 %v1402, %v1394
    %v1883 = vpack.c.b16 %v1411, %v1403
    %v1884 = vpack.c.b16 %v1412, %v1404
    %v1885 = vpack.c.b16 %v1413, %v1405
    %v1886 = vpack.c.b16 %v1414, %v1406
    %v1887 = vpack.c.b16 %v1415, %v1407
    %v1888 = vpack.c.b16 %v1416, %v1408
    %v1889 = vpack.c.b16 %v1417, %v1409
    %v1890 = vpack.c.b16 %v1418, %v1410
    %v1891 = vpack.c.b16 %v1427, %v1419
    %v1892 = vpack.c.b16 %v1428, %v1420
    %v1893 = vpack.c.b16 %v1429, %v1421
    %v1894 = vpack.c.b16 %v1430, %v1422
    %v1895 = vpack.c.b16 %v1431, %v1423
    %v1896 = vpack.c.b16 %v1432, %v1424
    %v1897 = vpack.c.b16 %v1433, %v1425
    %v1898 = vpack.c.b16 %v1434, %v1426
    %v1899 = vpack.c.b16 %v1443, %v1435
    %v1900 = vpack.c.b16 %v1444, %v1436
    %v1901 = vpack.c.b16 %v1445, %v1437
    %v1902 = vpack.c.b16 %v1446, %v1438
    %v1903 = vpack.c.b16 %v1447, %v1439
    %v1904 = vpack.c.b16 %v1448, %v1440
    %v1905 = vpack.c.b16 %v1449, %v1441
    %v1906 = vpack.c.b16 %v1450, %v1442
    %v1907 = vpack.c.b16 %v1459, %v1451
    %v1908 = vpack.c.b16 %v1460, %v1452
    %v1909 = vpack.c.b16 %v1461, %v1453
    %v1910 = vpack.c.b16 %v1462, %v1454
    %v1911 = vpack.c.b16 %v1463, %v1455
    %v1912 = vpack.c.b16 %v1464, %v1456
    %v1913 = vpack.c.b16 %v1465, %v1457
    %v1914 = vpack.c.b16 %v1466, %v1458
    %v1915 = vpack.c.b16 %v1475, %v1467
    %v1916 = vpack.c.b16 %v1476, %v1468
    %v1917 = vpack.c.b16 %v1477, %v1469
    %v1918 = vpack.c.b16 %v1478, %v1470
    %v1919 = vpack.c.b16 %v1479, %v1471
    %v1920 = vpack.c.b16 %v1480, %v1472
    %v1921 = vpack.c.b16 %v1481, %v1473
    %v1922 = vpack.c.b16 %v1482, %v1474
    %v1923 = vpack.c.b16 %v1491, %v1483
    %v1924 = vpack.c.b16 %v1492, %v1484
    %v1925 = vpack.c.b16 %v1493, %v1485
    %v1926 = vpack.c.b16 %v1494, %v1486
    %v1927 = vpack.c.b16 %v1495, %v1487
    %v1928 = vpack.c.b16 %v1496, %v1488
    %v1929 = vpack.c.b16 %v1497, %v1489
    %v1930 = vpack.c.b16 %v1498, %v1490
    %v1931 = vpack.c.b16 %v1507, %v1499
    %v1932 = vpack.c.b16 %v1508, %v1500
    %v1933 = vpack.c.b16 %v1509, %v1501
    %v1934 = vpack.c.b16 %v1510, %v1502
    %v1935 = vpack.c.b16 %v1511, %v1503
    %v1936 = vpack.c.b16 %v1512, %v1504
    %v1937 = vpack.c.b16 %v1513, %v1505
    %v1938 = vpack.c.b16 %v1514, %v1506
    %v1939 = vpack.c.b16 %v1523, %v1515
    %v1940 = vpack.c.b16 %v1524, %v1516
    %v1941 = vpack.c.b16 %v1525, %v1517
    %v1942 = vpack.c.b16 %v1526, %v1518
    %v1943 = vpack.c.b16 %v1527, %v1519
    %v1944 = vpack.c.b16 %v1528, %v1520
    %v1945 = vpack.c.b16 %v1529, %v1521
    %v1946 = vpack.c.b16 %v1530, %v1522
    %v1947 = vpack.c.b16 %v1539, %v1531
    %v1948 = vpack.c.b16 %v1540, %v1532
    %v1949 = vpack.c.b16 %v1541, %v1533
    %v1950 = vpack.c.b16 %v1542, %v1534
    %v1951 = vpack.c.b16 %v1543, %v1535
    %v1952 = vpack.c.b16 %v1544, %v1536
    %v1953 = vpack.c.b16 %v1545, %v1537
    %v1954 = vpack.c.b16 %v1546, %v1538
    %v1955 = vpack.c.b16 %v1555, %v1547
    %v1956 = vpack.c.b16 %v1556, %v1548
    %v1957 = vpack.c.b16 %v1557, %v1549
    %v1958 = vpack.c.b16 %v1558, %v1550
    %v1959 = vpack.c.b16 %v1559, %v1551
    %v1960 = vpack.c.b16 %v1560, %v1552
    %v1961 = vpack.c.b16 %v1561, %v1553
    %v1962 = vpack.c.b16 %v1562, %v1554
    %v1963 = vpack.c.b16 %v1571, %v1563
    %v1964 = vpack.c.b16 %v1572, %v1564
    %v1965 = vpack.c.b16 %v1573, %v1565
    %v1966 = vpack.c.b16 %v1574, %v1566
    %v1967 = vpack.c.b16 %v1575, %v1567
    %v1968 = vpack.c.b16 %v1576, %v1568
    %v1969 = vpack.c.b16 %v1577, %v1569
    %v1970 = vpack.c.b16 %v1578, %v1570
    %v1971 = vpack.c.b16 %v1587, %v1579
    %v1972 = vpack.c.b16 %v1588, %v1580
    %v1973 = vpack.c.b16 %v1589, %v1581
    %v1974 = vpack.c.b16 %v1590, %v1582
    %v1975 = vpack.c.b16 %v1591, %v1583
    %v1976 = vpack.c.b16 %v1592, %v1584
    %v1977 = vpack.c.b16 %v1593, %v1585
    %v1978 = vpack.c.b16 %v1594, %v1586
    %v1979 = vpack.c.b16 %v1603, %v1595
    %v1980 = vpack.c.b16 %v1604, %v1596
    %v1981 = vpack.c.b16 %v1605, %v1597
    %v1982 = vpack.c.b16 %v1606, %v1598
    %v1983 = vpack.c.b16 %v1607, %v1599
    %v1984 = vpack.c.b16 %v1608, %v1600
    %v1985 = vpack.c.b16 %v1609, %v1601
    %v1986 = vpack.c.b16 %v1610, %v1602
    %v1987 = vpack.c.b16 %v1619, %v1611
    %v1988 = vpack.c.b16 %v1620, %v1612
    %v1989 = vpack.c.b16 %v1621, %v1613
    %v1990 = vpack.c.b16 %v1622, %v1614
    %v1991 = vpack.c.b16 %v1623, %v1615
    %v1992 = vpack.c.b16 %v1624, %v1616
    %v1993 = vpack.c.b16 %v1625, %v1617
    %v1994 = vpack.c.b16 %v1626, %v1618
    %v1995 = vpack.c.b16 %v1635, %v1627
    %v1996 = vpack.c.b16 %v1636, %v1628
    %v1997 = vpack.c.b16 %v1637, %v1629
    %v1998 = vpack.c.b16 %v1638, %v1630
    %v1999 = vpack.c.b16 %v1639, %v1631
    %v2000 = vpack.c.b16 %v1640, %v1632
    %v2001 = vpack.c.b16 %v1641, %v1633
    %v2002 = vpack.c.b16 %v1642, %v1634
    %v2003 = vpack.c.b16 %v1651, %v1643
    %v2004 = vpack.c.b16 %v1652, %v1644
    %v2005 = vpack.c.b16 %v1653, %v1645
    %v2006 = vpack.c.b16 %v1654, %v1646
    %v2007 = vpack.c.b16 %v1655, %v1647
    %v2008 = vpack.c.b16 %v1656, %v1648
    %v2009 = vpack.c.b16 %v1657, %v1649
    %v2010 = vpack.c.b16 %v1658, %v1650
    %v2011 = vpack.c.b16 %v1667, %v1659
    %v2012 = vpack.c.b16 %v1668, %v1660
    %v2013 = vpack.c.b16 %v1669, %v1661
    %v2014 = vpack.c.b16 %v1670, %v1662
    %v2015 = vpack.c.b16 %v1671, %v1663
    %v2016 = vpack.c.b16 %v1672, %v1664
    %v2017 = vpack.c.b16 %v1673, %v1665
    %v2018 = vpack.c.b16 %v1674, %v1666
    %v2019 = vpack.c.b16 %v1683, %v1675
    %v2020 = vpack.c.b16 %v1684, %v1676
    %v2021 = vpack.c.b16 %v1685, %v1677
    %v2022 = vpack.c.b16 %v1686, %v1678
    %v2023 = vpack.c.b16 %v1687, %v1679
    %v2024 = vpack.c.b16 %v1688, %v1680
    %v2025 = vpack.c.b16 %v1689, %v1681
    %v2026 = vpack.c.b16 %v1690, %v1682
    %v2027 = vpack.c.b16 %v1699, %v1691
    %v2028 = vpack.c.b16 %v1700, %v1692
    %v2029 = vpack.c.b16 %v1701, %v1693
    %v2030 = vpack.c.b16 %v1702, %v1694
    %v2031 = vpack.c.b16 %v1703, %v1695
    %v2032 = vpack.c.b16 %v1704, %v1696
    %v2033 = vpack.c.b16 %v1705, %v1697
    %v2034 = vpack.c.b16 %v1706, %v1698
    %v2035 = vpack.c.b16 %v1715, %v1707
    %v2036 = vpack.c.b16 %v1716, %v1708
    %v2037 = vpack.c.b16 %v1717, %v1709
    %v2038 = vpack.c.b16 %v1718, %v1710
    %v2039 = vpack.c.b16 %v1719, %v1711
    %v2040 = vpack.c.b16 %v1720, %v1712
    %v2041 = vpack.c.b16 %v1721, %v1713
    %v2042 = vpack.c.b16 %v1722, %v1714
    %v2043 = vpack.c.b16 %v1731, %v1723
    %v2044 = vpack.c.b16 %v1732, %v1724
    %v2045 = vpack.c.b16 %v1733, %v1725
    %v2046 = vpack.c.b16 %v1734, %v1726
    %v2047 = vpack.c.b16 %v1735, %v1727
    %v2048 = vpack.c.b16 %v1736, %v1728
    %v2049 = vpack.c.b16 %v1737, %v1729
    %v2050 = vpack.c.b16 %v1738, %v1730
    %v2051 = vpack.c.b16 %v1747, %v1739
    %v2052 = vpack.c.b16 %v1748, %v1740
    %v2053 = vpack.c.b16 %v1749, %v1741
    %v2054 = vpack.c.b16 %v1750, %v1742
    %v2055 = vpack.c.b16 %v1751, %v1743
    %v2056 = vpack.c.b16 %v1752, %v1744
    %v2057 = vpack.c.b16 %v1753, %v1745
    %v2058 = vpack.c.b16 %v1754, %v1746
    %v2059 = vpack.c.b16 %v1763, %v1755
    %v2060 = vpack.c.b16 %v1764, %v1756
    %v2061 = vpack.c.b16 %v1765, %v1757
    %v2062 = vpack.c.b16 %v1766, %v1758
    %v2063 = vpack.c.b16 %v1767, %v1759
    %v2064 = vpack.c.b16 %v1768, %v1760
    %v2065 = vpack.c.b16 %v1769, %v1761
    %v2066 = vpack.c.b16 %v1770, %v1762
    %v2067 = vpack.c.b16 %v1779, %v1771
    %v2068 = vpack.c.b16 %v1780, %v1772
    %v2069 = vpack.c.b16 %v1781, %v1773
    %v2070 = vpack.c.b16 %v1782, %v1774
    %v2071 = vpack.c.b16 %v1783, %v1775
    %v2072 = vpack.c.b16 %v1784, %v1776
    %v2073 = vpack.c.b16 %v1785, %v1777
    %v2074 = vpack.c.b16 %v1786, %v1778
    %v2075 = vpack.c.b16 %v1795, %v1787
    %v2076 = vpack.c.b16 %v1796, %v1788
    %v2077 = vpack.c.b16 %v1797, %v1789
    %v2078 = vpack.c.b16 %v1798, %v1790
    %v2079 = vpack.c.b16 %v1799, %v1791
    %v2080 = vpack.c.b16 %v1800, %v1792
    %v2081 = vpack.c.b16 %v1801, %v1793
    %v2082 = vpack.c.b16 %v1802, %v1794
    %v2083 = vpack.c.b16 %v1811, %v1803
    %v2084 = vpack.c.b16 %v1812, %v1804
    %v2085 = vpack.c.b16 %v1813, %v1805
    %v2086 = vpack.c.b16 %v1814, %v1806
    %v2087 = vpack.c.b16 %v1815, %v1807
    %v2088 = vpack.c.b16 %v1816, %v1808
    %v2089 = vpack.c.b16 %v1817, %v1809
    %v2090 = vpack.c.b16 %v1818, %v1810
    %v2091 = vpack.c.b16 %v1827, %v1819
    %v2092 = vpack.c.b16 %v1828, %v1820
    %v2093 = vpack.c.b16 %v1829, %v1821
    %v2094 = vpack.c.b16 %v1830, %v1822
    %v2095 = vpack.c.b16 %v1831, %v1823
    %v2096 = vpack.c.b16 %v1832, %v1824
    %v2097 = vpack.c.b16 %v1833, %v1825
    %v2098 = vpack.c.b16 %v1834, %v1826
    %v2099 = vpack.c.b16 %v1843, %v1835
    %v2100 = vpack.c.b16 %v1844, %v1836
    %v2101 = vpack.c.b16 %v1845, %v1837
    %v2102 = vpack.c.b16 %v1846, %v1838
    %v2103 = vpack.c.b16 %v1847, %v1839
    %v2104 = vpack.c.b16 %v1848, %v1840
    %v2105 = vpack.c.b16 %v1849, %v1841
    %v2106 = vpack.c.b16 %v1850, %v1842
    %2363 = vmatprep.subr.bf16.mxu0 %v1852
    %2364 = vmatpush1.bf16.msra.mxu0 %v1851
    %2365 = vmatprep.subr.bf16.mxu0 %v1860
    %2366 = vmatpush1.bf16.msra.mxu0 %v1859
    %2367 = vmatprep.subr.bf16.mxu0 %v1868
    %2368 = vmatpush1.bf16.msra.mxu0 %v1867
    %2369 = vmatprep.subr.bf16.mxu0 %v1876
    %2370 = vmatpush1.bf16.msra.mxu0 %v1875
    %2371 = vmatprep.subr.bf16.mxu0 %v1884
    %2372 = vmatpush1.bf16.msra.mxu0 %v1883
    %2373 = vmatprep.subr.bf16.mxu0 %v1892
    %2374 = vmatpush1.bf16.msra.mxu0 %v1891
    %2375 = vmatprep.subr.bf16.mxu0 %v1900
    %2376 = vmatpush1.bf16.msra.mxu0 %v1899
    %2377 = vmatprep.subr.bf16.mxu0 %v1908
    %2378 = vmatpush1.bf16.msra.mxu0 %v1907
    %2379 = vmatprep.subr.bf16.mxu0 %v1916
    %2380 = vmatpush1.bf16.msra.mxu0 %v1915
    %2381 = vmatprep.subr.bf16.mxu0 %v1924
    %2382 = vmatpush1.bf16.msra.mxu0 %v1923
    %2383 = vmatprep.subr.bf16.mxu0 %v1932
    %2384 = vmatpush1.bf16.msra.mxu0 %v1931
    %2385 = vmatprep.subr.bf16.mxu0 %v1940
    %2386 = vmatpush1.bf16.msra.mxu0 %v1939
    %2387 = vmatprep.subr.bf16.mxu0 %v1948
    %2388 = vmatpush1.bf16.msra.mxu0 %v1947
    %2389 = vmatprep.subr.bf16.mxu0 %v1956
    %2390 = vmatpush1.bf16.msra.mxu0 %v1955
    %2391 = vmatprep.subr.bf16.mxu0 %v1964
    %2392 = vmatpush1.bf16.msra.mxu0 %v1963
    %2393 = vmatprep.subr.bf16.mxu0 %v1972
    %2394 = vmatpush1.bf16.msra.mxu0 %v1971
    %2395 = vmatprep.mubr.bf16.mxu0 %v782
    %2396 = vmatmul.mubr.bf16.gmra.mrb[0].mxu0 %v781
    %v2397 = vpop.f32.mrb[0].mxu0
    %v2398 = vadd.f32 %v1046, %v2397
    %v2399 = vpop.f32.mrb[0].mxu0
    %v2400 = vadd.f32 %v1050, %v2399
    %v2401 = vpop.f32.mrb[0].mxu0
    %v2402 = vpop.f32.mrb[0].mxu0
    %2403 = vdwg.mxu0
    %2404 = vmatprep.subr.bf16.mxu0 %v1980
    %2405 = vmatpush1.bf16.msra.mxu0 %v1979
    %2406 = vmatprep.subr.bf16.mxu0 %v1988
    %2407 = vmatpush1.bf16.msra.mxu0 %v1987
    %2408 = vmatprep.subr.bf16.mxu0 %v1996
    %2409 = vmatpush1.bf16.msra.mxu0 %v1995
    %2410 = vmatprep.subr.bf16.mxu0 %v2004
    %2411 = vmatpush1.bf16.msra.mxu0 %v2003
    %2412 = vmatprep.subr.bf16.mxu0 %v2012
    %2413 = vmatpush1.bf16.msra.mxu0 %v2011
    %2414 = vmatprep.subr.bf16.mxu0 %v2020
    %2415 = vmatpush1.bf16.msra.mxu0 %v2019
    %2416 = vmatprep.subr.bf16.mxu0 %v2028
    %2417 = vmatpush1.bf16.msra.mxu0 %v2027
    %2418 = vmatprep.subr.bf16.mxu0 %v2036
    %2419 = vmatpush1.bf16.msra.mxu0 %v2035
    %2420 = vmatprep.subr.bf16.mxu0 %v2044
    %2421 = vmatpush1.bf16.msra.mxu0 %v2043
    %2422 = vmatprep.subr.bf16.mxu0 %v2052
    %2423 = vmatpush1.bf16.msra.mxu0 %v2051
    %2424 = vmatprep.subr.bf16.mxu0 %v2060
    %2425 = vmatpush1.bf16.msra.mxu0 %v2059
    %2426 = vmatprep.subr.bf16.mxu0 %v2068
    %2427 = vmatpush1.bf16.msra.mxu0 %v2067
    %2428 = vmatprep.subr.bf16.mxu0 %v2076
    %2429 = vmatpush1.bf16.msra.mxu0 %v2075
    %2430 = vmatprep.subr.bf16.mxu0 %v2084
    %2431 = vmatpush1.bf16.msra.mxu0 %v2083
    %2432 = vmatprep.subr.bf16.mxu0 %v2092
    %2433 = vmatpush1.bf16.msra.mxu0 %v2091
    %2434 = vmatprep.subr.bf16.mxu0 %v2100
    %2435 = vmatpush1.bf16.msra.mxu0 %v2099
    %2436 = vmatprep.mubr.bf16.mxu0 %v784
    %2437 = vmatmul.mubr.bf16.gmra.mrb[0].mxu0 %v783
    %v2438 = vpop.f32.mrb[0].mxu0
    %v2439 = vadd.f32 %v2398, %v2438
    %v2440 = vpop.f32.mrb[0].mxu0
    %v2441 = vadd.f32 %v2400, %v2440
    %v2442 = vpop.f32.mrb[0].mxu0
    %v2443 = vpop.f32.mrb[0].mxu0
    %2444 = vdwg.mxu0
    %2445 = vmatprep.subr.bf16.mxu0 %v1854
    %2446 = vmatpush1.bf16.msra.mxu0 %v1853
    %2447 = vmatprep.subr.bf16.mxu0 %v1862
    %2448 = vmatpush1.bf16.msra.mxu0 %v1861
    %2449 = vmatprep.subr.bf16.mxu0 %v1870
    %2450 = vmatpush1.bf16.msra.mxu0 %v1869
    %2451 = vmatprep.subr.bf16.mxu0 %v1878
    %2452 = vmatpush1.bf16.msra.mxu0 %v1877
    %2453 = vmatprep.subr.bf16.mxu0 %v1886
    %2454 = vmatpush1.bf16.msra.mxu0 %v1885
    %2455 = vmatprep.subr.bf16.mxu0 %v1894
    %2456 = vmatpush1.bf16.msra.mxu0 %v1893
    %2457 = vmatprep.subr.bf16.mxu0 %v1902
    %2458 = vmatpush1.bf16.msra.mxu0 %v1901
    %2459 = vmatprep.subr.bf16.mxu0 %v1910
    %2460 = vmatpush1.bf16.msra.mxu0 %v1909
    %2461 = vmatprep.subr.bf16.mxu0 %v1918
    %2462 = vmatpush1.bf16.msra.mxu0 %v1917
    %2463 = vmatprep.subr.bf16.mxu0 %v1926
    %2464 = vmatpush1.bf16.msra.mxu0 %v1925
    %2465 = vmatprep.subr.bf16.mxu0 %v1934
    %2466 = vmatpush1.bf16.msra.mxu0 %v1933
    %2467 = vmatprep.subr.bf16.mxu0 %v1942
    %2468 = vmatpush1.bf16.msra.mxu0 %v1941
    %2469 = vmatprep.subr.bf16.mxu0 %v1950
    %2470 = vmatpush1.bf16.msra.mxu0 %v1949
    %2471 = vmatprep.subr.bf16.mxu0 %v1958
    %2472 = vmatpush1.bf16.msra.mxu0 %v1957
    %2473 = vmatprep.subr.bf16.mxu0 %v1966
    %2474 = vmatpush1.bf16.msra.mxu0 %v1965
    %2475 = vmatprep.subr.bf16.mxu0 %v1974
    %2476 = vmatpush1.bf16.msra.mxu0 %v1973
    %2477 = vmatprep.mubr.bf16.mxu0 %v782
    %2478 = vmatmul.mubr.bf16.gmra.mrb[0].mxu0 %v781
    %v2479 = vpop.f32.mrb[0].mxu0
    %v2480 = vadd.f32 %v1054, %v2479
    %v2481 = vpop.f32.mrb[0].mxu0
    %v2482 = vadd.f32 %v1058, %v2481
    %v2483 = vpop.f32.mrb[0].mxu0
    %v2484 = vpop.f32.mrb[0].mxu0
    %2485 = vdwg.mxu0
    %2486 = vmatprep.subr.bf16.mxu0 %v1982
    %2487 = vmatpush1.bf16.msra.mxu0 %v1981
    %2488 = vmatprep.subr.bf16.mxu0 %v1990
    %2489 = vmatpush1.bf16.msra.mxu0 %v1989
    %2490 = vmatprep.subr.bf16.mxu0 %v1998
    %2491 = vmatpush1.bf16.msra.mxu0 %v1997
    %2492 = vmatprep.subr.bf16.mxu0 %v2006
    %2493 = vmatpush1.bf16.msra.mxu0 %v2005
    %2494 = vmatprep.subr.bf16.mxu0 %v2014
    %2495 = vmatpush1.bf16.msra.mxu0 %v2013
    %2496 = vmatprep.subr.bf16.mxu0 %v2022
    %2497 = vmatpush1.bf16.msra.mxu0 %v2021
    %2498 = vmatprep.subr.bf16.mxu0 %v2030
    %2499 = vmatpush1.bf16.msra.mxu0 %v2029
    %2500 = vmatprep.subr.bf16.mxu0 %v2038
    %2501 = vmatpush1.bf16.msra.mxu0 %v2037
    %2502 = vmatprep.subr.bf16.mxu0 %v2046
    %2503 = vmatpush1.bf16.msra.mxu0 %v2045
    %2504 = vmatprep.subr.bf16.mxu0 %v2054
    %2505 = vmatpush1.bf16.msra.mxu0 %v2053
    %2506 = vmatprep.subr.bf16.mxu0 %v2062
    %2507 = vmatpush1.bf16.msra.mxu0 %v2061
    %2508 = vmatprep.subr.bf16.mxu0 %v2070
    %2509 = vmatpush1.bf16.msra.mxu0 %v2069
    %2510 = vmatprep.subr.bf16.mxu0 %v2078
    %2511 = vmatpush1.bf16.msra.mxu0 %v2077
    %2512 = vmatprep.subr.bf16.mxu0 %v2086
    %2513 = vmatpush1.bf16.msra.mxu0 %v2085
    %2514 = vmatprep.subr.bf16.mxu0 %v2094
    %2515 = vmatpush1.bf16.msra.mxu0 %v2093
    %2516 = vmatprep.subr.bf16.mxu0 %v2102
    %2517 = vmatpush1.bf16.msra.mxu0 %v2101
    %2518 = vmatprep.mubr.bf16.mxu0 %v784
    %2519 = vmatmul.mubr.bf16.gmra.mrb[0].mxu0 %v783
    %v2520 = vpop.f32.mrb[0].mxu0
    %v2521 = vadd.f32 %v2480, %v2520
    %v2522 = vpop.f32.mrb[0].mxu0
    %v2523 = vadd.f32 %v2482, %v2522
    %v2524 = vpop.f32.mrb[0].mxu0
    %v2525 = vpop.f32.mrb[0].mxu0
    %2526 = vdwg.mxu0
    %2527 = vmatprep.subr.bf16.mxu0 %v1856
    %2528 = vmatpush1.bf16.msra.mxu0 %v1855
    %2529 = vmatprep.subr.bf16.mxu0 %v1864
    %2530 = vmatpush1.bf16.msra.mxu0 %v1863
    %2531 = vmatprep.subr.bf16.mxu0 %v1872
    %2532 = vmatpush1.bf16.msra.mxu0 %v1871
    %2533 = vmatprep.subr.bf16.mxu0 %v1880
    %2534 = vmatpush1.bf16.msra.mxu0 %v1879
    %2535 = vmatprep.subr.bf16.mxu0 %v1888
    %2536 = vmatpush1.bf16.msra.mxu0 %v1887
    %2537 = vmatprep.subr.bf16.mxu0 %v1896
    %2538 = vmatpush1.bf16.msra.mxu0 %v1895
    %2539 = vmatprep.subr.bf16.mxu0 %v1904
    %2540 = vmatpush1.bf16.msra.mxu0 %v1903
    %2541 = vmatprep.subr.bf16.mxu0 %v1912
    %2542 = vmatpush1.bf16.msra.mxu0 %v1911
    %2543 = vmatprep.subr.bf16.mxu0 %v1920
    %2544 = vmatpush1.bf16.msra.mxu0 %v1919
    %2545 = vmatprep.subr.bf16.mxu0 %v1928
    %2546 = vmatpush1.bf16.msra.mxu0 %v1927
    %2547 = vmatprep.subr.bf16.mxu0 %v1936
    %2548 = vmatpush1.bf16.msra.mxu0 %v1935
    %2549 = vmatprep.subr.bf16.mxu0 %v1944
    %2550 = vmatpush1.bf16.msra.mxu0 %v1943
    %2551 = vmatprep.subr.bf16.mxu0 %v1952
    %2552 = vmatpush1.bf16.msra.mxu0 %v1951
    %2553 = vmatprep.subr.bf16.mxu0 %v1960
    %2554 = vmatpush1.bf16.msra.mxu0 %v1959
    %2555 = vmatprep.subr.bf16.mxu0 %v1968
    %2556 = vmatpush1.bf16.msra.mxu0 %v1967
    %2557 = vmatprep.subr.bf16.mxu0 %v1976
    %2558 = vmatpush1.bf16.msra.mxu0 %v1975
    %2559 = vmatprep.mubr.bf16.mxu0 %v782
    %2560 = vmatmul.mubr.bf16.gmra.mrb[0].mxu0 %v781
    %v2561 = vpop.f32.mrb[0].mxu0
    %v2562 = vadd.f32 %v1062, %v2561
    %v2563 = vpop.f32.mrb[0].mxu0
    %v2564 = vadd.f32 %v1066, %v2563
    %v2565 = vpop.f32.mrb[0].mxu0
    %v2566 = vpop.f32.mrb[0].mxu0
    %2567 = vdwg.mxu0
    %2568 = vmatprep.subr.bf16.mxu0 %v1984
    %2569 = vmatpush1.bf16.msra.mxu0 %v1983
    %2570 = vmatprep.subr.bf16.mxu0 %v1992
    %2571 = vmatpush1.bf16.msra.mxu0 %v1991
    %2572 = vmatprep.subr.bf16.mxu0 %v2000
    %2573 = vmatpush1.bf16.msra.mxu0 %v1999
    %2574 = vmatprep.subr.bf16.mxu0 %v2008
    %2575 = vmatpush1.bf16.msra.mxu0 %v2007
    %2576 = vmatprep.subr.bf16.mxu0 %v2016
    %2577 = vmatpush1.bf16.msra.mxu0 %v2015
    %2578 = vmatprep.subr.bf16.mxu0 %v2024
    %2579 = vmatpush1.bf16.msra.mxu0 %v2023
    %2580 = vmatprep.subr.bf16.mxu0 %v2032
    %2581 = vmatpush1.bf16.msra.mxu0 %v2031
    %2582 = vmatprep.subr.bf16.mxu0 %v2040
    %2583 = vmatpush1.bf16.msra.mxu0 %v2039
    %2584 = vmatprep.subr.bf16.mxu0 %v2048
    %2585 = vmatpush1.bf16.msra.mxu0 %v2047
    %2586 = vmatprep.subr.bf16.mxu0 %v2056
    %2587 = vmatpush1.bf16.msra.mxu0 %v2055
    %2588 = vmatprep.subr.bf16.mxu0 %v2064
    %2589 = vmatpush1.bf16.msra.mxu0 %v2063
    %2590 = vmatprep.subr.bf16.mxu0 %v2072
    %2591 = vmatpush1.bf16.msra.mxu0 %v2071
    %2592 = vmatprep.subr.bf16.mxu0 %v2080
    %2593 = vmatpush1.bf16.msra.mxu0 %v2079
    %2594 = vmatprep.subr.bf16.mxu0 %v2088
    %2595 = vmatpush1.bf16.msra.mxu0 %v2087
    %2596 = vmatprep.subr.bf16.mxu0 %v2096
    %2597 = vmatpush1.bf16.msra.mxu0 %v2095
    %2598 = vmatprep.subr.bf16.mxu0 %v2104
    %2599 = vmatpush1.bf16.msra.mxu0 %v2103
    %2600 = vmatprep.mubr.bf16.mxu0 %v784
    %2601 = vmatmul.mubr.bf16.gmra.mrb[0].mxu0 %v783
    %v2602 = vpop.f32.mrb[0].mxu0
    %v2603 = vadd.f32 %v2562, %v2602
    %v2604 = vpop.f32.mrb[0].mxu0
    %v2605 = vadd.f32 %v2564, %v2604
    %v2606 = vpop.f32.mrb[0].mxu0
    %v2607 = vpop.f32.mrb[0].mxu0
    %2608 = vdwg.mxu0
    %2609 = vmatprep.subr.bf16.mxu0 %v1858
    %2610 = vmatpush1.bf16.msra.mxu0 %v1857
    %2611 = vmatprep.subr.bf16.mxu0 %v1866
    %2612 = vmatpush1.bf16.msra.mxu0 %v1865
    %2613 = vmatprep.subr.bf16.mxu0 %v1874
    %2614 = vmatpush1.bf16.msra.mxu0 %v1873
    %2615 = vmatprep.subr.bf16.mxu0 %v1882
    %2616 = vmatpush1.bf16.msra.mxu0 %v1881
    %2617 = vmatprep.subr.bf16.mxu0 %v1890
    %2618 = vmatpush1.bf16.msra.mxu0 %v1889
    %2619 = vmatprep.subr.bf16.mxu0 %v1898
    %2620 = vmatpush1.bf16.msra.mxu0 %v1897
    %2621 = vmatprep.subr.bf16.mxu0 %v1906
    %2622 = vmatpush1.bf16.msra.mxu0 %v1905
    %2623 = vmatprep.subr.bf16.mxu0 %v1914
    %2624 = vmatpush1.bf16.msra.mxu0 %v1913
    %2625 = vmatprep.subr.bf16.mxu0 %v1922
    %2626 = vmatpush1.bf16.msra.mxu0 %v1921
    %2627 = vmatprep.subr.bf16.mxu0 %v1930
    %2628 = vmatpush1.bf16.msra.mxu0 %v1929
    %2629 = vmatprep.subr.bf16.mxu0 %v1938
    %2630 = vmatpush1.bf16.msra.mxu0 %v1937
    %2631 = vmatprep.subr.bf16.mxu0 %v1946
    %2632 = vmatpush1.bf16.msra.mxu0 %v1945
    %2633 = vmatprep.subr.bf16.mxu0 %v1954
    %2634 = vmatpush1.bf16.msra.mxu0 %v1953
    %2635 = vmatprep.subr.bf16.mxu0 %v1962
    %2636 = vmatpush1.bf16.msra.mxu0 %v1961
    %2637 = vmatprep.subr.bf16.mxu0 %v1970
    %2638 = vmatpush1.bf16.msra.mxu0 %v1969
    %2639 = vmatprep.subr.bf16.mxu0 %v1978
    %2640 = vmatpush1.bf16.msra.mxu0 %v1977
    %2641 = vmatprep.mubr.bf16.mxu0 %v782
    %2642 = vmatmul.mubr.bf16.gmra.mrb[0].mxu0 %v781
    %v2643 = vpop.f32.mrb[0].mxu0
    %v2644 = vadd.f32 %v1070, %v2643
    %v2645 = vpop.f32.mrb[0].mxu0
    %v2646 = vadd.f32 %v1074, %v2645
    %v2647 = vpop.f32.mrb[0].mxu0
    %v2648 = vpop.f32.mrb[0].mxu0
    %2649 = vdwg.mxu0
    %2650 = vmatprep.subr.bf16.mxu0 %v1986
    %2651 = vmatpush1.bf16.msra.mxu0 %v1985
    %2652 = vmatprep.subr.bf16.mxu0 %v1994
    %2653 = vmatpush1.bf16.msra.mxu0 %v1993
    %2654 = vmatprep.subr.bf16.mxu0 %v2002
    %2655 = vmatpush1.bf16.msra.mxu0 %v2001
    %2656 = vmatprep.subr.bf16.mxu0 %v2010
    %2657 = vmatpush1.bf16.msra.mxu0 %v2009
    %2658 = vmatprep.subr.bf16.mxu0 %v2018
    %2659 = vmatpush1.bf16.msra.mxu0 %v2017
    %2660 = vmatprep.subr.bf16.mxu0 %v2026
    %2661 = vmatpush1.bf16.msra.mxu0 %v2025
    %2662 = vmatprep.subr.bf16.mxu0 %v2034
    %2663 = vmatpush1.bf16.msra.mxu0 %v2033
    %2664 = vmatprep.subr.bf16.mxu0 %v2042
    %2665 = vmatpush1.bf16.msra.mxu0 %v2041
    %2666 = vmatprep.subr.bf16.mxu0 %v2050
    %2667 = vmatpush1.bf16.msra.mxu0 %v2049
    %2668 = vmatprep.subr.bf16.mxu0 %v2058
    %2669 = vmatpush1.bf16.msra.mxu0 %v2057
    %2670 = vmatprep.subr.bf16.mxu0 %v2066
    %2671 = vmatpush1.bf16.msra.mxu0 %v2065
    %2672 = vmatprep.subr.bf16.mxu0 %v2074
    %2673 = vmatpush1.bf16.msra.mxu0 %v2073
    %2674 = vmatprep.subr.bf16.mxu0 %v2082
    %2675 = vmatpush1.bf16.msra.mxu0 %v2081
    %2676 = vmatprep.subr.bf16.mxu0 %v2090
    %2677 = vmatpush1.bf16.msra.mxu0 %v2089
    %2678 = vmatprep.subr.bf16.mxu0 %v2098
    %2679 = vmatpush1.bf16.msra.mxu0 %v2097
    %2680 = vmatprep.subr.bf16.mxu0 %v2106
    %2681 = vmatpush1.bf16.msra.mxu0 %v2105
    %2682 = vmatprep.mubr.bf16.mxu0 %v784
    %2683 = vmatmul.mubr.bf16.gmra.mrb[0].mxu0 %v783
    %v2684 = vpop.f32.mrb[0].mxu0
    %v2685 = vadd.f32 %v2644, %v2684
    %v2686 = vpop.f32.mrb[0].mxu0
    %v2687 = vadd.f32 %v2646, %v2686
    %v2688 = vpop.f32.mrb[0].mxu0
    %v2689 = vpop.f32.mrb[0].mxu0
    %2690 = vdwg.mxu0
    %v2691 = vmax.f32 %v2439, 0.0
    %v2692 = vmax.f32 %v2441, 0.0
    %v2693 = vmax.f32 %v2521, 0.0
    %v2694 = vmax.f32 %v2523, 0.0
    %v2695 = vmax.f32 %v2603, 0.0
    %v2696 = vmax.f32 %v2605, 0.0
    %v2697 = vmax.f32 %v2685, 0.0
    %v2698 = vmax.f32 %v2687, 0.0
    %v2699 = vpack.c.bf16 %v2691, %v2691
    %v2700 = vpack.c.bf16 %v2692, %v2692
    %v2701 = vpack.c.bf16 %v2693, %v2693
    %v2702 = vpack.c.bf16 %v2694, %v2694
    %v2703 = vpack.c.bf16 %v2695, %v2695
    %v2704 = vpack.c.bf16 %v2696, %v2696
    %v2705 = vpack.c.bf16 %v2697, %v2697
    %v2706 = vpack.c.bf16 %v2698, %v2698
    %v2707 = vld [vmem:[#allocation13] sm:$0xf]
    %v2708 = vld [vmem:[#allocation13 + $0x1c] sm:$0xf]
    %v2709 = vld [vmem:[#allocation13 + $0x38] sm:$0xf]
    %v2710 = vld [vmem:[#allocation13 + $0x54] sm:$0xf]
    %v2711 = vld [vmem:[#allocation13 + $0x70] sm:$0xf]
    %v2712 = vld [vmem:[#allocation13 + $0x8c] sm:$0xf]
    %v2713 = vld [vmem:[#allocation13 + $0xa8] sm:$0xf]
    %v2714 = vld [vmem:[#allocation13 + $0xc4] sm:$0xf]
    %v2715 = vld [vmem:[#allocation13 + $0xe0] sm:$0xf]
    %v2716 = vld [vmem:[#allocation13 + $0xfc] sm:$0xf]
    %v2717 = vld [vmem:[#allocation13 + $0x118] sm:$0xf]
    %v2718 = vld [vmem:[#allocation13 + $0x134] sm:$0xf]
    %v2719 = vld [vmem:[#allocation13 + $0x150] sm:$0xf]
    %v2720 = vld [vmem:[#allocation13 + $0x16c] sm:$0xf]
    %v2721 = vld [vmem:[#allocation13 + $0x188] sm:$0xf]
    %v2722 = vld [vmem:[#allocation13 + $0x1a4] sm:$0xf]
    %v2723 = vld [vmem:[#allocation13 + $0x1c0] sm:$0xf]
    %v2724 = vld [vmem:[#allocation13 + $0x1dc] sm:$0xf]
    %v2725 = vld [vmem:[#allocation13 + $0x1f8] sm:$0xf]
    %v2726 = vld [vmem:[#allocation13 + $0x214] sm:$0xf]
    %v2727 = vld [vmem:[#allocation13 + $0x230] sm:$0xf]
    %v2728 = vld [vmem:[#allocation13 + $0x24c] sm:$0xf]
    %v2729 = vld [vmem:[#allocation13 + $0x268] sm:$0xf]
    %v2730 = vld [vmem:[#allocation13 + $0x284] sm:$0xf]
    %v2731 = vld [vmem:[#allocation13 + $0x2a0] sm:$0xf]
    %v2732 = vld [vmem:[#allocation13 + $0x2bc] sm:$0xf]
    %v2733 = vld [vmem:[#allocation13 + $0x2d8] sm:$0xf]
    %v2734 = vld [vmem:[#allocation13 + $0x2f4] sm:$0xf]
    %v2735 = vld [vmem:[#allocation13 + $0x310] sm:$0xf]
    %v2736 = vld [vmem:[#allocation13 + $0x32c] sm:$0xf]
    %v2737 = vld [vmem:[#allocation13 + $0x348] sm:$0xf]
    %v2738 = vld [vmem:[#allocation13 + $0x364] sm:$0xf]
    %v2739 = vld [vmem:[#allocation13 + $0x380] sm:$0xf]
    %v2740 = vld [vmem:[#allocation13 + $0x39c] sm:$0xf]
    %v2741 = vld [vmem:[#allocation13 + $0x3b8] sm:$0xf]
    %v2742 = vld [vmem:[#allocation13 + $0x3d4] sm:$0xf]
    %v2743 = vld [vmem:[#allocation13 + $0x3f0] sm:$0xf]
    %v2744 = vld [vmem:[#allocation13 + $0x40c] sm:$0xf]
    %v2745 = vld [vmem:[#allocation13 + $0x428] sm:$0xf]
    %v2746 = vld [vmem:[#allocation13 + $0x444] sm:$0xf]
    %v2747 = vld [vmem:[#allocation13 + $0x460] sm:$0xf]
    %v2748 = vld [vmem:[#allocation13 + $0x47c] sm:$0xf]
    %v2749 = vld [vmem:[#allocation13 + $0x498] sm:$0xf]
    %v2750 = vld [vmem:[#allocation13 + $0x4b4] sm:$0xf]
    %v2751 = vld [vmem:[#allocation13 + $0x4d0] sm:$0xf]
    %v2752 = vld [vmem:[#allocation13 + $0x4ec] sm:$0xf]
    %v2753 = vld [vmem:[#allocation13 + $0x508] sm:$0xf]
    %v2754 = vld [vmem:[#allocation13 + $0x524] sm:$0xf]
    %v2755 = vld [vmem:[#allocation13 + $0x540] sm:$0xf]
    %v2756 = vld [vmem:[#allocation13 + $0x55c] sm:$0xf]
    %v2757 = vld [vmem:[#allocation13 + $0x578] sm:$0xf]
    %v2758 = vld [vmem:[#allocation13 + $0x594] sm:$0xf]
    %v2759 = vld [vmem:[#allocation13 + $0x5b0] sm:$0xf]
    %v2760 = vld [vmem:[#allocation13 + $0x5cc] sm:$0xf]
    %v2761 = vld [vmem:[#allocation13 + $0x5e8] sm:$0xf]
    %v2762 = vld [vmem:[#allocation13 + $0x604] sm:$0xf]
    %v2763 = vld [vmem:[#allocation13 + $0x620] sm:$0xf]
    %v2764 = vld [vmem:[#allocation13 + $0x63c] sm:$0xf]
    %v2765 = vld [vmem:[#allocation13 + $0x658] sm:$0xf]
    %v2766 = vld [vmem:[#allocation13 + $0x674] sm:$0xf]
    %v2767 = vld [vmem:[#allocation13 + $0x690] sm:$0xf]
    %v2768 = vld [vmem:[#allocation13 + $0x6ac] sm:$0xf]
    %v2769 = vld [vmem:[#allocation13 + $0x6c8] sm:$0xf]
    %v2770 = vld [vmem:[#allocation13 + $0x6e4] sm:$0xf]
    %v2771 = vld [vmem:[#allocation13 + $0x700] sm:$0xf]
    %v2772 = vld [vmem:[#allocation13 + $0x71c] sm:$0xf]
    %v2773 = vld [vmem:[#allocation13 + $0x738] sm:$0xf]
    %v2774 = vld [vmem:[#allocation13 + $0x754] sm:$0xf]
    %v2775 = vld [vmem:[#allocation13 + $0x770] sm:$0xf]
    %v2776 = vld [vmem:[#allocation13 + $0x78c] sm:$0xf]
    %v2777 = vld [vmem:[#allocation13 + $0x7a8] sm:$0xf]
    %v2778 = vld [vmem:[#allocation13 + $0x7c4] sm:$0xf]
    %v2779 = vld [vmem:[#allocation13 + $0x7e0] sm:$0xf]
    %v2780 = vld [vmem:[#allocation13 + $0x7fc] sm:$0xf]
    %v2781 = vld [vmem:[#allocation13 + $0x818] sm:$0xf]
    %v2782 = vld [vmem:[#allocation13 + $0x834] sm:$0xf]
    %v2783 = vld [vmem:[#allocation13 + $0x850] sm:$0xf]
    %v2784 = vld [vmem:[#allocation13 + $0x86c] sm:$0xf]
    %v2785 = vld [vmem:[#allocation13 + $0x888] sm:$0xf]
    %v2786 = vld [vmem:[#allocation13 + $0x8a4] sm:$0xf]
    %v2787 = vld [vmem:[#allocation13 + $0x8c0] sm:$0xf]
    %v2788 = vld [vmem:[#allocation13 + $0x8dc] sm:$0xf]
    %v2789 = vld [vmem:[#allocation13 + $0x8f8] sm:$0xf]
    %v2790 = vld [vmem:[#allocation13 + $0x914] sm:$0xf]
    %v2791 = vld [vmem:[#allocation13 + $0x930] sm:$0xf]
    %v2792 = vld [vmem:[#allocation13 + $0x94c] sm:$0xf]
    %v2793 = vld [vmem:[#allocation13 + $0x968] sm:$0xf]
    %v2794 = vld [vmem:[#allocation13 + $0x984] sm:$0xf]
    %v2795 = vld [vmem:[#allocation13 + $0x9a0] sm:$0xf]
    %v2796 = vld [vmem:[#allocation13 + $0x9bc] sm:$0xf]
    %v2797 = vld [vmem:[#allocation13 + $0x9d8] sm:$0xf]
    %v2798 = vld [vmem:[#allocation13 + $0x9f4] sm:$0xf]
    %v2799 = vld [vmem:[#allocation13 + $0xa10] sm:$0xf]
    %v2800 = vld [vmem:[#allocation13 + $0xa2c] sm:$0xf]
    %v2801 = vld [vmem:[#allocation13 + $0xa48] sm:$0xf]
    %v2802 = vld [vmem:[#allocation13 + $0xa64] sm:$0xf]
    %v2803 = vld [vmem:[#allocation13 + $0xa80] sm:$0xf]
    %v2804 = vld [vmem:[#allocation13 + $0xa9c] sm:$0xf]
    %v2805 = vld [vmem:[#allocation13 + $0xab8] sm:$0xf]
    %v2806 = vld [vmem:[#allocation13 + $0xad4] sm:$0xf]
    %v2807 = vld [vmem:[#allocation13 + $0xaf0] sm:$0xf]
    %v2808 = vld [vmem:[#allocation13 + $0xb0c] sm:$0xf]
    %v2809 = vld [vmem:[#allocation13 + $0xb28] sm:$0xf]
    %v2810 = vld [vmem:[#allocation13 + $0xb44] sm:$0xf]
    %v2811 = vld [vmem:[#allocation13 + $0xb60] sm:$0xf]
    %v2812 = vld [vmem:[#allocation13 + $0xb7c] sm:$0xf]
    %v2813 = vld [vmem:[#allocation13 + $0xb98] sm:$0xf]
    %v2814 = vld [vmem:[#allocation13 + $0xbb4] sm:$0xf]
    %v2815 = vld [vmem:[#allocation13 + $0xbd0] sm:$0xf]
    %v2816 = vld [vmem:[#allocation13 + $0xbec] sm:$0xf]
    %v2817 = vld [vmem:[#allocation13 + $0xc08] sm:$0xf]
    %v2818 = vld [vmem:[#allocation13 + $0xc24] sm:$0xf]
    %v2819 = vld [vmem:[#allocation13 + $0xc40] sm:$0xf]
    %v2820 = vld [vmem:[#allocation13 + $0xc5c] sm:$0xf]
    %v2821 = vld [vmem:[#allocation13 + $0xc78] sm:$0xf]
    %v2822 = vld [vmem:[#allocation13 + $0xc94] sm:$0xf]
    %v2823 = vld [vmem:[#allocation13 + $0xcb0] sm:$0xf]
    %v2824 = vld [vmem:[#allocation13 + $0xccc] sm:$0xf]
    %v2825 = vld [vmem:[#allocation13 + $0xce8] sm:$0xf]
    %v2826 = vld [vmem:[#allocation13 + $0xd04] sm:$0xf]
    %v2827 = vld [vmem:[#allocation13 + $0xd20] sm:$0xf]
    %v2828 = vld [vmem:[#allocation13 + $0xd3c] sm:$0xf]
    %v2829 = vld [vmem:[#allocation13 + $0xd58] sm:$0xf]
    %v2830 = vld [vmem:[#allocation13 + $0xd74] sm:$0xf]
    %v2831 = vld [vmem:[#allocation13 + $0xd90] sm:$0xf]
    %v2832 = vld [vmem:[#allocation13 + $0xdac] sm:$0xf]
    %v2833 = vld [vmem:[#allocation13 + $0xdc8] sm:$0xf]
    %v2834 = vld [vmem:[#allocation13 + $0xde4] sm:$0xf]
    %v2835 = vld [vmem:[#allocation14] sm:$0x1]
    %v2837 = vlaneseq
    %v2838 = vshrl.u32 %v2837, 7
    %v2839 = vsub.s32 0, %v2838
    %v2840 = vrot.slane %v2835, %v2839
    %v2970 = vunpack.c.l.b16 %v2707
    %v2971 = vunpack.c.l.b16 %v2708
    %v2972 = vunpack.c.l.b16 %v2709
    %v2973 = vunpack.c.l.b16 %v2710
    %v2974 = vunpack.c.l.b16 %v2711
    %v2975 = vunpack.c.l.b16 %v2712
    %v2976 = vunpack.c.l.b16 %v2713
    %v2977 = vunpack.c.l.b16 %v2714
    %v2978 = vunpack.c.l.b16 %v2715
    %v2979 = vunpack.c.l.b16 %v2716
    %v2980 = vunpack.c.l.b16 %v2717
    %v2981 = vunpack.c.l.b16 %v2718
    %v2982 = vunpack.c.l.b16 %v2719
    %v2983 = vunpack.c.l.b16 %v2720
    %v2984 = vunpack.c.l.b16 %v2721
    %v2985 = vunpack.c.l.b16 %v2722
    %v2986 = vunpack.c.l.b16 %v2723
    %v2987 = vunpack.c.l.b16 %v2724
    %v2988 = vunpack.c.l.b16 %v2725
    %v2989 = vunpack.c.l.b16 %v2726
    %v2990 = vunpack.c.l.b16 %v2727
    %v2991 = vunpack.c.l.b16 %v2728
    %v2992 = vunpack.c.l.b16 %v2729
    %v2993 = vunpack.c.l.b16 %v2730
    %v2994 = vunpack.c.l.b16 %v2731
    %v2995 = vunpack.c.l.b16 %v2732
    %v2996 = vunpack.c.l.b16 %v2733
    %v2997 = vunpack.c.l.b16 %v2734
    %v2998 = vunpack.c.l.b16 %v2735
    %v2999 = vunpack.c.l.b16 %v2736
    %v3000 = vunpack.c.l.b16 %v2737
    %v3001 = vunpack.c.l.b16 %v2738
    %v3002 = vunpack.c.l.b16 %v2739
    %v3003 = vunpack.c.l.b16 %v2740
    %v3004 = vunpack.c.l.b16 %v2741
    %v3005 = vunpack.c.l.b16 %v2742
    %v3006 = vunpack.c.l.b16 %v2743
    %v3007 = vunpack.c.l.b16 %v2744
    %v3008 = vunpack.c.l.b16 %v2745
    %v3009 = vunpack.c.l.b16 %v2746
    %v3010 = vunpack.c.l.b16 %v2747
    %v3011 = vunpack.c.l.b16 %v2748
    %v3012 = vunpack.c.l.b16 %v2749
    %v3013 = vunpack.c.l.b16 %v2750
    %v3014 = vunpack.c.l.b16 %v2751
    %v3015 = vunpack.c.l.b16 %v2752
    %v3016 = vunpack.c.l.b16 %v2753
    %v3017 = vunpack.c.l.b16 %v2754
    %v3018 = vunpack.c.l.b16 %v2755
    %v3019 = vunpack.c.l.b16 %v2756
    %v3020 = vunpack.c.l.b16 %v2757
    %v3021 = vunpack.c.l.b16 %v2758
    %v3022 = vunpack.c.l.b16 %v2759
    %v3023 = vunpack.c.l.b16 %v2760
    %v3024 = vunpack.c.l.b16 %v2761
    %v3025 = vunpack.c.l.b16 %v2762
    %v3026 = vunpack.c.l.b16 %v2763
    %v3027 = vunpack.c.l.b16 %v2764
    %v3028 = vunpack.c.l.b16 %v2765
    %v3029 = vunpack.c.l.b16 %v2766
    %v3030 = vunpack.c.l.b16 %v2767
    %v3031 = vunpack.c.l.b16 %v2768
    %v3032 = vunpack.c.l.b16 %v2769
    %v3033 = vunpack.c.l.b16 %v2770
    %v3034 = vunpack.c.l.b16 %v2771
    %v3035 = vunpack.c.l.b16 %v2772
    %v3036 = vunpack.c.l.b16 %v2773
    %v3037 = vunpack.c.l.b16 %v2774
    %v3038 = vunpack.c.l.b16 %v2775
    %v3039 = vunpack.c.l.b16 %v2776
    %v3040 = vunpack.c.l.b16 %v2777
    %v3041 = vunpack.c.l.b16 %v2778
    %v3042 = vunpack.c.l.b16 %v2779
    %v3043 = vunpack.c.l.b16 %v2780
    %v3044 = vunpack.c.l.b16 %v2781
    %v3045 = vunpack.c.l.b16 %v2782
    %v3046 = vunpack.c.l.b16 %v2783
    %v3047 = vunpack.c.l.b16 %v2784
    %v3048 = vunpack.c.l.b16 %v2785
    %v3049 = vunpack.c.l.b16 %v2786
    %v3050 = vunpack.c.l.b16 %v2787
    %v3051 = vunpack.c.l.b16 %v2788
    %v3052 = vunpack.c.l.b16 %v2789
    %v3053 = vunpack.c.l.b16 %v2790
    %v3054 = vunpack.c.l.b16 %v2791
    %v3055 = vunpack.c.l.b16 %v2792
    %v3056 = vunpack.c.l.b16 %v2793
    %v3057 = vunpack.c.l.b16 %v2794
    %v3058 = vunpack.c.l.b16 %v2795
    %v3059 = vunpack.c.l.b16 %v2796
    %v3060 = vunpack.c.l.b16 %v2797
    %v3061 = vunpack.c.l.b16 %v2798
    %v3062 = vunpack.c.l.b16 %v2799
    %v3063 = vunpack.c.l.b16 %v2800
    %v3064 = vunpack.c.l.b16 %v2801
    %v3065 = vunpack.c.l.b16 %v2802
    %v3066 = vunpack.c.l.b16 %v2803
    %v3067 = vunpack.c.l.b16 %v2804
    %v3068 = vunpack.c.l.b16 %v2805
    %v3069 = vunpack.c.l.b16 %v2806
    %v3070 = vunpack.c.l.b16 %v2807
    %v3071 = vunpack.c.l.b16 %v2808
    %v3072 = vunpack.c.l.b16 %v2809
    %v3073 = vunpack.c.l.b16 %v2810
    %v3074 = vunpack.c.l.b16 %v2811
    %v3075 = vunpack.c.l.b16 %v2812
    %v3076 = vunpack.c.l.b16 %v2813
    %v3077 = vunpack.c.l.b16 %v2814
    %v3078 = vunpack.c.l.b16 %v2815
    %v3079 = vunpack.c.l.b16 %v2816
    %v3080 = vunpack.c.l.b16 %v2817
    %v3081 = vunpack.c.l.b16 %v2818
    %v3082 = vunpack.c.l.b16 %v2819
    %v3083 = vunpack.c.l.b16 %v2820
    %v3084 = vunpack.c.l.b16 %v2821
    %v3085 = vunpack.c.l.b16 %v2822
    %v3086 = vunpack.c.l.b16 %v2823
    %v3087 = vunpack.c.l.b16 %v2824
    %v3088 = vunpack.c.l.b16 %v2825
    %v3089 = vunpack.c.l.b16 %v2826
    %v3090 = vunpack.c.l.b16 %v2827
    %v3091 = vunpack.c.l.b16 %v2828
    %v3092 = vunpack.c.l.b16 %v2829
    %v3093 = vunpack.c.l.b16 %v2830
    %v3094 = vunpack.c.l.b16 %v2831
    %v3095 = vunpack.c.l.b16 %v2832
    %v3096 = vunpack.c.l.b16 %v2833
    %v3097 = vunpack.c.l.b16 %v2834
    %v3098 = vpack.c.b16 %v2971, %v2970
    %v3099 = vpack.c.b16 %v2973, %v2972
    %v3100 = vpack.c.b16 %v2975, %v2974
    %v3101 = vpack.c.b16 %v2977, %v2976
    %v3102 = vpack.c.b16 %v2979, %v2978
    %v3103 = vpack.c.b16 %v2981, %v2980
    %v3104 = vpack.c.b16 %v2983, %v2982
    %v3105 = vpack.c.b16 %v2985, %v2984
    %v3106 = vpack.c.b16 %v2987, %v2986
    %v3107 = vpack.c.b16 %v2989, %v2988
    %v3108 = vpack.c.b16 %v2991, %v2990
    %v3109 = vpack.c.b16 %v2993, %v2992
    %v3110 = vpack.c.b16 %v2995, %v2994
    %v3111 = vpack.c.b16 %v2997, %v2996
    %v3112 = vpack.c.b16 %v2999, %v2998
    %v3113 = vpack.c.b16 %v3001, %v3000
    %v3114 = vpack.c.b16 %v3003, %v3002
    %v3115 = vpack.c.b16 %v3005, %v3004
    %v3116 = vpack.c.b16 %v3007, %v3006
    %v3117 = vpack.c.b16 %v3009, %v3008
    %v3118 = vpack.c.b16 %v3011, %v3010
    %v3119 = vpack.c.b16 %v3013, %v3012
    %v3120 = vpack.c.b16 %v3015, %v3014
    %v3121 = vpack.c.b16 %v3017, %v3016
    %v3122 = vpack.c.b16 %v3019, %v3018
    %v3123 = vpack.c.b16 %v3021, %v3020
    %v3124 = vpack.c.b16 %v3023, %v3022
    %v3125 = vpack.c.b16 %v3025, %v3024
    %v3126 = vpack.c.b16 %v3027, %v3026
    %v3127 = vpack.c.b16 %v3029, %v3028
    %v3128 = vpack.c.b16 %v3031, %v3030
    %v3129 = vpack.c.b16 %v3033, %v3032
    %v3130 = vpack.c.b16 %v3035, %v3034
    %v3131 = vpack.c.b16 %v3037, %v3036
    %v3132 = vpack.c.b16 %v3039, %v3038
    %v3133 = vpack.c.b16 %v3041, %v3040
    %v3134 = vpack.c.b16 %v3043, %v3042
    %v3135 = vpack.c.b16 %v3045, %v3044
    %v3136 = vpack.c.b16 %v3047, %v3046
    %v3137 = vpack.c.b16 %v3049, %v3048
    %v3138 = vpack.c.b16 %v3051, %v3050
    %v3139 = vpack.c.b16 %v3053, %v3052
    %v3140 = vpack.c.b16 %v3055, %v3054
    %v3141 = vpack.c.b16 %v3057, %v3056
    %v3142 = vpack.c.b16 %v3059, %v3058
    %v3143 = vpack.c.b16 %v3061, %v3060
    %v3144 = vpack.c.b16 %v3063, %v3062
    %v3145 = vpack.c.b16 %v3065, %v3064
    %v3146 = vpack.c.b16 %v3067, %v3066
    %v3147 = vpack.c.b16 %v3069, %v3068
    %v3148 = vpack.c.b16 %v3071, %v3070
    %v3149 = vpack.c.b16 %v3073, %v3072
    %v3150 = vpack.c.b16 %v3075, %v3074
    %v3151 = vpack.c.b16 %v3077, %v3076
    %v3152 = vpack.c.b16 %v3079, %v3078
    %v3153 = vpack.c.b16 %v3081, %v3080
    %v3154 = vpack.c.b16 %v3083, %v3082
    %v3155 = vpack.c.b16 %v3085, %v3084
    %v3156 = vpack.c.b16 %v3087, %v3086
    %v3157 = vpack.c.b16 %v3089, %v3088
    %v3158 = vpack.c.b16 %v3091, %v3090
    %v3159 = vpack.c.b16 %v3093, %v3092
    %v3160 = vpack.c.b16 %v3095, %v3094
    %v3161 = vpack.c.b16 %v3097, %v3096
    %3226 = vmatprep.subr.bf16.mxu0 0
    %3227 = vmatpush1.bf16.msra.mxu0 %v3098
    %3228 = vmatprep.subr.bf16.mxu0 0
    %3229 = vmatpush1.bf16.msra.mxu0 %v3099
    %3230 = vmatprep.subr.bf16.mxu0 0
    %3231 = vmatpush1.bf16.msra.mxu0 %v3100
    %3232 = vmatprep.subr.bf16.mxu0 0
    %3233 = vmatpush1.bf16.msra.mxu0 %v3101
    %3234 = vmatprep.subr.bf16.mxu0 0
    %3235 = vmatpush1.bf16.msra.mxu0 %v3102
    %3236 = vmatprep.subr.bf16.mxu0 0
    %3237 = vmatpush1.bf16.msra.mxu0 %v3103
    %3238 = vmatprep.subr.bf16.mxu0 0
    %3239 = vmatpush1.bf16.msra.mxu0 %v3104
    %3240 = vmatprep.subr.bf16.mxu0 0
    %3241 = vmatpush1.bf16.msra.mxu0 %v3105
    %3242 = vmatprep.subr.bf16.mxu0 0
    %3243 = vmatpush1.bf16.msra.mxu0 %v3106
    %3244 = vmatprep.subr.bf16.mxu0 0
    %3245 = vmatpush1.bf16.msra.mxu0 %v3107
    %3246 = vmatprep.subr.bf16.mxu0 0
    %3247 = vmatpush1.bf16.msra.mxu0 %v3108
    %3248 = vmatprep.subr.bf16.mxu0 0
    %3249 = vmatpush1.bf16.msra.mxu0 %v3109
    %3250 = vmatprep.subr.bf16.mxu0 0
    %3251 = vmatpush1.bf16.msra.mxu0 %v3110
    %3252 = vmatprep.subr.bf16.mxu0 0
    %3253 = vmatpush1.bf16.msra.mxu0 %v3111
    %3254 = vmatprep.subr.bf16.mxu0 0
    %3255 = vmatpush1.bf16.msra.mxu0 %v3112
    %3256 = vmatprep.subr.bf16.mxu0 0
    %3257 = vmatpush1.bf16.msra.mxu0 %v3113
    %3258 = vmatprep.mubr.bf16.mxu0 %v2700
    %3259 = vmatmul.mubr.bf16.gmra.mrb[0].mxu0 %v2699
    %v3260 = vpop.f32.mrb[0].mxu0
    %v3261 = vadd.f32 %v2840, %v3260
    %v3262 = vpop.f32.mrb[0].mxu0
    %v3263 = vpop.f32.mrb[0].mxu0
    %v3264 = vpop.f32.mrb[0].mxu0
    %3265 = vdwg.mxu0
    %3266 = vmatprep.subr.bf16.mxu0 0
    %3267 = vmatpush1.bf16.msra.mxu0 %v3114
    %3268 = vmatprep.subr.bf16.mxu0 0
    %3269 = vmatpush1.bf16.msra.mxu0 %v3115
    %3270 = vmatprep.subr.bf16.mxu0 0
    %3271 = vmatpush1.bf16.msra.mxu0 %v3116
    %3272 = vmatprep.subr.bf16.mxu0 0
    %3273 = vmatpush1.bf16.msra.mxu0 %v3117
    %3274 = vmatprep.subr.bf16.mxu0 0
    %3275 = vmatpush1.bf16.msra.mxu0 %v3118
    %3276 = vmatprep.subr.bf16.mxu0 0
    %3277 = vmatpush1.bf16.msra.mxu0 %v3119
    %3278 = vmatprep.subr.bf16.mxu0 0
    %3279 = vmatpush1.bf16.msra.mxu0 %v3120
    %3280 = vmatprep.subr.bf16.mxu0 0
    %3281 = vmatpush1.bf16.msra.mxu0 %v3121
    %3282 = vmatprep.subr.bf16.mxu0 0
    %3283 = vmatpush1.bf16.msra.mxu0 %v3122
    %3284 = vmatprep.subr.bf16.mxu0 0
    %3285 = vmatpush1.bf16.msra.mxu0 %v3123
    %3286 = vmatprep.subr.bf16.mxu0 0
    %3287 = vmatpush1.bf16.msra.mxu0 %v3124
    %3288 = vmatprep.subr.bf16.mxu0 0
    %3289 = vmatpush1.bf16.msra.mxu0 %v3125
    %3290 = vmatprep.subr.bf16.mxu0 0
    %3291 = vmatpush1.bf16.msra.mxu0 %v3126
    %3292 = vmatprep.subr.bf16.mxu0 0
    %3293 = vmatpush1.bf16.msra.mxu0 %v3127
    %3294 = vmatprep.subr.bf16.mxu0 0
    %3295 = vmatpush1.bf16.msra.mxu0 %v3128
    %3296 = vmatprep.subr.bf16.mxu0 0
    %3297 = vmatpush1.bf16.msra.mxu0 %v3129
    %3298 = vmatprep.mubr.bf16.mxu0 %v2702
    %3299 = vmatmul.mubr.bf16.gmra.mrb[0].mxu0 %v2701
    %v3300 = vpop.f32.mrb[0].mxu0
    %v3301 = vadd.f32 %v3261, %v3300
    %v3302 = vpop.f32.mrb[0].mxu0
    %v3303 = vpop.f32.mrb[0].mxu0
    %v3304 = vpop.f32.mrb[0].mxu0
    %3305 = vdwg.mxu0
    %3306 = vmatprep.subr.bf16.mxu0 0
    %3307 = vmatpush1.bf16.msra.mxu0 %v3130
    %3308 = vmatprep.subr.bf16.mxu0 0
    %3309 = vmatpush1.bf16.msra.mxu0 %v3131
    %3310 = vmatprep.subr.bf16.mxu0 0
    %3311 = vmatpush1.bf16.msra.mxu0 %v3132
    %3312 = vmatprep.subr.bf16.mxu0 0
    %3313 = vmatpush1.bf16.msra.mxu0 %v3133
    %3314 = vmatprep.subr.bf16.mxu0 0
    %3315 = vmatpush1.bf16.msra.mxu0 %v3134
    %3316 = vmatprep.subr.bf16.mxu0 0
    %3317 = vmatpush1.bf16.msra.mxu0 %v3135
    %3318 = vmatprep.subr.bf16.mxu0 0
    %3319 = vmatpush1.bf16.msra.mxu0 %v3136
    %3320 = vmatprep.subr.bf16.mxu0 0
    %3321 = vmatpush1.bf16.msra.mxu0 %v3137
    %3322 = vmatprep.subr.bf16.mxu0 0
    %3323 = vmatpush1.bf16.msra.mxu0 %v3138
    %3324 = vmatprep.subr.bf16.mxu0 0
    %3325 = vmatpush1.bf16.msra.mxu0 %v3139
    %3326 = vmatprep.subr.bf16.mxu0 0
    %3327 = vmatpush1.bf16.msra.mxu0 %v3140
    %3328 = vmatprep.subr.bf16.mxu0 0
    %3329 = vmatpush1.bf16.msra.mxu0 %v3141
    %3330 = vmatprep.subr.bf16.mxu0 0
    %3331 = vmatpush1.bf16.msra.mxu0 %v3142
    %3332 = vmatprep.subr.bf16.mxu0 0
    %3333 = vmatpush1.bf16.msra.mxu0 %v3143
    %3334 = vmatprep.subr.bf16.mxu0 0
    %3335 = vmatpush1.bf16.msra.mxu0 %v3144
    %3336 = vmatprep.subr.bf16.mxu0 0
    %3337 = vmatpush1.bf16.msra.mxu0 %v3145
    %3338 = vmatprep.mubr.bf16.mxu0 %v2704
    %3339 = vmatmul.mubr.bf16.gmra.mrb[0].mxu0 %v2703
    %v3340 = vpop.f32.mrb[0].mxu0
    %v3341 = vadd.f32 %v3301, %v3340
    %v3342 = vpop.f32.mrb[0].mxu0
    %v3343 = vpop.f32.mrb[0].mxu0
    %v3344 = vpop.f32.mrb[0].mxu0
    %3345 = vdwg.mxu0
    %3346 = vmatprep.subr.bf16.mxu0 0
    %3347 = vmatpush1.bf16.msra.mxu0 %v3146
    %3348 = vmatprep.subr.bf16.mxu0 0
    %3349 = vmatpush1.bf16.msra.mxu0 %v3147
    %3350 = vmatprep.subr.bf16.mxu0 0
    %3351 = vmatpush1.bf16.msra.mxu0 %v3148
    %3352 = vmatprep.subr.bf16.mxu0 0
    %3353 = vmatpush1.bf16.msra.mxu0 %v3149
    %3354 = vmatprep.subr.bf16.mxu0 0
    %3355 = vmatpush1.bf16.msra.mxu0 %v3150
    %3356 = vmatprep.subr.bf16.mxu0 0
    %3357 = vmatpush1.bf16.msra.mxu0 %v3151
    %3358 = vmatprep.subr.bf16.mxu0 0
    %3359 = vmatpush1.bf16.msra.mxu0 %v3152
    %3360 = vmatprep.subr.bf16.mxu0 0
    %3361 = vmatpush1.bf16.msra.mxu0 %v3153
    %3362 = vmatprep.subr.bf16.mxu0 0
    %3363 = vmatpush1.bf16.msra.mxu0 %v3154
    %3364 = vmatprep.subr.bf16.mxu0 0
    %3365 = vmatpush1.bf16.msra.mxu0 %v3155
    %3366 = vmatprep.subr.bf16.mxu0 0
    %3367 = vmatpush1.bf16.msra.mxu0 %v3156
    %3368 = vmatprep.subr.bf16.mxu0 0
    %3369 = vmatpush1.bf16.msra.mxu0 %v3157
    %3370 = vmatprep.subr.bf16.mxu0 0
    %3371 = vmatpush1.bf16.msra.mxu0 %v3158
    %3372 = vmatprep.subr.bf16.mxu0 0
    %3373 = vmatpush1.bf16.msra.mxu0 %v3159
    %3374 = vmatprep.subr.bf16.mxu0 0
    %3375 = vmatpush1.bf16.msra.mxu0 %v3160
    %3376 = vmatprep.subr.bf16.mxu0 0
    %3377 = vmatpush1.bf16.msra.mxu0 %v3161
    %3378 = vmatprep.mubr.bf16.mxu0 %v2706
    %3379 = vmatmul.mubr.bf16.gmra.mrb[0].mxu0 %v2705
    %v3380 = vpop.f32.mrb[0].mxu0
    %v3381 = vadd.f32 %v3341, %v3380
    %v3382 = vpop.f32.mrb[0].mxu0
    %v3383 = vpop.f32.mrb[0].mxu0
    %v3384 = vpop.f32.mrb[0].mxu0
    %3385 = vdwg.mxu0
    %v3386 = vtanh.pop %v3381
    %v3387 = vpack.c.bf16 %v3386, %v3386
    %3388 = vst [vmem:[#allocation16] sm:$0xf] %v3387
    %v3389 = vld [vmem:[#allocation13 + $0x4] sm:$0xf]
    %v3390 = vld [vmem:[#allocation13 + $0x20] sm:$0xf]
    %v3391 = vld [vmem:[#allocation13 + $0x3c] sm:$0xf]
    %v3392 = vld [vmem:[#allocation13 + $0x58] sm:$0xf]
    %v3393 = vld [vmem:[#allocation13 + $0x74] sm:$0xf]
    %v3394 = vld [vmem:[#allocation13 + $0x90] sm:$0xf]
    %v3395 = vld [vmem:[#allocation13 + $0xac] sm:$0xf]
    %v3396 = vld [vmem:[#allocation13 + $0xc8] sm:$0xf]
    %v3397 = vld [vmem:[#allocation13 + $0xe4] sm:$0xf]
    %v3398 = vld [vmem:[#allocation13 + $0x100] sm:$0xf]
    %v3399 = vld [vmem:[#allocation13 + $0x11c] sm:$0xf]
    %v3400 = vld [vmem:[#allocation13 + $0x138] sm:$0xf]
    %v3401 = vld [vmem:[#allocation13 + $0x154] sm:$0xf]
    %v3402 = vld [vmem:[#allocation13 + $0x170] sm:$0xf]
    %v3403 = vld [vmem:[#allocation13 + $0x18c] sm:$0xf]
    %v3404 = vld [vmem:[#allocation13 + $0x1a8] sm:$0xf]
    %v3405 = vld [vmem:[#allocation13 + $0x1c4] sm:$0xf]
    %v3406 = vld [vmem:[#allocation13 + $0x1e0] sm:$0xf]
    %v3407 = vld [vmem:[#allocation13 + $0x1fc] sm:$0xf]
    %v3408 = vld [vmem:[#allocation13 + $0x218] sm:$0xf]
    %v3409 = vld [vmem:[#allocation13 + $0x234] sm:$0xf]
    %v3410 = vld [vmem:[#allocation13 + $0x250] sm:$0xf]
    %v3411 = vld [vmem:[#allocation13 + $0x26c] sm:$0xf]
    %v3412 = vld [vmem:[#allocation13 + $0x288] sm:$0xf]
    %v3413 = vld [vmem:[#allocation13 + $0x2a4] sm:$0xf]
    %v3414 = vld [vmem:[#allocation13 + $0x2c0] sm:$0xf]
    %v3415 = vld [vmem:[#allocation13 + $0x2dc] sm:$0xf]
    %v3416 = vld [vmem:[#allocation13 + $0x2f8] sm:$0xf]
    %v3417 = vld [vmem:[#allocation13 + $0x314] sm:$0xf]
    %v3418 = vld [vmem:[#allocation13 + $0x330] sm:$0xf]
    %v3419 = vld [vmem:[#allocation13 + $0x34c] sm:$0xf]
    %v3420 = vld [vmem:[#allocation13 + $0x368] sm:$0xf]
    %v3421 = vld [vmem:[#allocation13 + $0x384] sm:$0xf]
    %v3422 = vld [vmem:[#allocation13 + $0x3a0] sm:$0xf]
    %v3423 = vld [vmem:[#allocation13 + $0x3bc] sm:$0xf]
    %v3424 = vld [vmem:[#allocation13 + $0x3d8] sm:$0xf]
    %v3425 = vld [vmem:[#allocation13 + $0x3f4] sm:$0xf]
    %v3426 = vld [vmem:[#allocation13 + $0x410] sm:$0xf]
    %v3427 = vld [vmem:[#allocation13 + $0x42c] sm:$0xf]
    %v3428 = vld [vmem:[#allocation13 + $0x448] sm:$0xf]
    %v3429 = vld [vmem:[#allocation13 + $0x464] sm:$0xf]
    %v3430 = vld [vmem:[#allocation13 + $0x480] sm:$0xf]
    %v3431 = vld [vmem:[#allocation13 + $0x49c] sm:$0xf]
    %v3432 = vld [vmem:[#allocation13 + $0x4b8] sm:$0xf]
    %v3433 = vld [vmem:[#allocation13 + $0x4d4] sm:$0xf]
    %v3434 = vld [vmem:[#allocation13 + $0x4f0] sm:$0xf]
    %v3435 = vld [vmem:[#allocation13 + $0x50c] sm:$0xf]
    %v3436 = vld [vmem:[#allocation13 + $0x528] sm:$0xf]
    %v3437 = vld [vmem:[#allocation13 + $0x544] sm:$0xf]
    %v3438 = vld [vmem:[#allocation13 + $0x560] sm:$0xf]
    %v3439 = vld [vmem:[#allocation13 + $0x57c] sm:$0xf]
    %v3440 = vld [vmem:[#allocation13 + $0x598] sm:$0xf]
    %v3441 = vld [vmem:[#allocation13 + $0x5b4] sm:$0xf]
    %v3442 = vld [vmem:[#allocation13 + $0x5d0] sm:$0xf]
    %v3443 = vld [vmem:[#allocation13 + $0x5ec] sm:$0xf]
    %v3444 = vld [vmem:[#allocation13 + $0x608] sm:$0xf]
    %v3445 = vld [vmem:[#allocation13 + $0x624] sm:$0xf]
    %v3446 = vld [vmem:[#allocation13 + $0x640] sm:$0xf]
    %v3447 = vld [vmem:[#allocation13 + $0x65c] sm:$0xf]
    %v3448 = vld [vmem:[#allocation13 + $0x678] sm:$0xf]
    %v3449 = vld [vmem:[#allocation13 + $0x694] sm:$0xf]
    %v3450 = vld [vmem:[#allocation13 + $0x6b0] sm:$0xf]
    %v3451 = vld [vmem:[#allocation13 + $0x6cc] sm:$0xf]
    %v3452 = vld [vmem:[#allocation13 + $0x6e8] sm:$0xf]
    %v3453 = vld [vmem:[#allocation13 + $0x704] sm:$0xf]
    %v3454 = vld [vmem:[#allocation13 + $0x720] sm:$0xf]
    %v3455 = vld [vmem:[#allocation13 + $0x73c] sm:$0xf]
    %v3456 = vld [vmem:[#allocation13 + $0x758] sm:$0xf]
    %v3457 = vld [vmem:[#allocation13 + $0x774] sm:$0xf]
    %v3458 = vld [vmem:[#allocation13 + $0x790] sm:$0xf]
    %v3459 = vld [vmem:[#allocation13 + $0x7ac] sm:$0xf]
    %v3460 = vld [vmem:[#allocation13 + $0x7c8] sm:$0xf]
    %v3461 = vld [vmem:[#allocation13 + $0x7e4] sm:$0xf]
    %v3462 = vld [vmem:[#allocation13 + $0x800] sm:$0xf]
    %v3463 = vld [vmem:[#allocation13 + $0x81c] sm:$0xf]
    %v3464 = vld [vmem:[#allocation13 + $0x838] sm:$0xf]
    %v3465 = vld [vmem:[#allocation13 + $0x854] sm:$0xf]
    %v3466 = vld [vmem:[#allocation13 + $0x870] sm:$0xf]
    %v3467 = vld [vmem:[#allocation13 + $0x88c] sm:$0xf]
    %v3468 = vld [vmem:[#allocation13 + $0x8a8] sm:$0xf]
    %v3469 = vld [vmem:[#allocation13 + $0x8c4] sm:$0xf]
    %v3470 = vld [vmem:[#allocation13 + $0x8e0] sm:$0xf]
    %v3471 = vld [vmem:[#allocation13 + $0x8fc] sm:$0xf]
    %v3472 = vld [vmem:[#allocation13 + $0x918] sm:$0xf]
    %v3473 = vld [vmem:[#allocation13 + $0x934] sm:$0xf]
    %v3474 = vld [vmem:[#allocation13 + $0x950] sm:$0xf]
    %v3475 = vld [vmem:[#allocation13 + $0x96c] sm:$0xf]
    %v3476 = vld [vmem:[#allocation13 + $0x988] sm:$0xf]
    %v3477 = vld [vmem:[#allocation13 + $0x9a4] sm:$0xf]
    %v3478 = vld [vmem:[#allocation13 + $0x9c0] sm:$0xf]
    %v3479 = vld [vmem:[#allocation13 + $0x9dc] sm:$0xf]
    %v3480 = vld [vmem:[#allocation13 + $0x9f8] sm:$0xf]
    %v3481 = vld [vmem:[#allocation13 + $0xa14] sm:$0xf]
    %v3482 = vld [vmem:[#allocation13 + $0xa30] sm:$0xf]
    %v3483 = vld [vmem:[#allocation13 + $0xa4c] sm:$0xf]
    %v3484 = vld [vmem:[#allocation13 + $0xa68] sm:$0xf]
    %v3485 = vld [vmem:[#allocation13 + $0xa84] sm:$0xf]
    %v3486 = vld [vmem:[#allocation13 + $0xaa0] sm:$0xf]
    %v3487 = vld [vmem:[#allocation13 + $0xabc] sm:$0xf]
    %v3488 = vld [vmem:[#allocation13 + $0xad8] sm:$0xf]
    %v3489 = vld [vmem:[#allocation13 + $0xaf4] sm:$0xf]
    %v3490 = vld [vmem:[#allocation13 + $0xb10] sm:$0xf]
    %v3491 = vld [vmem:[#allocation13 + $0xb2c] sm:$0xf]
    %v3492 = vld [vmem:[#allocation13 + $0xb48] sm:$0xf]
    %v3493 = vld [vmem:[#allocation13 + $0xb64] sm:$0xf]
    %v3494 = vld [vmem:[#allocation13 + $0xb80] sm:$0xf]
    %v3495 = vld [vmem:[#allocation13 + $0xb9c] sm:$0xf]
    %v3496 = vld [vmem:[#allocation13 + $0xbb8] sm:$0xf]
    %v3497 = vld [vmem:[#allocation13 + $0xbd4] sm:$0xf]
    %v3498 = vld [vmem:[#allocation13 + $0xbf0] sm:$0xf]
    %v3499 = vld [vmem:[#allocation13 + $0xc0c] sm:$0xf]
    %v3500 = vld [vmem:[#allocation13 + $0xc28] sm:$0xf]
    %v3501 = vld [vmem:[#allocation13 + $0xc44] sm:$0xf]
    %v3502 = vld [vmem:[#allocation13 + $0xc60] sm:$0xf]
    %v3503 = vld [vmem:[#allocation13 + $0xc7c] sm:$0xf]
    %v3504 = vld [vmem:[#allocation13 + $0xc98] sm:$0xf]
    %v3505 = vld [vmem:[#allocation13 + $0xcb4] sm:$0xf]
    %v3506 = vld [vmem:[#allocation13 + $0xcd0] sm:$0xf]
    %v3507 = vld [vmem:[#allocation13 + $0xcec] sm:$0xf]
    %v3508 = vld [vmem:[#allocation13 + $0xd08] sm:$0xf]
    %v3509 = vld [vmem:[#allocation13 + $0xd24] sm:$0xf]
    %v3510 = vld [vmem:[#allocation13 + $0xd40] sm:$0xf]
    %v3511 = vld [vmem:[#allocation13 + $0xd5c] sm:$0xf]
    %v3512 = vld [vmem:[#allocation13 + $0xd78] sm:$0xf]
    %v3513 = vld [vmem:[#allocation13 + $0xd94] sm:$0xf]
    %v3514 = vld [vmem:[#allocation13 + $0xdb0] sm:$0xf]
    %v3515 = vld [vmem:[#allocation13 + $0xdcc] sm:$0xf]
    %v3516 = vld [vmem:[#allocation13 + $0xde8] sm:$0xf]
    %v3517 = vld [vmem:[#allocation14 + $0x1] sm:$0x1]
    %v3519 = vlaneseq
    %v3520 = vshrl.u32 %v3519, 7
    %v3521 = vsub.s32 0, %v3520
    %v3522 = vrot.slane %v3517, %v3521
    %v3652 = vunpack.c.l.b16 %v3389
    %v3653 = vunpack.c.l.b16 %v3390
    %v3654 = vunpack.c.l.b16 %v3391
    %v3655 = vunpack.c.l.b16 %v3392
    %v3656 = vunpack.c.l.b16 %v3393
    %v3657 = vunpack.c.l.b16 %v3394
    %v3658 = vunpack.c.l.b16 %v3395
    %v3659 = vunpack.c.l.b16 %v3396
    %v3660 = vunpack.c.l.b16 %v3397
    %v3661 = vunpack.c.l.b16 %v3398
    %v3662 = vunpack.c.l.b16 %v3399
    %v3663 = vunpack.c.l.b16 %v3400
    %v3664 = vunpack.c.l.b16 %v3401
    %v3665 = vunpack.c.l.b16 %v3402
    %v3666 = vunpack.c.l.b16 %v3403
    %v3667 = vunpack.c.l.b16 %v3404
    %v3668 = vunpack.c.l.b16 %v3405
    %v3669 = vunpack.c.l.b16 %v3406
    %v3670 = vunpack.c.l.b16 %v3407
    %v3671 = vunpack.c.l.b16 %v3408
    %v3672 = vunpack.c.l.b16 %v3409
    %v3673 = vunpack.c.l.b16 %v3410
    %v3674 = vunpack.c.l.b16 %v3411
    %v3675 = vunpack.c.l.b16 %v3412
    %v3676 = vunpack.c.l.b16 %v3413
    %v3677 = vunpack.c.l.b16 %v3414
    %v3678 = vunpack.c.l.b16 %v3415
    %v3679 = vunpack.c.l.b16 %v3416
    %v3680 = vunpack.c.l.b16 %v3417
    %v3681 = vunpack.c.l.b16 %v3418
    %v3682 = vunpack.c.l.b16 %v3419
    %v3683 = vunpack.c.l.b16 %v3420
    %v3684 = vunpack.c.l.b16 %v3421
    %v3685 = vunpack.c.l.b16 %v3422
    %v3686 = vunpack.c.l.b16 %v3423
    %v3687 = vunpack.c.l.b16 %v3424
    %v3688 = vunpack.c.l.b16 %v3425
    %v3689 = vunpack.c.l.b16 %v3426
    %v3690 = vunpack.c.l.b16 %v3427
    %v3691 = vunpack.c.l.b16 %v3428
    %v3692 = vunpack.c.l.b16 %v3429
    %v3693 = vunpack.c.l.b16 %v3430
    %v3694 = vunpack.c.l.b16 %v3431
    %v3695 = vunpack.c.l.b16 %v3432
    %v3696 = vunpack.c.l.b16 %v3433
    %v3697 = vunpack.c.l.b16 %v3434
    %v3698 = vunpack.c.l.b16 %v3435
    %v3699 = vunpack.c.l.b16 %v3436
    %v3700 = vunpack.c.l.b16 %v3437
    %v3701 = vunpack.c.l.b16 %v3438
    %v3702 = vunpack.c.l.b16 %v3439
    %v3703 = vunpack.c.l.b16 %v3440
    %v3704 = vunpack.c.l.b16 %v3441
    %v3705 = vunpack.c.l.b16 %v3442
    %v3706 = vunpack.c.l.b16 %v3443
    %v3707 = vunpack.c.l.b16 %v3444
    %v3708 = vunpack.c.l.b16 %v3445
    %v3709 = vunpack.c.l.b16 %v3446
    %v3710 = vunpack.c.l.b16 %v3447
    %v3711 = vunpack.c.l.b16 %v3448
    %v3712 = vunpack.c.l.b16 %v3449
    %v3713 = vunpack.c.l.b16 %v3450
    %v3714 = vunpack.c.l.b16 %v3451
    %v3715 = vunpack.c.l.b16 %v3452
    %v3716 = vunpack.c.l.b16 %v3453
    %v3717 = vunpack.c.l.b16 %v3454
    %v3718 = vunpack.c.l.b16 %v3455
    %v3719 = vunpack.c.l.b16 %v3456
    %v3720 = vunpack.c.l.b16 %v3457
    %v3721 = vunpack.c.l.b16 %v3458
    %v3722 = vunpack.c.l.b16 %v3459
    %v3723 = vunpack.c.l.b16 %v3460
    %v3724 = vunpack.c.l.b16 %v3461
    %v3725 = vunpack.c.l.b16 %v3462
    %v3726 = vunpack.c.l.b16 %v3463
    %v3727 = vunpack.c.l.b16 %v3464
    %v3728 = vunpack.c.l.b16 %v3465
    %v3729 = vunpack.c.l.b16 %v3466
    %v3730 = vunpack.c.l.b16 %v3467
    %v3731 = vunpack.c.l.b16 %v3468
    %v3732 = vunpack.c.l.b16 %v3469
    %v3733 = vunpack.c.l.b16 %v3470
    %v3734 = vunpack.c.l.b16 %v3471
    %v3735 = vunpack.c.l.b16 %v3472
    %v3736 = vunpack.c.l.b16 %v3473
    %v3737 = vunpack.c.l.b16 %v3474
    %v3738 = vunpack.c.l.b16 %v3475
    %v3739 = vunpack.c.l.b16 %v3476
    %v3740 = vunpack.c.l.b16 %v3477
    %v3741 = vunpack.c.l.b16 %v3478
    %v3742 = vunpack.c.l.b16 %v3479
    %v3743 = vunpack.c.l.b16 %v3480
    %v3744 = vunpack.c.l.b16 %v3481
    %v3745 = vunpack.c.l.b16 %v3482
    %v3746 = vunpack.c.l.b16 %v3483
    %v3747 = vunpack.c.l.b16 %v3484
    %v3748 = vunpack.c.l.b16 %v3485
    %v3749 = vunpack.c.l.b16 %v3486
    %v3750 = vunpack.c.l.b16 %v3487
    %v3751 = vunpack.c.l.b16 %v3488
    %v3752 = vunpack.c.l.b16 %v3489
    %v3753 = vunpack.c.l.b16 %v3490
    %v3754 = vunpack.c.l.b16 %v3491
    %v3755 = vunpack.c.l.b16 %v3492
    %v3756 = vunpack.c.l.b16 %v3493
    %v3757 = vunpack.c.l.b16 %v3494
    %v3758 = vunpack.c.l.b16 %v3495
    %v3759 = vunpack.c.l.b16 %v3496
    %v3760 = vunpack.c.l.b16 %v3497
    %v3761 = vunpack.c.l.b16 %v3498
    %v3762 = vunpack.c.l.b16 %v3499
    %v3763 = vunpack.c.l.b16 %v3500
    %v3764 = vunpack.c.l.b16 %v3501
    %v3765 = vunpack.c.l.b16 %v3502
    %v3766 = vunpack.c.l.b16 %v3503
    %v3767 = vunpack.c.l.b16 %v3504
    %v3768 = vunpack.c.l.b16 %v3505
    %v3769 = vunpack.c.l.b16 %v3506
    %v3770 = vunpack.c.l.b16 %v3507
    %v3771 = vunpack.c.l.b16 %v3508
    %v3772 = vunpack.c.l.b16 %v3509
    %v3773 = vunpack.c.l.b16 %v3510
    %v3774 = vunpack.c.l.b16 %v3511
    %v3775 = vunpack.c.l.b16 %v3512
    %v3776 = vunpack.c.l.b16 %v3513
    %v3777 = vunpack.c.l.b16 %v3514
    %v3778 = vunpack.c.l.b16 %v3515
    %v3779 = vunpack.c.l.b16 %v3516
    %v3780 = vpack.c.b16 %v3653, %v3652
    %v3781 = vpack.c.b16 %v3655, %v3654
    %v3782 = vpack.c.b16 %v3657, %v3656
    %v3783 = vpack.c.b16 %v3659, %v3658
    %v3784 = vpack.c.b16 %v3661, %v3660
    %v3785 = vpack.c.b16 %v3663, %v3662
    %v3786 = vpack.c.b16 %v3665, %v3664
    %v3787 = vpack.c.b16 %v3667, %v3666
    %v3788 = vpack.c.b16 %v3669, %v3668
    %v3789 = vpack.c.b16 %v3671, %v3670
    %v3790 = vpack.c.b16 %v3673, %v3672
    %v3791 = vpack.c.b16 %v3675, %v3674
    %v3792 = vpack.c.b16 %v3677, %v3676
    %v3793 = vpack.c.b16 %v3679, %v3678
    %v3794 = vpack.c.b16 %v3681, %v3680
    %v3795 = vpack.c.b16 %v3683, %v3682
    %v3796 = vpack.c.b16 %v3685, %v3684
    %v3797 = vpack.c.b16 %v3687, %v3686
    %v3798 = vpack.c.b16 %v3689, %v3688
    %v3799 = vpack.c.b16 %v3691, %v3690
    %v3800 = vpack.c.b16 %v3693, %v3692
    %v3801 = vpack.c.b16 %v3695, %v3694
    %v3802 = vpack.c.b16 %v3697, %v3696
    %v3803 = vpack.c.b16 %v3699, %v3698
    %v3804 = vpack.c.b16 %v3701, %v3700
    %v3805 = vpack.c.b16 %v3703, %v3702
    %v3806 = vpack.c.b16 %v3705, %v3704
    %v3807 = vpack.c.b16 %v3707, %v3706
    %v3808 = vpack.c.b16 %v3709, %v3708
    %v3809 = vpack.c.b16 %v3711, %v3710
    %v3810 = vpack.c.b16 %v3713, %v3712
    %v3811 = vpack.c.b16 %v3715, %v3714
    %v3812 = vpack.c.b16 %v3717, %v3716
    %v3813 = vpack.c.b16 %v3719, %v3718
    %v3814 = vpack.c.b16 %v3721, %v3720
    %v3815 = vpack.c.b16 %v3723, %v3722
    %v3816 = vpack.c.b16 %v3725, %v3724
    %v3817 = vpack.c.b16 %v3727, %v3726
    %v3818 = vpack.c.b16 %v3729, %v3728
    %v3819 = vpack.c.b16 %v3731, %v3730
    %v3820 = vpack.c.b16 %v3733, %v3732
    %v3821 = vpack.c.b16 %v3735, %v3734
    %v3822 = vpack.c.b16 %v3737, %v3736
    %v3823 = vpack.c.b16 %v3739, %v3738
    %v3824 = vpack.c.b16 %v3741, %v3740
    %v3825 = vpack.c.b16 %v3743, %v3742
    %v3826 = vpack.c.b16 %v3745, %v3744
    %v3827 = vpack.c.b16 %v3747, %v3746
    %v3828 = vpack.c.b16 %v3749, %v3748
    %v3829 = vpack.c.b16 %v3751, %v3750
    %v3830 = vpack.c.b16 %v3753, %v3752
    %v3831 = vpack.c.b16 %v3755, %v3754
    %v3832 = vpack.c.b16 %v3757, %v3756
    %v3833 = vpack.c.b16 %v3759, %v3758
    %v3834 = vpack.c.b16 %v3761, %v3760
    %v3835 = vpack.c.b16 %v3763, %v3762
    %v3836 = vpack.c.b16 %v3765, %v3764
    %v3837 = vpack.c.b16 %v3767, %v3766
    %v3838 = vpack.c.b16 %v3769, %v3768
    %v3839 = vpack.c.b16 %v3771, %v3770
    %v3840 = vpack.c.b16 %v3773, %v3772
    %v3841 = vpack.c.b16 %v3775, %v3774
    %v3842 = vpack.c.b16 %v3777, %v3776
    %v3843 = vpack.c.b16 %v3779, %v3778
    %3908 = vmatprep.subr.bf16.mxu0 0
    %3909 = vmatpush1.bf16.msra.mxu0 %v3780
    %3910 = vmatprep.subr.bf16.mxu0 0
    %3911 = vmatpush1.bf16.msra.mxu0 %v3781
    %3912 = vmatprep.subr.bf16.mxu0 0
    %3913 = vmatpush1.bf16.msra.mxu0 %v3782
    %3914 = vmatprep.subr.bf16.mxu0 0
    %3915 = vmatpush1.bf16.msra.mxu0 %v3783
    %3916 = vmatprep.subr.bf16.mxu0 0
    %3917 = vmatpush1.bf16.msra.mxu0 %v3784
    %3918 = vmatprep.subr.bf16.mxu0 0
    %3919 = vmatpush1.bf16.msra.mxu0 %v3785
    %3920 = vmatprep.subr.bf16.mxu0 0
    %3921 = vmatpush1.bf16.msra.mxu0 %v3786
    %3922 = vmatprep.subr.bf16.mxu0 0
    %3923 = vmatpush1.bf16.msra.mxu0 %v3787
    %3924 = vmatprep.subr.bf16.mxu0 0
    %3925 = vmatpush1.bf16.msra.mxu0 %v3788
    %3926 = vmatprep.subr.bf16.mxu0 0
    %3927 = vmatpush1.bf16.msra.mxu0 %v3789
    %3928 = vmatprep.subr.bf16.mxu0 0
    %3929 = vmatpush1.bf16.msra.mxu0 %v3790
    %3930 = vmatprep.subr.bf16.mxu0 0
    %3931 = vmatpush1.bf16.msra.mxu0 %v3791
    %3932 = vmatprep.subr.bf16.mxu0 0
    %3933 = vmatpush1.bf16.msra.mxu0 %v3792
    %3934 = vmatprep.subr.bf16.mxu0 0
    %3935 = vmatpush1.bf16.msra.mxu0 %v3793
    %3936 = vmatprep.subr.bf16.mxu0 0
    %3937 = vmatpush1.bf16.msra.mxu0 %v3794
    %3938 = vmatprep.subr.bf16.mxu0 0
    %3939 = vmatpush1.bf16.msra.mxu0 %v3795
    %3940 = vmatprep.mubr.bf16.mxu0 %v2700
    %3941 = vmatmul.mubr.bf16.gmra.mrb[0].mxu0 %v2699
    %v3942 = vpop.f32.mrb[0].mxu0
    %v3943 = vadd.f32 %v3522, %v3942
    %v3944 = vpop.f32.mrb[0].mxu0
    %v3945 = vpop.f32.mrb[0].mxu0
    %v3946 = vpop.f32.mrb[0].mxu0
    %3947 = vdwg.mxu0
    %3948 = vmatprep.subr.bf16.mxu0 0
    %3949 = vmatpush1.bf16.msra.mxu0 %v3796
    %3950 = vmatprep.subr.bf16.mxu0 0
    %3951 = vmatpush1.bf16.msra.mxu0 %v3797
    %3952 = vmatprep.subr.bf16.mxu0 0
    %3953 = vmatpush1.bf16.msra.mxu0 %v3798
    %3954 = vmatprep.subr.bf16.mxu0 0
    %3955 = vmatpush1.bf16.msra.mxu0 %v3799
    %3956 = vmatprep.subr.bf16.mxu0 0
    %3957 = vmatpush1.bf16.msra.mxu0 %v3800
    %3958 = vmatprep.subr.bf16.mxu0 0
    %3959 = vmatpush1.bf16.msra.mxu0 %v3801
    %3960 = vmatprep.subr.bf16.mxu0 0
    %3961 = vmatpush1.bf16.msra.mxu0 %v3802
    %3962 = vmatprep.subr.bf16.mxu0 0
    %3963 = vmatpush1.bf16.msra.mxu0 %v3803
    %3964 = vmatprep.subr.bf16.mxu0 0
    %3965 = vmatpush1.bf16.msra.mxu0 %v3804
    %3966 = vmatprep.subr.bf16.mxu0 0
    %3967 = vmatpush1.bf16.msra.mxu0 %v3805
    %3968 = vmatprep.subr.bf16.mxu0 0
    %3969 = vmatpush1.bf16.msra.mxu0 %v3806
    %3970 = vmatprep.subr.bf16.mxu0 0
    %3971 = vmatpush1.bf16.msra.mxu0 %v3807
    %3972 = vmatprep.subr.bf16.mxu0 0
    %3973 = vmatpush1.bf16.msra.mxu0 %v3808
    %3974 = vmatprep.subr.bf16.mxu0 0
    %3975 = vmatpush1.bf16.msra.mxu0 %v3809
    %3976 = vmatprep.subr.bf16.mxu0 0
    %3977 = vmatpush1.bf16.msra.mxu0 %v3810
    %3978 = vmatprep.subr.bf16.mxu0 0
    %3979 = vmatpush1.bf16.msra.mxu0 %v3811
    %3980 = vmatprep.mubr.bf16.mxu0 %v2702
    %3981 = vmatmul.mubr.bf16.gmra.mrb[0].mxu0 %v2701
    %v3982 = vpop.f32.mrb[0].mxu0
    %v3983 = vadd.f32 %v3943, %v3982
    %v3984 = vpop.f32.mrb[0].mxu0
    %v3985 = vpop.f32.mrb[0].mxu0
    %v3986 = vpop.f32.mrb[0].mxu0
    %3987 = vdwg.mxu0
    %3988 = vmatprep.subr.bf16.mxu0 0
    %3989 = vmatpush1.bf16.msra.mxu0 %v3812
    %3990 = vmatprep.subr.bf16.mxu0 0
    %3991 = vmatpush1.bf16.msra.mxu0 %v3813
    %3992 = vmatprep.subr.bf16.mxu0 0
    %3993 = vmatpush1.bf16.msra.mxu0 %v3814
    %3994 = vmatprep.subr.bf16.mxu0 0
    %3995 = vmatpush1.bf16.msra.mxu0 %v3815
    %3996 = vmatprep.subr.bf16.mxu0 0
    %3997 = vmatpush1.bf16.msra.mxu0 %v3816
    %3998 = vmatprep.subr.bf16.mxu0 0
    %3999 = vmatpush1.bf16.msra.mxu0 %v3817
    %4000 = vmatprep.subr.bf16.mxu0 0
    %4001 = vmatpush1.bf16.msra.mxu0 %v3818
    %4002 = vmatprep.subr.bf16.mxu0 0
    %4003 = vmatpush1.bf16.msra.mxu0 %v3819
    %4004 = vmatprep.subr.bf16.mxu0 0
    %4005 = vmatpush1.bf16.msra.mxu0 %v3820
    %4006 = vmatprep.subr.bf16.mxu0 0
    %4007 = vmatpush1.bf16.msra.mxu0 %v3821
    %4008 = vmatprep.subr.bf16.mxu0 0
    %4009 = vmatpush1.bf16.msra.mxu0 %v3822
    %4010 = vmatprep.subr.bf16.mxu0 0
    %4011 = vmatpush1.bf16.msra.mxu0 %v3823
    %4012 = vmatprep.subr.bf16.mxu0 0
    %4013 = vmatpush1.bf16.msra.mxu0 %v3824
    %4014 = vmatprep.subr.bf16.mxu0 0
    %4015 = vmatpush1.bf16.msra.mxu0 %v3825
    %4016 = vmatprep.subr.bf16.mxu0 0
    %4017 = vmatpush1.bf16.msra.mxu0 %v3826
    %4018 = vmatprep.subr.bf16.mxu0 0
    %4019 = vmatpush1.bf16.msra.mxu0 %v3827
    %4020 = vmatprep.mubr.bf16.mxu0 %v2704
    %4021 = vmatmul.mubr.bf16.gmra.mrb[0].mxu0 %v2703
    %v4022 = vpop.f32.mrb[0].mxu0
    %v4023 = vadd.f32 %v3983, %v4022
    %v4024 = vpop.f32.mrb[0].mxu0
    %v4025 = vpop.f32.mrb[0].mxu0
    %v4026 = vpop.f32.mrb[0].mxu0
    %4027 = vdwg.mxu0
    %4028 = vmatprep.subr.bf16.mxu0 0
    %4029 = vmatpush1.bf16.msra.mxu0 %v3828
    %4030 = vmatprep.subr.bf16.mxu0 0
    %4031 = vmatpush1.bf16.msra.mxu0 %v3829
    %4032 = vmatprep.subr.bf16.mxu0 0
    %4033 = vmatpush1.bf16.msra.mxu0 %v3830
    %4034 = vmatprep.subr.bf16.mxu0 0
    %4035 = vmatpush1.bf16.msra.mxu0 %v3831
    %4036 = vmatprep.subr.bf16.mxu0 0
    %4037 = vmatpush1.bf16.msra.mxu0 %v3832
    %4038 = vmatprep.subr.bf16.mxu0 0
    %4039 = vmatpush1.bf16.msra.mxu0 %v3833
    %4040 = vmatprep.subr.bf16.mxu0 0
    %4041 = vmatpush1.bf16.msra.mxu0 %v3834
    %4042 = vmatprep.subr.bf16.mxu0 0
    %4043 = vmatpush1.bf16.msra.mxu0 %v3835
    %4044 = vmatprep.subr.bf16.mxu0 0
    %4045 = vmatpush1.bf16.msra.mxu0 %v3836
    %4046 = vmatprep.subr.bf16.mxu0 0
    %4047 = vmatpush1.bf16.msra.mxu0 %v3837
    %4048 = vmatprep.subr.bf16.mxu0 0
    %4049 = vmatpush1.bf16.msra.mxu0 %v3838
    %4050 = vmatprep.subr.bf16.mxu0 0
    %4051 = vmatpush1.bf16.msra.mxu0 %v3839
    %4052 = vmatprep.subr.bf16.mxu0 0
    %4053 = vmatpush1.bf16.msra.mxu0 %v3840
    %4054 = vmatprep.subr.bf16.mxu0 0
    %4055 = vmatpush1.bf16.msra.mxu0 %v3841
    %4056 = vmatprep.subr.bf16.mxu0 0
    %4057 = vmatpush1.bf16.msra.mxu0 %v3842
    %4058 = vmatprep.subr.bf16.mxu0 0
    %4059 = vmatpush1.bf16.msra.mxu0 %v3843
    %4060 = vmatprep.mubr.bf16.mxu0 %v2706
    %4061 = vmatmul.mubr.bf16.gmra.mrb[0].mxu0 %v2705
    %v4062 = vpop.f32.mrb[0].mxu0
    %v4063 = vadd.f32 %v4023, %v4062
    %v4064 = vpop.f32.mrb[0].mxu0
    %v4065 = vpop.f32.mrb[0].mxu0
    %v4066 = vpop.f32.mrb[0].mxu0
    %4067 = vdwg.mxu0
    %v4068 = vtanh.pop %v4063
    %v4069 = vpack.c.bf16 %v4068, %v4068
    %4070 = vst [vmem:[#allocation16 + $0x4] sm:$0xf] %v4069
    %v4071 = vld [vmem:[#allocation13 + $0x8] sm:$0xf]
    %v4072 = vld [vmem:[#allocation13 + $0x24] sm:$0xf]
    %v4073 = vld [vmem:[#allocation13 + $0x40] sm:$0xf]
    %v4074 = vld [vmem:[#allocation13 + $0x5c] sm:$0xf]
    %v4075 = vld [vmem:[#allocation13 + $0x78] sm:$0xf]
    %v4076 = vld [vmem:[#allocation13 + $0x94] sm:$0xf]
    %v4077 = vld [vmem:[#allocation13 + $0xb0] sm:$0xf]
    %v4078 = vld [vmem:[#allocation13 + $0xcc] sm:$0xf]
    %v4079 = vld [vmem:[#allocation13 + $0xe8] sm:$0xf]
    %v4080 = vld [vmem:[#allocation13 + $0x104] sm:$0xf]
    %v4081 = vld [vmem:[#allocation13 + $0x120] sm:$0xf]
    %v4082 = vld [vmem:[#allocation13 + $0x13c] sm:$0xf]
    %v4083 = vld [vmem:[#allocation13 + $0x158] sm:$0xf]
    %v4084 = vld [vmem:[#allocation13 + $0x174] sm:$0xf]
    %v4085 = vld [vmem:[#allocation13 + $0x190] sm:$0xf]
    %v4086 = vld [vmem:[#allocation13 + $0x1ac] sm:$0xf]
    %v4087 = vld [vmem:[#allocation13 + $0x1c8] sm:$0xf]
    %v4088 = vld [vmem:[#allocation13 + $0x1e4] sm:$0xf]
    %v4089 = vld [vmem:[#allocation13 + $0x200] sm:$0xf]
    %v4090 = vld [vmem:[#allocation13 + $0x21c] sm:$0xf]
    %v4091 = vld [vmem:[#allocation13 + $0x238] sm:$0xf]
    %v4092 = vld [vmem:[#allocation13 + $0x254] sm:$0xf]
    %v4093 = vld [vmem:[#allocation13 + $0x270] sm:$0xf]
    %v4094 = vld [vmem:[#allocation13 + $0x28c] sm:$0xf]
    %v4095 = vld [vmem:[#allocation13 + $0x2a8] sm:$0xf]
    %v4096 = vld [vmem:[#allocation13 + $0x2c4] sm:$0xf]
    %v4097 = vld [vmem:[#allocation13 + $0x2e0] sm:$0xf]
    %v4098 = vld [vmem:[#allocation13 + $0x2fc] sm:$0xf]
    %v4099 = vld [vmem:[#allocation13 + $0x318] sm:$0xf]
    %v4100 = vld [vmem:[#allocation13 + $0x334] sm:$0xf]
    %v4101 = vld [vmem:[#allocation13 + $0x350] sm:$0xf]
    %v4102 = vld [vmem:[#allocation13 + $0x36c] sm:$0xf]
    %v4103 = vld [vmem:[#allocation13 + $0x388] sm:$0xf]
    %v4104 = vld [vmem:[#allocation13 + $0x3a4] sm:$0xf]
    %v4105 = vld [vmem:[#allocation13 + $0x3c0] sm:$0xf]
    %v4106 = vld [vmem:[#allocation13 + $0x3dc] sm:$0xf]
    %v4107 = vld [vmem:[#allocation13 + $0x3f8] sm:$0xf]
    %v4108 = vld [vmem:[#allocation13 + $0x414] sm:$0xf]
    %v4109 = vld [vmem:[#allocation13 + $0x430] sm:$0xf]
    %v4110 = vld [vmem:[#allocation13 + $0x44c] sm:$0xf]
    %v4111 = vld [vmem:[#allocation13 + $0x468] sm:$0xf]
    %v4112 = vld [vmem:[#allocation13 + $0x484] sm:$0xf]
    %v4113 = vld [vmem:[#allocation13 + $0x4a0] sm:$0xf]
    %v4114 = vld [vmem:[#allocation13 + $0x4bc] sm:$0xf]
    %v4115 = vld [vmem:[#allocation13 + $0x4d8] sm:$0xf]
    %v4116 = vld [vmem:[#allocation13 + $0x4f4] sm:$0xf]
    %v4117 = vld [vmem:[#allocation13 + $0x510] sm:$0xf]
    %v4118 = vld [vmem:[#allocation13 + $0x52c] sm:$0xf]
    %v4119 = vld [vmem:[#allocation13 + $0x548] sm:$0xf]
    %v4120 = vld [vmem:[#allocation13 + $0x564] sm:$0xf]
    %v4121 = vld [vmem:[#allocation13 + $0x580] sm:$0xf]
    %v4122 = vld [vmem:[#allocation13 + $0x59c] sm:$0xf]
    %v4123 = vld [vmem:[#allocation13 + $0x5b8] sm:$0xf]
    %v4124 = vld [vmem:[#allocation13 + $0x5d4] sm:$0xf]
    %v4125 = vld [vmem:[#allocation13 + $0x5f0] sm:$0xf]
    %v4126 = vld [vmem:[#allocation13 + $0x60c] sm:$0xf]
    %v4127 = vld [vmem:[#allocation13 + $0x628] sm:$0xf]
    %v4128 = vld [vmem:[#allocation13 + $0x644] sm:$0xf]
    %v4129 = vld [vmem:[#allocation13 + $0x660] sm:$0xf]
    %v4130 = vld [vmem:[#allocation13 + $0x67c] sm:$0xf]
    %v4131 = vld [vmem:[#allocation13 + $0x698] sm:$0xf]
    %v4132 = vld [vmem:[#allocation13 + $0x6b4] sm:$0xf]
    %v4133 = vld [vmem:[#allocation13 + $0x6d0] sm:$0xf]
    %v4134 = vld [vmem:[#allocation13 + $0x6ec] sm:$0xf]
    %v4135 = vld [vmem:[#allocation13 + $0x708] sm:$0xf]
    %v4136 = vld [vmem:[#allocation13 + $0x724] sm:$0xf]
    %v4137 = vld [vmem:[#allocation13 + $0x740] sm:$0xf]
    %v4138 = vld [vmem:[#allocation13 + $0x75c] sm:$0xf]
    %v4139 = vld [vmem:[#allocation13 + $0x778] sm:$0xf]
    %v4140 = vld [vmem:[#allocation13 + $0x794] sm:$0xf]
    %v4141 = vld [vmem:[#allocation13 + $0x7b0] sm:$0xf]
    %v4142 = vld [vmem:[#allocation13 + $0x7cc] sm:$0xf]
    %v4143 = vld [vmem:[#allocation13 + $0x7e8] sm:$0xf]
    %v4144 = vld [vmem:[#allocation13 + $0x804] sm:$0xf]
    %v4145 = vld [vmem:[#allocation13 + $0x820] sm:$0xf]
    %v4146 = vld [vmem:[#allocation13 + $0x83c] sm:$0xf]
    %v4147 = vld [vmem:[#allocation13 + $0x858] sm:$0xf]
    %v4148 = vld [vmem:[#allocation13 + $0x874] sm:$0xf]
    %v4149 = vld [vmem:[#allocation13 + $0x890] sm:$0xf]
    %v4150 = vld [vmem:[#allocation13 + $0x8ac] sm:$0xf]
    %v4151 = vld [vmem:[#allocation13 + $0x8c8] sm:$0xf]
    %v4152 = vld [vmem:[#allocation13 + $0x8e4] sm:$0xf]
    %v4153 = vld [vmem:[#allocation13 + $0x900] sm:$0xf]
    %v4154 = vld [vmem:[#allocation13 + $0x91c] sm:$0xf]
    %v4155 = vld [vmem:[#allocation13 + $0x938] sm:$0xf]
    %v4156 = vld [vmem:[#allocation13 + $0x954] sm:$0xf]
    %v4157 = vld [vmem:[#allocation13 + $0x970] sm:$0xf]
    %v4158 = vld [vmem:[#allocation13 + $0x98c] sm:$0xf]
    %v4159 = vld [vmem:[#allocation13 + $0x9a8] sm:$0xf]
    %v4160 = vld [vmem:[#allocation13 + $0x9c4] sm:$0xf]
    %v4161 = vld [vmem:[#allocation13 + $0x9e0] sm:$0xf]
    %v4162 = vld [vmem:[#allocation13 + $0x9fc] sm:$0xf]
    %v4163 = vld [vmem:[#allocation13 + $0xa18] sm:$0xf]
    %v4164 = vld [vmem:[#allocation13 + $0xa34] sm:$0xf]
    %v4165 = vld [vmem:[#allocation13 + $0xa50] sm:$0xf]
    %v4166 = vld [vmem:[#allocation13 + $0xa6c] sm:$0xf]
    %v4167 = vld [vmem:[#allocation13 + $0xa88] sm:$0xf]
    %v4168 = vld [vmem:[#allocation13 + $0xaa4] sm:$0xf]
    %v4169 = vld [vmem:[#allocation13 + $0xac0] sm:$0xf]
    %v4170 = vld [vmem:[#allocation13 + $0xadc] sm:$0xf]
    %v4171 = vld [vmem:[#allocation13 + $0xaf8] sm:$0xf]
    %v4172 = vld [vmem:[#allocation13 + $0xb14] sm:$0xf]
    %v4173 = vld [vmem:[#allocation13 + $0xb30] sm:$0xf]
    %v4174 = vld [vmem:[#allocation13 + $0xb4c] sm:$0xf]
    %v4175 = vld [vmem:[#allocation13 + $0xb68] sm:$0xf]
    %v4176 = vld [vmem:[#allocation13 + $0xb84] sm:$0xf]
    %v4177 = vld [vmem:[#allocation13 + $0xba0] sm:$0xf]
    %v4178 = vld [vmem:[#allocation13 + $0xbbc] sm:$0xf]
    %v4179 = vld [vmem:[#allocation13 + $0xbd8] sm:$0xf]
    %v4180 = vld [vmem:[#allocation13 + $0xbf4] sm:$0xf]
    %v4181 = vld [vmem:[#allocation13 + $0xc10] sm:$0xf]
    %v4182 = vld [vmem:[#allocation13 + $0xc2c] sm:$0xf]
    %v4183 = vld [vmem:[#allocation13 + $0xc48] sm:$0xf]
    %v4184 = vld [vmem:[#allocation13 + $0xc64] sm:$0xf]
    %v4185 = vld [vmem:[#allocation13 + $0xc80] sm:$0xf]
    %v4186 = vld [vmem:[#allocation13 + $0xc9c] sm:$0xf]
    %v4187 = vld [vmem:[#allocation13 + $0xcb8] sm:$0xf]
    %v4188 = vld [vmem:[#allocation13 + $0xcd4] sm:$0xf]
    %v4189 = vld [vmem:[#allocation13 + $0xcf0] sm:$0xf]
    %v4190 = vld [vmem:[#allocation13 + $0xd0c] sm:$0xf]
    %v4191 = vld [vmem:[#allocation13 + $0xd28] sm:$0xf]
    %v4192 = vld [vmem:[#allocation13 + $0xd44] sm:$0xf]
    %v4193 = vld [vmem:[#allocation13 + $0xd60] sm:$0xf]
    %v4194 = vld [vmem:[#allocation13 + $0xd7c] sm:$0xf]
    %v4195 = vld [vmem:[#allocation13 + $0xd98] sm:$0xf]
    %v4196 = vld [vmem:[#allocation13 + $0xdb4] sm:$0xf]
    %v4197 = vld [vmem:[#allocation13 + $0xdd0] sm:$0xf]
    %v4198 = vld [vmem:[#allocation13 + $0xdec] sm:$0xf]
    %v4199 = vld [vmem:[#allocation14 + $0x2] sm:$0x1]
    %v4201 = vlaneseq
    %v4202 = vshrl.u32 %v4201, 7
    %v4203 = vsub.s32 0, %v4202
    %v4204 = vrot.slane %v4199, %v4203
    %v4334 = vunpack.c.l.b16 %v4071
    %v4335 = vunpack.c.l.b16 %v4072
    %v4336 = vunpack.c.l.b16 %v4073
    %v4337 = vunpack.c.l.b16 %v4074
    %v4338 = vunpack.c.l.b16 %v4075
    %v4339 = vunpack.c.l.b16 %v4076
    %v4340 = vunpack.c.l.b16 %v4077
    %v4341 = vunpack.c.l.b16 %v4078
    %v4342 = vunpack.c.l.b16 %v4079
    %v4343 = vunpack.c.l.b16 %v4080
    %v4344 = vunpack.c.l.b16 %v4081
    %v4345 = vunpack.c.l.b16 %v4082
    %v4346 = vunpack.c.l.b16 %v4083
    %v4347 = vunpack.c.l.b16 %v4084
    %v4348 = vunpack.c.l.b16 %v4085
    %v4349 = vunpack.c.l.b16 %v4086
    %v4350 = vunpack.c.l.b16 %v4087
    %v4351 = vunpack.c.l.b16 %v4088
    %v4352 = vunpack.c.l.b16 %v4089
    %v4353 = vunpack.c.l.b16 %v4090
    %v4354 = vunpack.c.l.b16 %v4091
    %v4355 = vunpack.c.l.b16 %v4092
    %v4356 = vunpack.c.l.b16 %v4093
    %v4357 = vunpack.c.l.b16 %v4094
    %v4358 = vunpack.c.l.b16 %v4095
    %v4359 = vunpack.c.l.b16 %v4096
    %v4360 = vunpack.c.l.b16 %v4097
    %v4361 = vunpack.c.l.b16 %v4098
    %v4362 = vunpack.c.l.b16 %v4099
    %v4363 = vunpack.c.l.b16 %v4100
    %v4364 = vunpack.c.l.b16 %v4101
    %v4365 = vunpack.c.l.b16 %v4102
    %v4366 = vunpack.c.l.b16 %v4103
    %v4367 = vunpack.c.l.b16 %v4104
    %v4368 = vunpack.c.l.b16 %v4105
    %v4369 = vunpack.c.l.b16 %v4106
    %v4370 = vunpack.c.l.b16 %v4107
    %v4371 = vunpack.c.l.b16 %v4108
    %v4372 = vunpack.c.l.b16 %v4109
    %v4373 = vunpack.c.l.b16 %v4110
    %v4374 = vunpack.c.l.b16 %v4111
    %v4375 = vunpack.c.l.b16 %v4112
    %v4376 = vunpack.c.l.b16 %v4113
    %v4377 = vunpack.c.l.b16 %v4114
    %v4378 = vunpack.c.l.b16 %v4115
    %v4379 = vunpack.c.l.b16 %v4116
    %v4380 = vunpack.c.l.b16 %v4117
    %v4381 = vunpack.c.l.b16 %v4118
    %v4382 = vunpack.c.l.b16 %v4119
    %v4383 = vunpack.c.l.b16 %v4120
    %v4384 = vunpack.c.l.b16 %v4121
    %v4385 = vunpack.c.l.b16 %v4122
    %v4386 = vunpack.c.l.b16 %v4123
    %v4387 = vunpack.c.l.b16 %v4124
    %v4388 = vunpack.c.l.b16 %v4125
    %v4389 = vunpack.c.l.b16 %v4126
    %v4390 = vunpack.c.l.b16 %v4127
    %v4391 = vunpack.c.l.b16 %v4128
    %v4392 = vunpack.c.l.b16 %v4129
    %v4393 = vunpack.c.l.b16 %v4130
    %v4394 = vunpack.c.l.b16 %v4131
    %v4395 = vunpack.c.l.b16 %v4132
    %v4396 = vunpack.c.l.b16 %v4133
    %v4397 = vunpack.c.l.b16 %v4134
    %v4398 = vunpack.c.l.b16 %v4135
    %v4399 = vunpack.c.l.b16 %v4136
    %v4400 = vunpack.c.l.b16 %v4137
    %v4401 = vunpack.c.l.b16 %v4138
    %v4402 = vunpack.c.l.b16 %v4139
    %v4403 = vunpack.c.l.b16 %v4140
    %v4404 = vunpack.c.l.b16 %v4141
    %v4405 = vunpack.c.l.b16 %v4142
    %v4406 = vunpack.c.l.b16 %v4143
    %v4407 = vunpack.c.l.b16 %v4144
    %v4408 = vunpack.c.l.b16 %v4145
    %v4409 = vunpack.c.l.b16 %v4146
    %v4410 = vunpack.c.l.b16 %v4147
    %v4411 = vunpack.c.l.b16 %v4148
    %v4412 = vunpack.c.l.b16 %v4149
    %v4413 = vunpack.c.l.b16 %v4150
    %v4414 = vunpack.c.l.b16 %v4151
    %v4415 = vunpack.c.l.b16 %v4152
    %v4416 = vunpack.c.l.b16 %v4153
    %v4417 = vunpack.c.l.b16 %v4154
    %v4418 = vunpack.c.l.b16 %v4155
    %v4419 = vunpack.c.l.b16 %v4156
    %v4420 = vunpack.c.l.b16 %v4157
    %v4421 = vunpack.c.l.b16 %v4158
    %v4422 = vunpack.c.l.b16 %v4159
    %v4423 = vunpack.c.l.b16 %v4160
    %v4424 = vunpack.c.l.b16 %v4161
    %v4425 = vunpack.c.l.b16 %v4162
    %v4426 = vunpack.c.l.b16 %v4163
    %v4427 = vunpack.c.l.b16 %v4164
    %v4428 = vunpack.c.l.b16 %v4165
    %v4429 = vunpack.c.l.b16 %v4166
    %v4430 = vunpack.c.l.b16 %v4167
    %v4431 = vunpack.c.l.b16 %v4168
    %v4432 = vunpack.c.l.b16 %v4169
    %v4433 = vunpack.c.l.b16 %v4170
    %v4434 = vunpack.c.l.b16 %v4171
    %v4435 = vunpack.c.l.b16 %v4172
    %v4436 = vunpack.c.l.b16 %v4173
    %v4437 = vunpack.c.l.b16 %v4174
    %v4438 = vunpack.c.l.b16 %v4175
    %v4439 = vunpack.c.l.b16 %v4176
    %v4440 = vunpack.c.l.b16 %v4177
    %v4441 = vunpack.c.l.b16 %v4178
    %v4442 = vunpack.c.l.b16 %v4179
    %v4443 = vunpack.c.l.b16 %v4180
    %v4444 = vunpack.c.l.b16 %v4181
    %v4445 = vunpack.c.l.b16 %v4182
    %v4446 = vunpack.c.l.b16 %v4183
    %v4447 = vunpack.c.l.b16 %v4184
    %v4448 = vunpack.c.l.b16 %v4185
    %v4449 = vunpack.c.l.b16 %v4186
    %v4450 = vunpack.c.l.b16 %v4187
    %v4451 = vunpack.c.l.b16 %v4188
    %v4452 = vunpack.c.l.b16 %v4189
    %v4453 = vunpack.c.l.b16 %v4190
    %v4454 = vunpack.c.l.b16 %v4191
    %v4455 = vunpack.c.l.b16 %v4192
    %v4456 = vunpack.c.l.b16 %v4193
    %v4457 = vunpack.c.l.b16 %v4194
    %v4458 = vunpack.c.l.b16 %v4195
    %v4459 = vunpack.c.l.b16 %v4196
    %v4460 = vunpack.c.l.b16 %v4197
    %v4461 = vunpack.c.l.b16 %v4198
    %v4462 = vpack.c.b16 %v4335, %v4334
    %v4463 = vpack.c.b16 %v4337, %v4336
    %v4464 = vpack.c.b16 %v4339, %v4338
    %v4465 = vpack.c.b16 %v4341, %v4340
    %v4466 = vpack.c.b16 %v4343, %v4342
    %v4467 = vpack.c.b16 %v4345, %v4344
    %v4468 = vpack.c.b16 %v4347, %v4346
    %v4469 = vpack.c.b16 %v4349, %v4348
    %v4470 = vpack.c.b16 %v4351, %v4350
    %v4471 = vpack.c.b16 %v4353, %v4352
    %v4472 = vpack.c.b16 %v4355, %v4354
    %v4473 = vpack.c.b16 %v4357, %v4356
    %v4474 = vpack.c.b16 %v4359, %v4358
    %v4475 = vpack.c.b16 %v4361, %v4360
    %v4476 = vpack.c.b16 %v4363, %v4362
    %v4477 = vpack.c.b16 %v4365, %v4364
    %v4478 = vpack.c.b16 %v4367, %v4366
    %v4479 = vpack.c.b16 %v4369, %v4368
    %v4480 = vpack.c.b16 %v4371, %v4370
    %v4481 = vpack.c.b16 %v4373, %v4372
    %v4482 = vpack.c.b16 %v4375, %v4374
    %v4483 = vpack.c.b16 %v4377, %v4376
    %v4484 = vpack.c.b16 %v4379, %v4378
    %v4485 = vpack.c.b16 %v4381, %v4380
    %v4486 = vpack.c.b16 %v4383, %v4382
    %v4487 = vpack.c.b16 %v4385, %v4384
    %v4488 = vpack.c.b16 %v4387, %v4386
    %v4489 = vpack.c.b16 %v4389, %v4388
    %v4490 = vpack.c.b16 %v4391, %v4390
    %v4491 = vpack.c.b16 %v4393, %v4392
    %v4492 = vpack.c.b16 %v4395, %v4394
    %v4493 = vpack.c.b16 %v4397, %v4396
    %v4494 = vpack.c.b16 %v4399, %v4398
    %v4495 = vpack.c.b16 %v4401, %v4400
    %v4496 = vpack.c.b16 %v4403, %v4402
    %v4497 = vpack.c.b16 %v4405, %v4404
    %v4498 = vpack.c.b16 %v4407, %v4406
    %v4499 = vpack.c.b16 %v4409, %v4408
    %v4500 = vpack.c.b16 %v4411, %v4410
    %v4501 = vpack.c.b16 %v4413, %v4412
    %v4502 = vpack.c.b16 %v4415, %v4414
    %v4503 = vpack.c.b16 %v4417, %v4416
    %v4504 = vpack.c.b16 %v4419, %v4418
    %v4505 = vpack.c.b16 %v4421, %v4420
    %v4506 = vpack.c.b16 %v4423, %v4422
    %v4507 = vpack.c.b16 %v4425, %v4424
    %v4508 = vpack.c.b16 %v4427, %v4426
    %v4509 = vpack.c.b16 %v4429, %v4428
    %v4510 = vpack.c.b16 %v4431, %v4430
    %v4511 = vpack.c.b16 %v4433, %v4432
    %v4512 = vpack.c.b16 %v4435, %v4434
    %v4513 = vpack.c.b16 %v4437, %v4436
    %v4514 = vpack.c.b16 %v4439, %v4438
    %v4515 = vpack.c.b16 %v4441, %v4440
    %v4516 = vpack.c.b16 %v4443, %v4442
    %v4517 = vpack.c.b16 %v4445, %v4444
    %v4518 = vpack.c.b16 %v4447, %v4446
    %v4519 = vpack.c.b16 %v4449, %v4448
    %v4520 = vpack.c.b16 %v4451, %v4450
    %v4521 = vpack.c.b16 %v4453, %v4452
    %v4522 = vpack.c.b16 %v4455, %v4454
    %v4523 = vpack.c.b16 %v4457, %v4456
    %v4524 = vpack.c.b16 %v4459, %v4458
    %v4525 = vpack.c.b16 %v4461, %v4460
    %4590 = vmatprep.subr.bf16.mxu0 0
    %4591 = vmatpush1.bf16.msra.mxu0 %v4462
    %4592 = vmatprep.subr.bf16.mxu0 0
    %4593 = vmatpush1.bf16.msra.mxu0 %v4463
    %4594 = vmatprep.subr.bf16.mxu0 0
    %4595 = vmatpush1.bf16.msra.mxu0 %v4464
    %4596 = vmatprep.subr.bf16.mxu0 0
    %4597 = vmatpush1.bf16.msra.mxu0 %v4465
    %4598 = vmatprep.subr.bf16.mxu0 0
    %4599 = vmatpush1.bf16.msra.mxu0 %v4466
    %4600 = vmatprep.subr.bf16.mxu0 0
    %4601 = vmatpush1.bf16.msra.mxu0 %v4467
    %4602 = vmatprep.subr.bf16.mxu0 0
    %4603 = vmatpush1.bf16.msra.mxu0 %v4468
    %4604 = vmatprep.subr.bf16.mxu0 0
    %4605 = vmatpush1.bf16.msra.mxu0 %v4469
    %4606 = vmatprep.subr.bf16.mxu0 0
    %4607 = vmatpush1.bf16.msra.mxu0 %v4470
    %4608 = vmatprep.subr.bf16.mxu0 0
    %4609 = vmatpush1.bf16.msra.mxu0 %v4471
    %4610 = vmatprep.subr.bf16.mxu0 0
    %4611 = vmatpush1.bf16.msra.mxu0 %v4472
    %4612 = vmatprep.subr.bf16.mxu0 0
    %4613 = vmatpush1.bf16.msra.mxu0 %v4473
    %4614 = vmatprep.subr.bf16.mxu0 0
    %4615 = vmatpush1.bf16.msra.mxu0 %v4474
    %4616 = vmatprep.subr.bf16.mxu0 0
    %4617 = vmatpush1.bf16.msra.mxu0 %v4475
    %4618 = vmatprep.subr.bf16.mxu0 0
    %4619 = vmatpush1.bf16.msra.mxu0 %v4476
    %4620 = vmatprep.subr.bf16.mxu0 0
    %4621 = vmatpush1.bf16.msra.mxu0 %v4477
    %4622 = vmatprep.mubr.bf16.mxu0 %v2700
    %4623 = vmatmul.mubr.bf16.gmra.mrb[0].mxu0 %v2699
    %v4624 = vpop.f32.mrb[0].mxu0
    %v4625 = vadd.f32 %v4204, %v4624
    %v4626 = vpop.f32.mrb[0].mxu0
    %v4627 = vpop.f32.mrb[0].mxu0
    %v4628 = vpop.f32.mrb[0].mxu0
    %4629 = vdwg.mxu0
    %4630 = vmatprep.subr.bf16.mxu0 0
    %4631 = vmatpush1.bf16.msra.mxu0 %v4478
    %4632 = vmatprep.subr.bf16.mxu0 0
    %4633 = vmatpush1.bf16.msra.mxu0 %v4479
    %4634 = vmatprep.subr.bf16.mxu0 0
    %4635 = vmatpush1.bf16.msra.mxu0 %v4480
    %4636 = vmatprep.subr.bf16.mxu0 0
    %4637 = vmatpush1.bf16.msra.mxu0 %v4481
    %4638 = vmatprep.subr.bf16.mxu0 0
    %4639 = vmatpush1.bf16.msra.mxu0 %v4482
    %4640 = vmatprep.subr.bf16.mxu0 0
    %4641 = vmatpush1.bf16.msra.mxu0 %v4483
    %4642 = vmatprep.subr.bf16.mxu0 0
    %4643 = vmatpush1.bf16.msra.mxu0 %v4484
    %4644 = vmatprep.subr.bf16.mxu0 0
    %4645 = vmatpush1.bf16.msra.mxu0 %v4485
    %4646 = vmatprep.subr.bf16.mxu0 0
    %4647 = vmatpush1.bf16.msra.mxu0 %v4486
    %4648 = vmatprep.subr.bf16.mxu0 0
    %4649 = vmatpush1.bf16.msra.mxu0 %v4487
    %4650 = vmatprep.subr.bf16.mxu0 0
    %4651 = vmatpush1.bf16.msra.mxu0 %v4488
    %4652 = vmatprep.subr.bf16.mxu0 0
    %4653 = vmatpush1.bf16.msra.mxu0 %v4489
    %4654 = vmatprep.subr.bf16.mxu0 0
    %4655 = vmatpush1.bf16.msra.mxu0 %v4490
    %4656 = vmatprep.subr.bf16.mxu0 0
    %4657 = vmatpush1.bf16.msra.mxu0 %v4491
    %4658 = vmatprep.subr.bf16.mxu0 0
    %4659 = vmatpush1.bf16.msra.mxu0 %v4492
    %4660 = vmatprep.subr.bf16.mxu0 0
    %4661 = vmatpush1.bf16.msra.mxu0 %v4493
    %4662 = vmatprep.mubr.bf16.mxu0 %v2702
    %4663 = vmatmul.mubr.bf16.gmra.mrb[0].mxu0 %v2701
    %v4664 = vpop.f32.mrb[0].mxu0
    %v4665 = vadd.f32 %v4625, %v4664
    %v4666 = vpop.f32.mrb[0].mxu0
    %v4667 = vpop.f32.mrb[0].mxu0
    %v4668 = vpop.f32.mrb[0].mxu0
    %4669 = vdwg.mxu0
    %4670 = vmatprep.subr.bf16.mxu0 0
    %4671 = vmatpush1.bf16.msra.mxu0 %v4494
    %4672 = vmatprep.subr.bf16.mxu0 0
    %4673 = vmatpush1.bf16.msra.mxu0 %v4495
    %4674 = vmatprep.subr.bf16.mxu0 0
    %4675 = vmatpush1.bf16.msra.mxu0 %v4496
    %4676 = vmatprep.subr.bf16.mxu0 0
    %4677 = vmatpush1.bf16.msra.mxu0 %v4497
    %4678 = vmatprep.subr.bf16.mxu0 0
    %4679 = vmatpush1.bf16.msra.mxu0 %v4498
    %4680 = vmatprep.subr.bf16.mxu0 0
    %4681 = vmatpush1.bf16.msra.mxu0 %v4499
    %4682 = vmatprep.subr.bf16.mxu0 0
    %4683 = vmatpush1.bf16.msra.mxu0 %v4500
    %4684 = vmatprep.subr.bf16.mxu0 0
    %4685 = vmatpush1.bf16.msra.mxu0 %v4501
    %4686 = vmatprep.subr.bf16.mxu0 0
    %4687 = vmatpush1.bf16.msra.mxu0 %v4502
    %4688 = vmatprep.subr.bf16.mxu0 0
    %4689 = vmatpush1.bf16.msra.mxu0 %v4503
    %4690 = vmatprep.subr.bf16.mxu0 0
    %4691 = vmatpush1.bf16.msra.mxu0 %v4504
    %4692 = vmatprep.subr.bf16.mxu0 0
    %4693 = vmatpush1.bf16.msra.mxu0 %v4505
    %4694 = vmatprep.subr.bf16.mxu0 0
    %4695 = vmatpush1.bf16.msra.mxu0 %v4506
    %4696 = vmatprep.subr.bf16.mxu0 0
    %4697 = vmatpush1.bf16.msra.mxu0 %v4507
    %4698 = vmatprep.subr.bf16.mxu0 0
    %4699 = vmatpush1.bf16.msra.mxu0 %v4508
    %4700 = vmatprep.subr.bf16.mxu0 0
    %4701 = vmatpush1.bf16.msra.mxu0 %v4509
    %4702 = vmatprep.mubr.bf16.mxu0 %v2704
    %4703 = vmatmul.mubr.bf16.gmra.mrb[0].mxu0 %v2703
    %v4704 = vpop.f32.mrb[0].mxu0
    %v4705 = vadd.f32 %v4665, %v4704
    %v4706 = vpop.f32.mrb[0].mxu0
    %v4707 = vpop.f32.mrb[0].mxu0
    %v4708 = vpop.f32.mrb[0].mxu0
    %4709 = vdwg.mxu0
    %4710 = vmatprep.subr.bf16.mxu0 0
    %4711 = vmatpush1.bf16.msra.mxu0 %v4510
    %4712 = vmatprep.subr.bf16.mxu0 0
    %4713 = vmatpush1.bf16.msra.mxu0 %v4511
    %4714 = vmatprep.subr.bf16.mxu0 0
    %4715 = vmatpush1.bf16.msra.mxu0 %v4512
    %4716 = vmatprep.subr.bf16.mxu0 0
    %4717 = vmatpush1.bf16.msra.mxu0 %v4513
    %4718 = vmatprep.subr.bf16.mxu0 0
    %4719 = vmatpush1.bf16.msra.mxu0 %v4514
    %4720 = vmatprep.subr.bf16.mxu0 0
    %4721 = vmatpush1.bf16.msra.mxu0 %v4515
    %4722 = vmatprep.subr.bf16.mxu0 0
    %4723 = vmatpush1.bf16.msra.mxu0 %v4516
    %4724 = vmatprep.subr.bf16.mxu0 0
    %4725 = vmatpush1.bf16.msra.mxu0 %v4517
    %4726 = vmatprep.subr.bf16.mxu0 0
    %4727 = vmatpush1.bf16.msra.mxu0 %v4518
    %4728 = vmatprep.subr.bf16.mxu0 0
    %4729 = vmatpush1.bf16.msra.mxu0 %v4519
    %4730 = vmatprep.subr.bf16.mxu0 0
    %4731 = vmatpush1.bf16.msra.mxu0 %v4520
    %4732 = vmatprep.subr.bf16.mxu0 0
    %4733 = vmatpush1.bf16.msra.mxu0 %v4521
    %4734 = vmatprep.subr.bf16.mxu0 0
    %4735 = vmatpush1.bf16.msra.mxu0 %v4522
    %4736 = vmatprep.subr.bf16.mxu0 0
    %4737 = vmatpush1.bf16.msra.mxu0 %v4523
    %4738 = vmatprep.subr.bf16.mxu0 0
    %4739 = vmatpush1.bf16.msra.mxu0 %v4524
    %4740 = vmatprep.subr.bf16.mxu0 0
    %4741 = vmatpush1.bf16.msra.mxu0 %v4525
    %4742 = vmatprep.mubr.bf16.mxu0 %v2706
    %4743 = vmatmul.mubr.bf16.gmra.mrb[0].mxu0 %v2705
    %v4744 = vpop.f32.mrb[0].mxu0
    %v4745 = vadd.f32 %v4705, %v4744
    %v4746 = vpop.f32.mrb[0].mxu0
    %v4747 = vpop.f32.mrb[0].mxu0
    %v4748 = vpop.f32.mrb[0].mxu0
    %4749 = vdwg.mxu0
    %v4750 = vtanh.pop %v4745
    %v4751 = vpack.c.bf16 %v4750, %v4750
    %4752 = vst [vmem:[#allocation16 + $0x8] sm:$0xf] %v4751
    %v4753 = vld [vmem:[#allocation13 + $0xc] sm:$0xf]
    %v4754 = vld [vmem:[#allocation13 + $0x28] sm:$0xf]
    %v4755 = vld [vmem:[#allocation13 + $0x44] sm:$0xf]
    %v4756 = vld [vmem:[#allocation13 + $0x60] sm:$0xf]
    %v4757 = vld [vmem:[#allocation13 + $0x7c] sm:$0xf]
    %v4758 = vld [vmem:[#allocation13 + $0x98] sm:$0xf]
    %v4759 = vld [vmem:[#allocation13 + $0xb4] sm:$0xf]
    %v4760 = vld [vmem:[#allocation13 + $0xd0] sm:$0xf]
    %v4761 = vld [vmem:[#allocation13 + $0xec] sm:$0xf]
    %v4762 = vld [vmem:[#allocation13 + $0x108] sm:$0xf]
    %v4763 = vld [vmem:[#allocation13 + $0x124] sm:$0xf]
    %v4764 = vld [vmem:[#allocation13 + $0x140] sm:$0xf]
    %v4765 = vld [vmem:[#allocation13 + $0x15c] sm:$0xf]
    %v4766 = vld [vmem:[#allocation13 + $0x178] sm:$0xf]
    %v4767 = vld [vmem:[#allocation13 + $0x194] sm:$0xf]
    %v4768 = vld [vmem:[#allocation13 + $0x1b0] sm:$0xf]
    %v4769 = vld [vmem:[#allocation13 + $0x1cc] sm:$0xf]
    %v4770 = vld [vmem:[#allocation13 + $0x1e8] sm:$0xf]
    %v4771 = vld [vmem:[#allocation13 + $0x204] sm:$0xf]
    %v4772 = vld [vmem:[#allocation13 + $0x220] sm:$0xf]
    %v4773 = vld [vmem:[#allocation13 + $0x23c] sm:$0xf]
    %v4774 = vld [vmem:[#allocation13 + $0x258] sm:$0xf]
    %v4775 = vld [vmem:[#allocation13 + $0x274] sm:$0xf]
    %v4776 = vld [vmem:[#allocation13 + $0x290] sm:$0xf]
    %v4777 = vld [vmem:[#allocation13 + $0x2ac] sm:$0xf]
    %v4778 = vld [vmem:[#allocation13 + $0x2c8] sm:$0xf]
    %v4779 = vld [vmem:[#allocation13 + $0x2e4] sm:$0xf]
    %v4780 = vld [vmem:[#allocation13 + $0x300] sm:$0xf]
    %v4781 = vld [vmem:[#allocation13 + $0x31c] sm:$0xf]
    %v4782 = vld [vmem:[#allocation13 + $0x338] sm:$0xf]
    %v4783 = vld [vmem:[#allocation13 + $0x354] sm:$0xf]
    %v4784 = vld [vmem:[#allocation13 + $0x370] sm:$0xf]
    %v4785 = vld [vmem:[#allocation13 + $0x38c] sm:$0xf]
    %v4786 = vld [vmem:[#allocation13 + $0x3a8] sm:$0xf]
    %v4787 = vld [vmem:[#allocation13 + $0x3c4] sm:$0xf]
    %v4788 = vld [vmem:[#allocation13 + $0x3e0] sm:$0xf]
    %v4789 = vld [vmem:[#allocation13 + $0x3fc] sm:$0xf]
    %v4790 = vld [vmem:[#allocation13 + $0x418] sm:$0xf]
    %v4791 = vld [vmem:[#allocation13 + $0x434] sm:$0xf]
    %v4792 = vld [vmem:[#allocation13 + $0x450] sm:$0xf]
    %v4793 = vld [vmem:[#allocation13 + $0x46c] sm:$0xf]
    %v4794 = vld [vmem:[#allocation13 + $0x488] sm:$0xf]
    %v4795 = vld [vmem:[#allocation13 + $0x4a4] sm:$0xf]
    %v4796 = vld [vmem:[#allocation13 + $0x4c0] sm:$0xf]
    %v4797 = vld [vmem:[#allocation13 + $0x4dc] sm:$0xf]
    %v4798 = vld [vmem:[#allocation13 + $0x4f8] sm:$0xf]
    %v4799 = vld [vmem:[#allocation13 + $0x514] sm:$0xf]
    %v4800 = vld [vmem:[#allocation13 + $0x530] sm:$0xf]
    %v4801 = vld [vmem:[#allocation13 + $0x54c] sm:$0xf]
    %v4802 = vld [vmem:[#allocation13 + $0x568] sm:$0xf]
    %v4803 = vld [vmem:[#allocation13 + $0x584] sm:$0xf]
    %v4804 = vld [vmem:[#allocation13 + $0x5a0] sm:$0xf]
    %v4805 = vld [vmem:[#allocation13 + $0x5bc] sm:$0xf]
    %v4806 = vld [vmem:[#allocation13 + $0x5d8] sm:$0xf]
    %v4807 = vld [vmem:[#allocation13 + $0x5f4] sm:$0xf]
    %v4808 = vld [vmem:[#allocation13 + $0x610] sm:$0xf]
    %v4809 = vld [vmem:[#allocation13 + $0x62c] sm:$0xf]
    %v4810 = vld [vmem:[#allocation13 + $0x648] sm:$0xf]
    %v4811 = vld [vmem:[#allocation13 + $0x664] sm:$0xf]
    %v4812 = vld [vmem:[#allocation13 + $0x680] sm:$0xf]
    %v4813 = vld [vmem:[#allocation13 + $0x69c] sm:$0xf]
    %v4814 = vld [vmem:[#allocation13 + $0x6b8] sm:$0xf]
    %v4815 = vld [vmem:[#allocation13 + $0x6d4] sm:$0xf]
    %v4816 = vld [vmem:[#allocation13 + $0x6f0] sm:$0xf]
    %v4817 = vld [vmem:[#allocation13 + $0x70c] sm:$0xf]
    %v4818 = vld [vmem:[#allocation13 + $0x728] sm:$0xf]
    %v4819 = vld [vmem:[#allocation13 + $0x744] sm:$0xf]
    %v4820 = vld [vmem:[#allocation13 + $0x760] sm:$0xf]
    %v4821 = vld [vmem:[#allocation13 + $0x77c] sm:$0xf]
    %v4822 = vld [vmem:[#allocation13 + $0x798] sm:$0xf]
    %v4823 = vld [vmem:[#allocation13 + $0x7b4] sm:$0xf]
    %v4824 = vld [vmem:[#allocation13 + $0x7d0] sm:$0xf]
    %v4825 = vld [vmem:[#allocation13 + $0x7ec] sm:$0xf]
    %v4826 = vld [vmem:[#allocation13 + $0x808] sm:$0xf]
    %v4827 = vld [vmem:[#allocation13 + $0x824] sm:$0xf]
    %v4828 = vld [vmem:[#allocation13 + $0x840] sm:$0xf]
    %v4829 = vld [vmem:[#allocation13 + $0x85c] sm:$0xf]
    %v4830 = vld [vmem:[#allocation13 + $0x878] sm:$0xf]
    %v4831 = vld [vmem:[#allocation13 + $0x894] sm:$0xf]
    %v4832 = vld [vmem:[#allocation13 + $0x8b0] sm:$0xf]
    %v4833 = vld [vmem:[#allocation13 + $0x8cc] sm:$0xf]
    %v4834 = vld [vmem:[#allocation13 + $0x8e8] sm:$0xf]
    %v4835 = vld [vmem:[#allocation13 + $0x904] sm:$0xf]
    %v4836 = vld [vmem:[#allocation13 + $0x920] sm:$0xf]
    %v4837 = vld [vmem:[#allocation13 + $0x93c] sm:$0xf]
    %v4838 = vld [vmem:[#allocation13 + $0x958] sm:$0xf]
    %v4839 = vld [vmem:[#allocation13 + $0x974] sm:$0xf]
    %v4840 = vld [vmem:[#allocation13 + $0x990] sm:$0xf]
    %v4841 = vld [vmem:[#allocation13 + $0x9ac] sm:$0xf]
    %v4842 = vld [vmem:[#allocation13 + $0x9c8] sm:$0xf]
    %v4843 = vld [vmem:[#allocation13 + $0x9e4] sm:$0xf]
    %v4844 = vld [vmem:[#allocation13 + $0xa00] sm:$0xf]
    %v4845 = vld [vmem:[#allocation13 + $0xa1c] sm:$0xf]
    %v4846 = vld [vmem:[#allocation13 + $0xa38] sm:$0xf]
    %v4847 = vld [vmem:[#allocation13 + $0xa54] sm:$0xf]
    %v4848 = vld [vmem:[#allocation13 + $0xa70] sm:$0xf]
    %v4849 = vld [vmem:[#allocation13 + $0xa8c] sm:$0xf]
    %v4850 = vld [vmem:[#allocation13 + $0xaa8] sm:$0xf]
    %v4851 = vld [vmem:[#allocation13 + $0xac4] sm:$0xf]
    %v4852 = vld [vmem:[#allocation13 + $0xae0] sm:$0xf]
    %v4853 = vld [vmem:[#allocation13 + $0xafc] sm:$0xf]
    %v4854 = vld [vmem:[#allocation13 + $0xb18] sm:$0xf]
    %v4855 = vld [vmem:[#allocation13 + $0xb34] sm:$0xf]
    %v4856 = vld [vmem:[#allocation13 + $0xb50] sm:$0xf]
    %v4857 = vld [vmem:[#allocation13 + $0xb6c] sm:$0xf]
    %v4858 = vld [vmem:[#allocation13 + $0xb88] sm:$0xf]
    %v4859 = vld [vmem:[#allocation13 + $0xba4] sm:$0xf]
    %v4860 = vld [vmem:[#allocation13 + $0xbc0] sm:$0xf]
    %v4861 = vld [vmem:[#allocation13 + $0xbdc] sm:$0xf]
    %v4862 = vld [vmem:[#allocation13 + $0xbf8] sm:$0xf]
    %v4863 = vld [vmem:[#allocation13 + $0xc14] sm:$0xf]
    %v4864 = vld [vmem:[#allocation13 + $0xc30] sm:$0xf]
    %v4865 = vld [vmem:[#allocation13 + $0xc4c] sm:$0xf]
    %v4866 = vld [vmem:[#allocation13 + $0xc68] sm:$0xf]
    %v4867 = vld [vmem:[#allocation13 + $0xc84] sm:$0xf]
    %v4868 = vld [vmem:[#allocation13 + $0xca0] sm:$0xf]
    %v4869 = vld [vmem:[#allocation13 + $0xcbc] sm:$0xf]
    %v4870 = vld [vmem:[#allocation13 + $0xcd8] sm:$0xf]
    %v4871 = vld [vmem:[#allocation13 + $0xcf4] sm:$0xf]
    %v4872 = vld [vmem:[#allocation13 + $0xd10] sm:$0xf]
    %v4873 = vld [vmem:[#allocation13 + $0xd2c] sm:$0xf]
    %v4874 = vld [vmem:[#allocation13 + $0xd48] sm:$0xf]
    %v4875 = vld [vmem:[#allocation13 + $0xd64] sm:$0xf]
    %v4876 = vld [vmem:[#allocation13 + $0xd80] sm:$0xf]
    %v4877 = vld [vmem:[#allocation13 + $0xd9c] sm:$0xf]
    %v4878 = vld [vmem:[#allocation13 + $0xdb8] sm:$0xf]
    %v4879 = vld [vmem:[#allocation13 + $0xdd4] sm:$0xf]
    %v4880 = vld [vmem:[#allocation13 + $0xdf0] sm:$0xf]
    %v4881 = vld [vmem:[#allocation14 + $0x3] sm:$0x1]
    %v4883 = vlaneseq
    %v4884 = vshrl.u32 %v4883, 7
    %v4885 = vsub.s32 0, %v4884
    %v4886 = vrot.slane %v4881, %v4885
    %v5016 = vunpack.c.l.b16 %v4753
    %v5017 = vunpack.c.l.b16 %v4754
    %v5018 = vunpack.c.l.b16 %v4755
    %v5019 = vunpack.c.l.b16 %v4756
    %v5020 = vunpack.c.l.b16 %v4757
    %v5021 = vunpack.c.l.b16 %v4758
    %v5022 = vunpack.c.l.b16 %v4759
    %v5023 = vunpack.c.l.b16 %v4760
    %v5024 = vunpack.c.l.b16 %v4761
    %v5025 = vunpack.c.l.b16 %v4762
    %v5026 = vunpack.c.l.b16 %v4763
    %v5027 = vunpack.c.l.b16 %v4764
    %v5028 = vunpack.c.l.b16 %v4765
    %v5029 = vunpack.c.l.b16 %v4766
    %v5030 = vunpack.c.l.b16 %v4767
    %v5031 = vunpack.c.l.b16 %v4768
    %v5032 = vunpack.c.l.b16 %v4769
    %v5033 = vunpack.c.l.b16 %v4770
    %v5034 = vunpack.c.l.b16 %v4771
    %v5035 = vunpack.c.l.b16 %v4772
    %v5036 = vunpack.c.l.b16 %v4773
    %v5037 = vunpack.c.l.b16 %v4774
    %v5038 = vunpack.c.l.b16 %v4775
    %v5039 = vunpack.c.l.b16 %v4776
    %v5040 = vunpack.c.l.b16 %v4777
    %v5041 = vunpack.c.l.b16 %v4778
    %v5042 = vunpack.c.l.b16 %v4779
    %v5043 = vunpack.c.l.b16 %v4780
    %v5044 = vunpack.c.l.b16 %v4781
    %v5045 = vunpack.c.l.b16 %v4782
    %v5046 = vunpack.c.l.b16 %v4783
    %v5047 = vunpack.c.l.b16 %v4784
    %v5048 = vunpack.c.l.b16 %v4785
    %v5049 = vunpack.c.l.b16 %v4786
    %v5050 = vunpack.c.l.b16 %v4787
    %v5051 = vunpack.c.l.b16 %v4788
    %v5052 = vunpack.c.l.b16 %v4789
    %v5053 = vunpack.c.l.b16 %v4790
    %v5054 = vunpack.c.l.b16 %v4791
    %v5055 = vunpack.c.l.b16 %v4792
    %v5056 = vunpack.c.l.b16 %v4793
    %v5057 = vunpack.c.l.b16 %v4794
    %v5058 = vunpack.c.l.b16 %v4795
    %v5059 = vunpack.c.l.b16 %v4796
    %v5060 = vunpack.c.l.b16 %v4797
    %v5061 = vunpack.c.l.b16 %v4798
    %v5062 = vunpack.c.l.b16 %v4799
    %v5063 = vunpack.c.l.b16 %v4800
    %v5064 = vunpack.c.l.b16 %v4801
    %v5065 = vunpack.c.l.b16 %v4802
    %v5066 = vunpack.c.l.b16 %v4803
    %v5067 = vunpack.c.l.b16 %v4804
    %v5068 = vunpack.c.l.b16 %v4805
    %v5069 = vunpack.c.l.b16 %v4806
    %v5070 = vunpack.c.l.b16 %v4807
    %v5071 = vunpack.c.l.b16 %v4808
    %v5072 = vunpack.c.l.b16 %v4809
    %v5073 = vunpack.c.l.b16 %v4810
    %v5074 = vunpack.c.l.b16 %v4811
    %v5075 = vunpack.c.l.b16 %v4812
    %v5076 = vunpack.c.l.b16 %v4813
    %v5077 = vunpack.c.l.b16 %v4814
    %v5078 = vunpack.c.l.b16 %v4815
    %v5079 = vunpack.c.l.b16 %v4816
    %v5080 = vunpack.c.l.b16 %v4817
    %v5081 = vunpack.c.l.b16 %v4818
    %v5082 = vunpack.c.l.b16 %v4819
    %v5083 = vunpack.c.l.b16 %v4820
    %v5084 = vunpack.c.l.b16 %v4821
    %v5085 = vunpack.c.l.b16 %v4822
    %v5086 = vunpack.c.l.b16 %v4823
    %v5087 = vunpack.c.l.b16 %v4824
    %v5088 = vunpack.c.l.b16 %v4825
    %v5089 = vunpack.c.l.b16 %v4826
    %v5090 = vunpack.c.l.b16 %v4827
    %v5091 = vunpack.c.l.b16 %v4828
    %v5092 = vunpack.c.l.b16 %v4829
    %v5093 = vunpack.c.l.b16 %v4830
    %v5094 = vunpack.c.l.b16 %v4831
    %v5095 = vunpack.c.l.b16 %v4832
    %v5096 = vunpack.c.l.b16 %v4833
    %v5097 = vunpack.c.l.b16 %v4834
    %v5098 = vunpack.c.l.b16 %v4835
    %v5099 = vunpack.c.l.b16 %v4836
    %v5100 = vunpack.c.l.b16 %v4837
    %v5101 = vunpack.c.l.b16 %v4838
    %v5102 = vunpack.c.l.b16 %v4839
    %v5103 = vunpack.c.l.b16 %v4840
    %v5104 = vunpack.c.l.b16 %v4841
    %v5105 = vunpack.c.l.b16 %v4842
    %v5106 = vunpack.c.l.b16 %v4843
    %v5107 = vunpack.c.l.b16 %v4844
    %v5108 = vunpack.c.l.b16 %v4845
    %v5109 = vunpack.c.l.b16 %v4846
    %v5110 = vunpack.c.l.b16 %v4847
    %v5111 = vunpack.c.l.b16 %v4848
    %v5112 = vunpack.c.l.b16 %v4849
    %v5113 = vunpack.c.l.b16 %v4850
    %v5114 = vunpack.c.l.b16 %v4851
    %v5115 = vunpack.c.l.b16 %v4852
    %v5116 = vunpack.c.l.b16 %v4853
    %v5117 = vunpack.c.l.b16 %v4854
    %v5118 = vunpack.c.l.b16 %v4855
    %v5119 = vunpack.c.l.b16 %v4856
    %v5120 = vunpack.c.l.b16 %v4857
    %v5121 = vunpack.c.l.b16 %v4858
    %v5122 = vunpack.c.l.b16 %v4859
    %v5123 = vunpack.c.l.b16 %v4860
    %v5124 = vunpack.c.l.b16 %v4861
    %v5125 = vunpack.c.l.b16 %v4862
    %v5126 = vunpack.c.l.b16 %v4863
    %v5127 = vunpack.c.l.b16 %v4864
    %v5128 = vunpack.c.l.b16 %v4865
    %v5129 = vunpack.c.l.b16 %v4866
    %v5130 = vunpack.c.l.b16 %v4867
    %v5131 = vunpack.c.l.b16 %v4868
    %v5132 = vunpack.c.l.b16 %v4869
    %v5133 = vunpack.c.l.b16 %v4870
    %v5134 = vunpack.c.l.b16 %v4871
    %v5135 = vunpack.c.l.b16 %v4872
    %v5136 = vunpack.c.l.b16 %v4873
    %v5137 = vunpack.c.l.b16 %v4874
    %v5138 = vunpack.c.l.b16 %v4875
    %v5139 = vunpack.c.l.b16 %v4876
    %v5140 = vunpack.c.l.b16 %v4877
    %v5141 = vunpack.c.l.b16 %v4878
    %v5142 = vunpack.c.l.b16 %v4879
    %v5143 = vunpack.c.l.b16 %v4880
    %v5144 = vpack.c.b16 %v5017, %v5016
    %v5145 = vpack.c.b16 %v5019, %v5018
    %v5146 = vpack.c.b16 %v5021, %v5020
    %v5147 = vpack.c.b16 %v5023, %v5022
    %v5148 = vpack.c.b16 %v5025, %v5024
    %v5149 = vpack.c.b16 %v5027, %v5026
    %v5150 = vpack.c.b16 %v5029, %v5028
    %v5151 = vpack.c.b16 %v5031, %v5030
    %v5152 = vpack.c.b16 %v5033, %v5032
    %v5153 = vpack.c.b16 %v5035, %v5034
    %v5154 = vpack.c.b16 %v5037, %v5036
    %v5155 = vpack.c.b16 %v5039, %v5038
    %v5156 = vpack.c.b16 %v5041, %v5040
    %v5157 = vpack.c.b16 %v5043, %v5042
    %v5158 = vpack.c.b16 %v5045, %v5044
    %v5159 = vpack.c.b16 %v5047, %v5046
    %v5160 = vpack.c.b16 %v5049, %v5048
    %v5161 = vpack.c.b16 %v5051, %v5050
    %v5162 = vpack.c.b16 %v5053, %v5052
    %v5163 = vpack.c.b16 %v5055, %v5054
    %v5164 = vpack.c.b16 %v5057, %v5056
    %v5165 = vpack.c.b16 %v5059, %v5058
    %v5166 = vpack.c.b16 %v5061, %v5060
    %v5167 = vpack.c.b16 %v5063, %v5062
    %v5168 = vpack.c.b16 %v5065, %v5064
    %v5169 = vpack.c.b16 %v5067, %v5066
    %v5170 = vpack.c.b16 %v5069, %v5068
    %v5171 = vpack.c.b16 %v5071, %v5070
    %v5172 = vpack.c.b16 %v5073, %v5072
    %v5173 = vpack.c.b16 %v5075, %v5074
    %v5174 = vpack.c.b16 %v5077, %v5076
    %v5175 = vpack.c.b16 %v5079, %v5078
    %v5176 = vpack.c.b16 %v5081, %v5080
    %v5177 = vpack.c.b16 %v5083, %v5082
    %v5178 = vpack.c.b16 %v5085, %v5084
    %v5179 = vpack.c.b16 %v5087, %v5086
    %v5180 = vpack.c.b16 %v5089, %v5088
    %v5181 = vpack.c.b16 %v5091, %v5090
    %v5182 = vpack.c.b16 %v5093, %v5092
    %v5183 = vpack.c.b16 %v5095, %v5094
    %v5184 = vpack.c.b16 %v5097, %v5096
    %v5185 = vpack.c.b16 %v5099, %v5098
    %v5186 = vpack.c.b16 %v5101, %v5100
    %v5187 = vpack.c.b16 %v5103, %v5102
    %v5188 = vpack.c.b16 %v5105, %v5104
    %v5189 = vpack.c.b16 %v5107, %v5106
    %v5190 = vpack.c.b16 %v5109, %v5108
    %v5191 = vpack.c.b16 %v5111, %v5110
    %v5192 = vpack.c.b16 %v5113, %v5112
    %v5193 = vpack.c.b16 %v5115, %v5114
    %v5194 = vpack.c.b16 %v5117, %v5116
    %v5195 = vpack.c.b16 %v5119, %v5118
    %v5196 = vpack.c.b16 %v5121, %v5120
    %v5197 = vpack.c.b16 %v5123, %v5122
    %v5198 = vpack.c.b16 %v5125, %v5124
    %v5199 = vpack.c.b16 %v5127, %v5126
    %v5200 = vpack.c.b16 %v5129, %v5128
    %v5201 = vpack.c.b16 %v5131, %v5130
    %v5202 = vpack.c.b16 %v5133, %v5132
    %v5203 = vpack.c.b16 %v5135, %v5134
    %v5204 = vpack.c.b16 %v5137, %v5136
    %v5205 = vpack.c.b16 %v5139, %v5138
    %v5206 = vpack.c.b16 %v5141, %v5140
    %v5207 = vpack.c.b16 %v5143, %v5142
    %5272 = vmatprep.subr.bf16.mxu0 0
    %5273 = vmatpush1.bf16.msra.mxu0 %v5144
    %5274 = vmatprep.subr.bf16.mxu0 0
    %5275 = vmatpush1.bf16.msra.mxu0 %v5145
    %5276 = vmatprep.subr.bf16.mxu0 0
    %5277 = vmatpush1.bf16.msra.mxu0 %v5146
    %5278 = vmatprep.subr.bf16.mxu0 0
    %5279 = vmatpush1.bf16.msra.mxu0 %v5147
    %5280 = vmatprep.subr.bf16.mxu0 0
    %5281 = vmatpush1.bf16.msra.mxu0 %v5148
    %5282 = vmatprep.subr.bf16.mxu0 0
    %5283 = vmatpush1.bf16.msra.mxu0 %v5149
    %5284 = vmatprep.subr.bf16.mxu0 0
    %5285 = vmatpush1.bf16.msra.mxu0 %v5150
    %5286 = vmatprep.subr.bf16.mxu0 0
    %5287 = vmatpush1.bf16.msra.mxu0 %v5151
    %5288 = vmatprep.subr.bf16.mxu0 0
    %5289 = vmatpush1.bf16.msra.mxu0 %v5152
    %5290 = vmatprep.subr.bf16.mxu0 0
    %5291 = vmatpush1.bf16.msra.mxu0 %v5153
    %5292 = vmatprep.subr.bf16.mxu0 0
    %5293 = vmatpush1.bf16.msra.mxu0 %v5154
    %5294 = vmatprep.subr.bf16.mxu0 0
    %5295 = vmatpush1.bf16.msra.mxu0 %v5155
    %5296 = vmatprep.subr.bf16.mxu0 0
    %5297 = vmatpush1.bf16.msra.mxu0 %v5156
    %5298 = vmatprep.subr.bf16.mxu0 0
    %5299 = vmatpush1.bf16.msra.mxu0 %v5157
    %5300 = vmatprep.subr.bf16.mxu0 0
    %5301 = vmatpush1.bf16.msra.mxu0 %v5158
    %5302 = vmatprep.subr.bf16.mxu0 0
    %5303 = vmatpush1.bf16.msra.mxu0 %v5159
    %5304 = vmatprep.mubr.bf16.mxu0 %v2700
    %5305 = vmatmul.mubr.bf16.gmra.mrb[0].mxu0 %v2699
    %v5306 = vpop.f32.mrb[0].mxu0
    %v5307 = vadd.f32 %v4886, %v5306
    %v5308 = vpop.f32.mrb[0].mxu0
    %v5309 = vpop.f32.mrb[0].mxu0
    %v5310 = vpop.f32.mrb[0].mxu0
    %5311 = vdwg.mxu0
    %5312 = vmatprep.subr.bf16.mxu0 0
    %5313 = vmatpush1.bf16.msra.mxu0 %v5160
    %5314 = vmatprep.subr.bf16.mxu0 0
    %5315 = vmatpush1.bf16.msra.mxu0 %v5161
    %5316 = vmatprep.subr.bf16.mxu0 0
    %5317 = vmatpush1.bf16.msra.mxu0 %v5162
    %5318 = vmatprep.subr.bf16.mxu0 0
    %5319 = vmatpush1.bf16.msra.mxu0 %v5163
    %5320 = vmatprep.subr.bf16.mxu0 0
    %5321 = vmatpush1.bf16.msra.mxu0 %v5164
    %5322 = vmatprep.subr.bf16.mxu0 0
    %5323 = vmatpush1.bf16.msra.mxu0 %v5165
    %5324 = vmatprep.subr.bf16.mxu0 0
    %5325 = vmatpush1.bf16.msra.mxu0 %v5166
    %5326 = vmatprep.subr.bf16.mxu0 0
    %5327 = vmatpush1.bf16.msra.mxu0 %v5167
    %5328 = vmatprep.subr.bf16.mxu0 0
    %5329 = vmatpush1.bf16.msra.mxu0 %v5168
    %5330 = vmatprep.subr.bf16.mxu0 0
    %5331 = vmatpush1.bf16.msra.mxu0 %v5169
    %5332 = vmatprep.subr.bf16.mxu0 0
    %5333 = vmatpush1.bf16.msra.mxu0 %v5170
    %5334 = vmatprep.subr.bf16.mxu0 0
    %5335 = vmatpush1.bf16.msra.mxu0 %v5171
    %5336 = vmatprep.subr.bf16.mxu0 0
    %5337 = vmatpush1.bf16.msra.mxu0 %v5172
    %5338 = vmatprep.subr.bf16.mxu0 0
    %5339 = vmatpush1.bf16.msra.mxu0 %v5173
    %5340 = vmatprep.subr.bf16.mxu0 0
    %5341 = vmatpush1.bf16.msra.mxu0 %v5174
    %5342 = vmatprep.subr.bf16.mxu0 0
    %5343 = vmatpush1.bf16.msra.mxu0 %v5175
    %5344 = vmatprep.mubr.bf16.mxu0 %v2702
    %5345 = vmatmul.mubr.bf16.gmra.mrb[0].mxu0 %v2701
    %v5346 = vpop.f32.mrb[0].mxu0
    %v5347 = vadd.f32 %v5307, %v5346
    %v5348 = vpop.f32.mrb[0].mxu0
    %v5349 = vpop.f32.mrb[0].mxu0
    %v5350 = vpop.f32.mrb[0].mxu0
    %5351 = vdwg.mxu0
    %5352 = vmatprep.subr.bf16.mxu0 0
    %5353 = vmatpush1.bf16.msra.mxu0 %v5176
    %5354 = vmatprep.subr.bf16.mxu0 0
    %5355 = vmatpush1.bf16.msra.mxu0 %v5177
    %5356 = vmatprep.subr.bf16.mxu0 0
    %5357 = vmatpush1.bf16.msra.mxu0 %v5178
    %5358 = vmatprep.subr.bf16.mxu0 0
    %5359 = vmatpush1.bf16.msra.mxu0 %v5179
    %5360 = vmatprep.subr.bf16.mxu0 0
    %5361 = vmatpush1.bf16.msra.mxu0 %v5180
    %5362 = vmatprep.subr.bf16.mxu0 0
    %5363 = vmatpush1.bf16.msra.mxu0 %v5181
    %5364 = vmatprep.subr.bf16.mxu0 0
    %5365 = vmatpush1.bf16.msra.mxu0 %v5182
    %5366 = vmatprep.subr.bf16.mxu0 0
    %5367 = vmatpush1.bf16.msra.mxu0 %v5183
    %5368 = vmatprep.subr.bf16.mxu0 0
    %5369 = vmatpush1.bf16.msra.mxu0 %v5184
    %5370 = vmatprep.subr.bf16.mxu0 0
    %5371 = vmatpush1.bf16.msra.mxu0 %v5185
    %5372 = vmatprep.subr.bf16.mxu0 0
    %5373 = vmatpush1.bf16.msra.mxu0 %v5186
    %5374 = vmatprep.subr.bf16.mxu0 0
    %5375 = vmatpush1.bf16.msra.mxu0 %v5187
    %5376 = vmatprep.subr.bf16.mxu0 0
    %5377 = vmatpush1.bf16.msra.mxu0 %v5188
    %5378 = vmatprep.subr.bf16.mxu0 0
    %5379 = vmatpush1.bf16.msra.mxu0 %v5189
    %5380 = vmatprep.subr.bf16.mxu0 0
    %5381 = vmatpush1.bf16.msra.mxu0 %v5190
    %5382 = vmatprep.subr.bf16.mxu0 0
    %5383 = vmatpush1.bf16.msra.mxu0 %v5191
    %5384 = vmatprep.mubr.bf16.mxu0 %v2704
    %5385 = vmatmul.mubr.bf16.gmra.mrb[0].mxu0 %v2703
    %v5386 = vpop.f32.mrb[0].mxu0
    %v5387 = vadd.f32 %v5347, %v5386
    %v5388 = vpop.f32.mrb[0].mxu0
    %v5389 = vpop.f32.mrb[0].mxu0
    %v5390 = vpop.f32.mrb[0].mxu0
    %5391 = vdwg.mxu0
    %5392 = vmatprep.subr.bf16.mxu0 0
    %5393 = vmatpush1.bf16.msra.mxu0 %v5192
    %5394 = vmatprep.subr.bf16.mxu0 0
    %5395 = vmatpush1.bf16.msra.mxu0 %v5193
    %5396 = vmatprep.subr.bf16.mxu0 0
    %5397 = vmatpush1.bf16.msra.mxu0 %v5194
    %5398 = vmatprep.subr.bf16.mxu0 0
    %5399 = vmatpush1.bf16.msra.mxu0 %v5195
    %5400 = vmatprep.subr.bf16.mxu0 0
    %5401 = vmatpush1.bf16.msra.mxu0 %v5196
    %5402 = vmatprep.subr.bf16.mxu0 0
    %5403 = vmatpush1.bf16.msra.mxu0 %v5197
    %5404 = vmatprep.subr.bf16.mxu0 0
    %5405 = vmatpush1.bf16.msra.mxu0 %v5198
    %5406 = vmatprep.subr.bf16.mxu0 0
    %5407 = vmatpush1.bf16.msra.mxu0 %v5199
    %5408 = vmatprep.subr.bf16.mxu0 0
    %5409 = vmatpush1.bf16.msra.mxu0 %v5200
    %5410 = vmatprep.subr.bf16.mxu0 0
    %5411 = vmatpush1.bf16.msra.mxu0 %v5201
    %5412 = vmatprep.subr.bf16.mxu0 0
    %5413 = vmatpush1.bf16.msra.mxu0 %v5202
    %5414 = vmatprep.subr.bf16.mxu0 0
    %5415 = vmatpush1.bf16.msra.mxu0 %v5203
    %5416 = vmatprep.subr.bf16.mxu0 0
    %5417 = vmatpush1.bf16.msra.mxu0 %v5204
    %5418 = vmatprep.subr.bf16.mxu0 0
    %5419 = vmatpush1.bf16.msra.mxu0 %v5205
    %5420 = vmatprep.subr.bf16.mxu0 0
    %5421 = vmatpush1.bf16.msra.mxu0 %v5206
    %5422 = vmatprep.subr.bf16.mxu0 0
    %5423 = vmatpush1.bf16.msra.mxu0 %v5207
    %5424 = vmatprep.mubr.bf16.mxu0 %v2706
    %5425 = vmatmul.mubr.bf16.gmra.mrb[0].mxu0 %v2705
    %v5426 = vpop.f32.mrb[0].mxu0
    %v5427 = vadd.f32 %v5387, %v5426
    %v5428 = vpop.f32.mrb[0].mxu0
    %v5429 = vpop.f32.mrb[0].mxu0
    %v5430 = vpop.f32.mrb[0].mxu0
    %5431 = vdwg.mxu0
    %v5432 = vtanh.pop %v5427
    %v5433 = vpack.c.bf16 %v5432, %v5432
    %5434 = vst [vmem:[#allocation16 + $0xc] sm:$0xf] %v5433
    %v5435 = vld [vmem:[#allocation13 + $0x10] sm:$0xf]
    %v5436 = vld [vmem:[#allocation13 + $0x2c] sm:$0xf]
    %v5437 = vld [vmem:[#allocation13 + $0x48] sm:$0xf]
    %v5438 = vld [vmem:[#allocation13 + $0x64] sm:$0xf]
    %v5439 = vld [vmem:[#allocation13 + $0x80] sm:$0xf]
    %v5440 = vld [vmem:[#allocation13 + $0x9c] sm:$0xf]
    %v5441 = vld [vmem:[#allocation13 + $0xb8] sm:$0xf]
    %v5442 = vld [vmem:[#allocation13 + $0xd4] sm:$0xf]
    %v5443 = vld [vmem:[#allocation13 + $0xf0] sm:$0xf]
    %v5444 = vld [vmem:[#allocation13 + $0x10c] sm:$0xf]
    %v5445 = vld [vmem:[#allocation13 + $0x128] sm:$0xf]
    %v5446 = vld [vmem:[#allocation13 + $0x144] sm:$0xf]
    %v5447 = vld [vmem:[#allocation13 + $0x160] sm:$0xf]
    %v5448 = vld [vmem:[#allocation13 + $0x17c] sm:$0xf]
    %v5449 = vld [vmem:[#allocation13 + $0x198] sm:$0xf]
    %v5450 = vld [vmem:[#allocation13 + $0x1b4] sm:$0xf]
    %v5451 = vld [vmem:[#allocation13 + $0x1d0] sm:$0xf]
    %v5452 = vld [vmem:[#allocation13 + $0x1ec] sm:$0xf]
    %v5453 = vld [vmem:[#allocation13 + $0x208] sm:$0xf]
    %v5454 = vld [vmem:[#allocation13 + $0x224] sm:$0xf]
    %v5455 = vld [vmem:[#allocation13 + $0x240] sm:$0xf]
    %v5456 = vld [vmem:[#allocation13 + $0x25c] sm:$0xf]
    %v5457 = vld [vmem:[#allocation13 + $0x278] sm:$0xf]
    %v5458 = vld [vmem:[#allocation13 + $0x294] sm:$0xf]
    %v5459 = vld [vmem:[#allocation13 + $0x2b0] sm:$0xf]
    %v5460 = vld [vmem:[#allocation13 + $0x2cc] sm:$0xf]
    %v5461 = vld [vmem:[#allocation13 + $0x2e8] sm:$0xf]
    %v5462 = vld [vmem:[#allocation13 + $0x304] sm:$0xf]
    %v5463 = vld [vmem:[#allocation13 + $0x320] sm:$0xf]
    %v5464 = vld [vmem:[#allocation13 + $0x33c] sm:$0xf]
    %v5465 = vld [vmem:[#allocation13 + $0x358] sm:$0xf]
    %v5466 = vld [vmem:[#allocation13 + $0x374] sm:$0xf]
    %v5467 = vld [vmem:[#allocation13 + $0x390] sm:$0xf]
    %v5468 = vld [vmem:[#allocation13 + $0x3ac] sm:$0xf]
    %v5469 = vld [vmem:[#allocation13 + $0x3c8] sm:$0xf]
    %v5470 = vld [vmem:[#allocation13 + $0x3e4] sm:$0xf]
    %v5471 = vld [vmem:[#allocation13 + $0x400] sm:$0xf]
    %v5472 = vld [vmem:[#allocation13 + $0x41c] sm:$0xf]
    %v5473 = vld [vmem:[#allocation13 + $0x438] sm:$0xf]
    %v5474 = vld [vmem:[#allocation13 + $0x454] sm:$0xf]
    %v5475 = vld [vmem:[#allocation13 + $0x470] sm:$0xf]
    %v5476 = vld [vmem:[#allocation13 + $0x48c] sm:$0xf]
    %v5477 = vld [vmem:[#allocation13 + $0x4a8] sm:$0xf]
    %v5478 = vld [vmem:[#allocation13 + $0x4c4] sm:$0xf]
    %v5479 = vld [vmem:[#allocation13 + $0x4e0] sm:$0xf]
    %v5480 = vld [vmem:[#allocation13 + $0x4fc] sm:$0xf]
    %v5481 = vld [vmem:[#allocation13 + $0x518] sm:$0xf]
    %v5482 = vld [vmem:[#allocation13 + $0x534] sm:$0xf]
    %v5483 = vld [vmem:[#allocation13 + $0x550] sm:$0xf]
    %v5484 = vld [vmem:[#allocation13 + $0x56c] sm:$0xf]
    %v5485 = vld [vmem:[#allocation13 + $0x588] sm:$0xf]
    %v5486 = vld [vmem:[#allocation13 + $0x5a4] sm:$0xf]
    %v5487 = vld [vmem:[#allocation13 + $0x5c0] sm:$0xf]
    %v5488 = vld [vmem:[#allocation13 + $0x5dc] sm:$0xf]
    %v5489 = vld [vmem:[#allocation13 + $0x5f8] sm:$0xf]
    %v5490 = vld [vmem:[#allocation13 + $0x614] sm:$0xf]
    %v5491 = vld [vmem:[#allocation13 + $0x630] sm:$0xf]
    %v5492 = vld [vmem:[#allocation13 + $0x64c] sm:$0xf]
    %v5493 = vld [vmem:[#allocation13 + $0x668] sm:$0xf]
    %v5494 = vld [vmem:[#allocation13 + $0x684] sm:$0xf]
    %v5495 = vld [vmem:[#allocation13 + $0x6a0] sm:$0xf]
    %v5496 = vld [vmem:[#allocation13 + $0x6bc] sm:$0xf]
    %v5497 = vld [vmem:[#allocation13 + $0x6d8] sm:$0xf]
    %v5498 = vld [vmem:[#allocation13 + $0x6f4] sm:$0xf]
    %v5499 = vld [vmem:[#allocation13 + $0x710] sm:$0xf]
    %v5500 = vld [vmem:[#allocation13 + $0x72c] sm:$0xf]
    %v5501 = vld [vmem:[#allocation13 + $0x748] sm:$0xf]
    %v5502 = vld [vmem:[#allocation13 + $0x764] sm:$0xf]
    %v5503 = vld [vmem:[#allocation13 + $0x780] sm:$0xf]
    %v5504 = vld [vmem:[#allocation13 + $0x79c] sm:$0xf]
    %v5505 = vld [vmem:[#allocation13 + $0x7b8] sm:$0xf]
    %v5506 = vld [vmem:[#allocation13 + $0x7d4] sm:$0xf]
    %v5507 = vld [vmem:[#allocation13 + $0x7f0] sm:$0xf]
    %v5508 = vld [vmem:[#allocation13 + $0x80c] sm:$0xf]
    %v5509 = vld [vmem:[#allocation13 + $0x828] sm:$0xf]
    %v5510 = vld [vmem:[#allocation13 + $0x844] sm:$0xf]
    %v5511 = vld [vmem:[#allocation13 + $0x860] sm:$0xf]
    %v5512 = vld [vmem:[#allocation13 + $0x87c] sm:$0xf]
    %v5513 = vld [vmem:[#allocation13 + $0x898] sm:$0xf]
    %v5514 = vld [vmem:[#allocation13 + $0x8b4] sm:$0xf]
    %v5515 = vld [vmem:[#allocation13 + $0x8d0] sm:$0xf]
    %v5516 = vld [vmem:[#allocation13 + $0x8ec] sm:$0xf]
    %v5517 = vld [vmem:[#allocation13 + $0x908] sm:$0xf]
    %v5518 = vld [vmem:[#allocation13 + $0x924] sm:$0xf]
    %v5519 = vld [vmem:[#allocation13 + $0x940] sm:$0xf]
    %v5520 = vld [vmem:[#allocation13 + $0x95c] sm:$0xf]
    %v5521 = vld [vmem:[#allocation13 + $0x978] sm:$0xf]
    %v5522 = vld [vmem:[#allocation13 + $0x994] sm:$0xf]
    %v5523 = vld [vmem:[#allocation13 + $0x9b0] sm:$0xf]
    %v5524 = vld [vmem:[#allocation13 + $0x9cc] sm:$0xf]
    %v5525 = vld [vmem:[#allocation13 + $0x9e8] sm:$0xf]
    %v5526 = vld [vmem:[#allocation13 + $0xa04] sm:$0xf]
    %v5527 = vld [vmem:[#allocation13 + $0xa20] sm:$0xf]
    %v5528 = vld [vmem:[#allocation13 + $0xa3c] sm:$0xf]
    %v5529 = vld [vmem:[#allocation13 + $0xa58] sm:$0xf]
    %v5530 = vld [vmem:[#allocation13 + $0xa74] sm:$0xf]
    %v5531 = vld [vmem:[#allocation13 + $0xa90] sm:$0xf]
    %v5532 = vld [vmem:[#allocation13 + $0xaac] sm:$0xf]
    %v5533 = vld [vmem:[#allocation13 + $0xac8] sm:$0xf]
    %v5534 = vld [vmem:[#allocation13 + $0xae4] sm:$0xf]
    %v5535 = vld [vmem:[#allocation13 + $0xb00] sm:$0xf]
    %v5536 = vld [vmem:[#allocation13 + $0xb1c] sm:$0xf]
    %v5537 = vld [vmem:[#allocation13 + $0xb38] sm:$0xf]
    %v5538 = vld [vmem:[#allocation13 + $0xb54] sm:$0xf]
    %v5539 = vld [vmem:[#allocation13 + $0xb70] sm:$0xf]
    %v5540 = vld [vmem:[#allocation13 + $0xb8c] sm:$0xf]
    %v5541 = vld [vmem:[#allocation13 + $0xba8] sm:$0xf]
    %v5542 = vld [vmem:[#allocation13 + $0xbc4] sm:$0xf]
    %v5543 = vld [vmem:[#allocation13 + $0xbe0] sm:$0xf]
    %v5544 = vld [vmem:[#allocation13 + $0xbfc] sm:$0xf]
    %v5545 = vld [vmem:[#allocation13 + $0xc18] sm:$0xf]
    %v5546 = vld [vmem:[#allocation13 + $0xc34] sm:$0xf]
    %v5547 = vld [vmem:[#allocation13 + $0xc50] sm:$0xf]
    %v5548 = vld [vmem:[#allocation13 + $0xc6c] sm:$0xf]
    %v5549 = vld [vmem:[#allocation13 + $0xc88] sm:$0xf]
    %v5550 = vld [vmem:[#allocation13 + $0xca4] sm:$0xf]
    %v5551 = vld [vmem:[#allocation13 + $0xcc0] sm:$0xf]
    %v5552 = vld [vmem:[#allocation13 + $0xcdc] sm:$0xf]
    %v5553 = vld [vmem:[#allocation13 + $0xcf8] sm:$0xf]
    %v5554 = vld [vmem:[#allocation13 + $0xd14] sm:$0xf]
    %v5555 = vld [vmem:[#allocation13 + $0xd30] sm:$0xf]
    %v5556 = vld [vmem:[#allocation13 + $0xd4c] sm:$0xf]
    %v5557 = vld [vmem:[#allocation13 + $0xd68] sm:$0xf]
    %v5558 = vld [vmem:[#allocation13 + $0xd84] sm:$0xf]
    %v5559 = vld [vmem:[#allocation13 + $0xda0] sm:$0xf]
    %v5560 = vld [vmem:[#allocation13 + $0xdbc] sm:$0xf]
    %v5561 = vld [vmem:[#allocation13 + $0xdd8] sm:$0xf]
    %v5562 = vld [vmem:[#allocation13 + $0xdf4] sm:$0xf]
    %v5563 = vld [vmem:[#allocation14 + $0x4] sm:$0x1]
    %v5565 = vlaneseq
    %v5566 = vshrl.u32 %v5565, 7
    %v5567 = vsub.s32 0, %v5566
    %v5568 = vrot.slane %v5563, %v5567
    %v5698 = vunpack.c.l.b16 %v5435
    %v5699 = vunpack.c.l.b16 %v5436
    %v5700 = vunpack.c.l.b16 %v5437
    %v5701 = vunpack.c.l.b16 %v5438
    %v5702 = vunpack.c.l.b16 %v5439
    %v5703 = vunpack.c.l.b16 %v5440
    %v5704 = vunpack.c.l.b16 %v5441
    %v5705 = vunpack.c.l.b16 %v5442
    %v5706 = vunpack.c.l.b16 %v5443
    %v5707 = vunpack.c.l.b16 %v5444
    %v5708 = vunpack.c.l.b16 %v5445
    %v5709 = vunpack.c.l.b16 %v5446
    %v5710 = vunpack.c.l.b16 %v5447
    %v5711 = vunpack.c.l.b16 %v5448
    %v5712 = vunpack.c.l.b16 %v5449
    %v5713 = vunpack.c.l.b16 %v5450
    %v5714 = vunpack.c.l.b16 %v5451
    %v5715 = vunpack.c.l.b16 %v5452
    %v5716 = vunpack.c.l.b16 %v5453
    %v5717 = vunpack.c.l.b16 %v5454
    %v5718 = vunpack.c.l.b16 %v5455
    %v5719 = vunpack.c.l.b16 %v5456
    %v5720 = vunpack.c.l.b16 %v5457
    %v5721 = vunpack.c.l.b16 %v5458
    %v5722 = vunpack.c.l.b16 %v5459
    %v5723 = vunpack.c.l.b16 %v5460
    %v5724 = vunpack.c.l.b16 %v5461
    %v5725 = vunpack.c.l.b16 %v5462
    %v5726 = vunpack.c.l.b16 %v5463
    %v5727 = vunpack.c.l.b16 %v5464
    %v5728 = vunpack.c.l.b16 %v5465
    %v5729 = vunpack.c.l.b16 %v5466
    %v5730 = vunpack.c.l.b16 %v5467
    %v5731 = vunpack.c.l.b16 %v5468
    %v5732 = vunpack.c.l.b16 %v5469
    %v5733 = vunpack.c.l.b16 %v5470
    %v5734 = vunpack.c.l.b16 %v5471
    %v5735 = vunpack.c.l.b16 %v5472
    %v5736 = vunpack.c.l.b16 %v5473
    %v5737 = vunpack.c.l.b16 %v5474
    %v5738 = vunpack.c.l.b16 %v5475
    %v5739 = vunpack.c.l.b16 %v5476
    %v5740 = vunpack.c.l.b16 %v5477
    %v5741 = vunpack.c.l.b16 %v5478
    %v5742 = vunpack.c.l.b16 %v5479
    %v5743 = vunpack.c.l.b16 %v5480
    %v5744 = vunpack.c.l.b16 %v5481
    %v5745 = vunpack.c.l.b16 %v5482
    %v5746 = vunpack.c.l.b16 %v5483
    %v5747 = vunpack.c.l.b16 %v5484
    %v5748 = vunpack.c.l.b16 %v5485
    %v5749 = vunpack.c.l.b16 %v5486
    %v5750 = vunpack.c.l.b16 %v5487
    %v5751 = vunpack.c.l.b16 %v5488
    %v5752 = vunpack.c.l.b16 %v5489
    %v5753 = vunpack.c.l.b16 %v5490
    %v5754 = vunpack.c.l.b16 %v5491
    %v5755 = vunpack.c.l.b16 %v5492
    %v5756 = vunpack.c.l.b16 %v5493
    %v5757 = vunpack.c.l.b16 %v5494
    %v5758 = vunpack.c.l.b16 %v5495
    %v5759 = vunpack.c.l.b16 %v5496
    %v5760 = vunpack.c.l.b16 %v5497
    %v5761 = vunpack.c.l.b16 %v5498
    %v5762 = vunpack.c.l.b16 %v5499
    %v5763 = vunpack.c.l.b16 %v5500
    %v5764 = vunpack.c.l.b16 %v5501
    %v5765 = vunpack.c.l.b16 %v5502
    %v5766 = vunpack.c.l.b16 %v5503
    %v5767 = vunpack.c.l.b16 %v5504
    %v5768 = vunpack.c.l.b16 %v5505
    %v5769 = vunpack.c.l.b16 %v5506
    %v5770 = vunpack.c.l.b16 %v5507
    %v5771 = vunpack.c.l.b16 %v5508
    %v5772 = vunpack.c.l.b16 %v5509
    %v5773 = vunpack.c.l.b16 %v5510
    %v5774 = vunpack.c.l.b16 %v5511
    %v5775 = vunpack.c.l.b16 %v5512
    %v5776 = vunpack.c.l.b16 %v5513
    %v5777 = vunpack.c.l.b16 %v5514
    %v5778 = vunpack.c.l.b16 %v5515
    %v5779 = vunpack.c.l.b16 %v5516
    %v5780 = vunpack.c.l.b16 %v5517
    %v5781 = vunpack.c.l.b16 %v5518
    %v5782 = vunpack.c.l.b16 %v5519
    %v5783 = vunpack.c.l.b16 %v5520
    %v5784 = vunpack.c.l.b16 %v5521
    %v5785 = vunpack.c.l.b16 %v5522
    %v5786 = vunpack.c.l.b16 %v5523
    %v5787 = vunpack.c.l.b16 %v5524
    %v5788 = vunpack.c.l.b16 %v5525
    %v5789 = vunpack.c.l.b16 %v5526
    %v5790 = vunpack.c.l.b16 %v5527
    %v5791 = vunpack.c.l.b16 %v5528
    %v5792 = vunpack.c.l.b16 %v5529
    %v5793 = vunpack.c.l.b16 %v5530
    %v5794 = vunpack.c.l.b16 %v5531
    %v5795 = vunpack.c.l.b16 %v5532
    %v5796 = vunpack.c.l.b16 %v5533
    %v5797 = vunpack.c.l.b16 %v5534
    %v5798 = vunpack.c.l.b16 %v5535
    %v5799 = vunpack.c.l.b16 %v5536
    %v5800 = vunpack.c.l.b16 %v5537
    %v5801 = vunpack.c.l.b16 %v5538
    %v5802 = vunpack.c.l.b16 %v5539
    %v5803 = vunpack.c.l.b16 %v5540
    %v5804 = vunpack.c.l.b16 %v5541
    %v5805 = vunpack.c.l.b16 %v5542
    %v5806 = vunpack.c.l.b16 %v5543
    %v5807 = vunpack.c.l.b16 %v5544
    %v5808 = vunpack.c.l.b16 %v5545
    %v5809 = vunpack.c.l.b16 %v5546
    %v5810 = vunpack.c.l.b16 %v5547
    %v5811 = vunpack.c.l.b16 %v5548
    %v5812 = vunpack.c.l.b16 %v5549
    %v5813 = vunpack.c.l.b16 %v5550
    %v5814 = vunpack.c.l.b16 %v5551
    %v5815 = vunpack.c.l.b16 %v5552
    %v5816 = vunpack.c.l.b16 %v5553
    %v5817 = vunpack.c.l.b16 %v5554
    %v5818 = vunpack.c.l.b16 %v5555
    %v5819 = vunpack.c.l.b16 %v5556
    %v5820 = vunpack.c.l.b16 %v5557
    %v5821 = vunpack.c.l.b16 %v5558
    %v5822 = vunpack.c.l.b16 %v5559
    %v5823 = vunpack.c.l.b16 %v5560
    %v5824 = vunpack.c.l.b16 %v5561
    %v5825 = vunpack.c.l.b16 %v5562
    %v5826 = vpack.c.b16 %v5699, %v5698
    %v5827 = vpack.c.b16 %v5701, %v5700
    %v5828 = vpack.c.b16 %v5703, %v5702
    %v5829 = vpack.c.b16 %v5705, %v5704
    %v5830 = vpack.c.b16 %v5707, %v5706
    %v5831 = vpack.c.b16 %v5709, %v5708
    %v5832 = vpack.c.b16 %v5711, %v5710
    %v5833 = vpack.c.b16 %v5713, %v5712
    %v5834 = vpack.c.b16 %v5715, %v5714
    %v5835 = vpack.c.b16 %v5717, %v5716
    %v5836 = vpack.c.b16 %v5719, %v5718
    %v5837 = vpack.c.b16 %v5721, %v5720
    %v5838 = vpack.c.b16 %v5723, %v5722
    %v5839 = vpack.c.b16 %v5725, %v5724
    %v5840 = vpack.c.b16 %v5727, %v5726
    %v5841 = vpack.c.b16 %v5729, %v5728
    %v5842 = vpack.c.b16 %v5731, %v5730
    %v5843 = vpack.c.b16 %v5733, %v5732
    %v5844 = vpack.c.b16 %v5735, %v5734
    %v5845 = vpack.c.b16 %v5737, %v5736
    %v5846 = vpack.c.b16 %v5739, %v5738
    %v5847 = vpack.c.b16 %v5741, %v5740
    %v5848 = vpack.c.b16 %v5743, %v5742
    %v5849 = vpack.c.b16 %v5745, %v5744
    %v5850 = vpack.c.b16 %v5747, %v5746
    %v5851 = vpack.c.b16 %v5749, %v5748
    %v5852 = vpack.c.b16 %v5751, %v5750
    %v5853 = vpack.c.b16 %v5753, %v5752
    %v5854 = vpack.c.b16 %v5755, %v5754
    %v5855 = vpack.c.b16 %v5757, %v5756
    %v5856 = vpack.c.b16 %v5759, %v5758
    %v5857 = vpack.c.b16 %v5761, %v5760
    %v5858 = vpack.c.b16 %v5763, %v5762
    %v5859 = vpack.c.b16 %v5765, %v5764
    %v5860 = vpack.c.b16 %v5767, %v5766
    %v5861 = vpack.c.b16 %v5769, %v5768
    %v5862 = vpack.c.b16 %v5771, %v5770
    %v5863 = vpack.c.b16 %v5773, %v5772
    %v5864 = vpack.c.b16 %v5775, %v5774
    %v5865 = vpack.c.b16 %v5777, %v5776
    %v5866 = vpack.c.b16 %v5779, %v5778
    %v5867 = vpack.c.b16 %v5781, %v5780
    %v5868 = vpack.c.b16 %v5783, %v5782
    %v5869 = vpack.c.b16 %v5785, %v5784
    %v5870 = vpack.c.b16 %v5787, %v5786
    %v5871 = vpack.c.b16 %v5789, %v5788
    %v5872 = vpack.c.b16 %v5791, %v5790
    %v5873 = vpack.c.b16 %v5793, %v5792
    %v5874 = vpack.c.b16 %v5795, %v5794
    %v5875 = vpack.c.b16 %v5797, %v5796
    %v5876 = vpack.c.b16 %v5799, %v5798
    %v5877 = vpack.c.b16 %v5801, %v5800
    %v5878 = vpack.c.b16 %v5803, %v5802
    %v5879 = vpack.c.b16 %v5805, %v5804
    %v5880 = vpack.c.b16 %v5807, %v5806
    %v5881 = vpack.c.b16 %v5809, %v5808
    %v5882 = vpack.c.b16 %v5811, %v5810
    %v5883 = vpack.c.b16 %v5813, %v5812
    %v5884 = vpack.c.b16 %v5815, %v5814
    %v5885 = vpack.c.b16 %v5817, %v5816
    %v5886 = vpack.c.b16 %v5819, %v5818
    %v5887 = vpack.c.b16 %v5821, %v5820
    %v5888 = vpack.c.b16 %v5823, %v5822
    %v5889 = vpack.c.b16 %v5825, %v5824
    %5954 = vmatprep.subr.bf16.mxu0 0
    %5955 = vmatpush1.bf16.msra.mxu0 %v5826
    %5956 = vmatprep.subr.bf16.mxu0 0
    %5957 = vmatpush1.bf16.msra.mxu0 %v5827
    %5958 = vmatprep.subr.bf16.mxu0 0
    %5959 = vmatpush1.bf16.msra.mxu0 %v5828
    %5960 = vmatprep.subr.bf16.mxu0 0
    %5961 = vmatpush1.bf16.msra.mxu0 %v5829
    %5962 = vmatprep.subr.bf16.mxu0 0
    %5963 = vmatpush1.bf16.msra.mxu0 %v5830
    %5964 = vmatprep.subr.bf16.mxu0 0
    %5965 = vmatpush1.bf16.msra.mxu0 %v5831
    %5966 = vmatprep.subr.bf16.mxu0 0
    %5967 = vmatpush1.bf16.msra.mxu0 %v5832
    %5968 = vmatprep.subr.bf16.mxu0 0
    %5969 = vmatpush1.bf16.msra.mxu0 %v5833
    %5970 = vmatprep.subr.bf16.mxu0 0
    %5971 = vmatpush1.bf16.msra.mxu0 %v5834
    %5972 = vmatprep.subr.bf16.mxu0 0
    %5973 = vmatpush1.bf16.msra.mxu0 %v5835
    %5974 = vmatprep.subr.bf16.mxu0 0
    %5975 = vmatpush1.bf16.msra.mxu0 %v5836
    %5976 = vmatprep.subr.bf16.mxu0 0
    %5977 = vmatpush1.bf16.msra.mxu0 %v5837
    %5978 = vmatprep.subr.bf16.mxu0 0
    %5979 = vmatpush1.bf16.msra.mxu0 %v5838
    %5980 = vmatprep.subr.bf16.mxu0 0
    %5981 = vmatpush1.bf16.msra.mxu0 %v5839
    %5982 = vmatprep.subr.bf16.mxu0 0
    %5983 = vmatpush1.bf16.msra.mxu0 %v5840
    %5984 = vmatprep.subr.bf16.mxu0 0
    %5985 = vmatpush1.bf16.msra.mxu0 %v5841
    %5986 = vmatprep.mubr.bf16.mxu0 %v2700
    %5987 = vmatmul.mubr.bf16.gmra.mrb[0].mxu0 %v2699
    %v5988 = vpop.f32.mrb[0].mxu0
    %v5989 = vadd.f32 %v5568, %v5988
    %v5990 = vpop.f32.mrb[0].mxu0
    %v5991 = vpop.f32.mrb[0].mxu0
    %v5992 = vpop.f32.mrb[0].mxu0
    %5993 = vdwg.mxu0
    %5994 = vmatprep.subr.bf16.mxu0 0
    %5995 = vmatpush1.bf16.msra.mxu0 %v5842
    %5996 = vmatprep.subr.bf16.mxu0 0
    %5997 = vmatpush1.bf16.msra.mxu0 %v5843
    %5998 = vmatprep.subr.bf16.mxu0 0
    %5999 = vmatpush1.bf16.msra.mxu0 %v5844
    %6000 = vmatprep.subr.bf16.mxu0 0
    %6001 = vmatpush1.bf16.msra.mxu0 %v5845
    %6002 = vmatprep.subr.bf16.mxu0 0
    %6003 = vmatpush1.bf16.msra.mxu0 %v5846
    %6004 = vmatprep.subr.bf16.mxu0 0
    %6005 = vmatpush1.bf16.msra.mxu0 %v5847
    %6006 = vmatprep.subr.bf16.mxu0 0
    %6007 = vmatpush1.bf16.msra.mxu0 %v5848
    %6008 = vmatprep.subr.bf16.mxu0 0
    %6009 = vmatpush1.bf16.msra.mxu0 %v5849
    %6010 = vmatprep.subr.bf16.mxu0 0
    %6011 = vmatpush1.bf16.msra.mxu0 %v5850
    %6012 = vmatprep.subr.bf16.mxu0 0
    %6013 = vmatpush1.bf16.msra.mxu0 %v5851
    %6014 = vmatprep.subr.bf16.mxu0 0
    %6015 = vmatpush1.bf16.msra.mxu0 %v5852
    %6016 = vmatprep.subr.bf16.mxu0 0
    %6017 = vmatpush1.bf16.msra.mxu0 %v5853
    %6018 = vmatprep.subr.bf16.mxu0 0
    %6019 = vmatpush1.bf16.msra.mxu0 %v5854
    %6020 = vmatprep.subr.bf16.mxu0 0
    %6021 = vmatpush1.bf16.msra.mxu0 %v5855
    %6022 = vmatprep.subr.bf16.mxu0 0
    %6023 = vmatpush1.bf16.msra.mxu0 %v5856
    %6024 = vmatprep.subr.bf16.mxu0 0
    %6025 = vmatpush1.bf16.msra.mxu0 %v5857
    %6026 = vmatprep.mubr.bf16.mxu0 %v2702
    %6027 = vmatmul.mubr.bf16.gmra.mrb[0].mxu0 %v2701
    %v6028 = vpop.f32.mrb[0].mxu0
    %v6029 = vadd.f32 %v5989, %v6028
    %v6030 = vpop.f32.mrb[0].mxu0
    %v6031 = vpop.f32.mrb[0].mxu0
    %v6032 = vpop.f32.mrb[0].mxu0
    %6033 = vdwg.mxu0
    %6034 = vmatprep.subr.bf16.mxu0 0
    %6035 = vmatpush1.bf16.msra.mxu0 %v5858
    %6036 = vmatprep.subr.bf16.mxu0 0
    %6037 = vmatpush1.bf16.msra.mxu0 %v5859
    %6038 = vmatprep.subr.bf16.mxu0 0
    %6039 = vmatpush1.bf16.msra.mxu0 %v5860
    %6040 = vmatprep.subr.bf16.mxu0 0
    %6041 = vmatpush1.bf16.msra.mxu0 %v5861
    %6042 = vmatprep.subr.bf16.mxu0 0
    %6043 = vmatpush1.bf16.msra.mxu0 %v5862
    %6044 = vmatprep.subr.bf16.mxu0 0
    %6045 = vmatpush1.bf16.msra.mxu0 %v5863
    %6046 = vmatprep.subr.bf16.mxu0 0
    %6047 = vmatpush1.bf16.msra.mxu0 %v5864
    %6048 = vmatprep.subr.bf16.mxu0 0
    %6049 = vmatpush1.bf16.msra.mxu0 %v5865
    %6050 = vmatprep.subr.bf16.mxu0 0
    %6051 = vmatpush1.bf16.msra.mxu0 %v5866
    %6052 = vmatprep.subr.bf16.mxu0 0
    %6053 = vmatpush1.bf16.msra.mxu0 %v5867
    %6054 = vmatprep.subr.bf16.mxu0 0
    %6055 = vmatpush1.bf16.msra.mxu0 %v5868
    %6056 = vmatprep.subr.bf16.mxu0 0
    %6057 = vmatpush1.bf16.msra.mxu0 %v5869
    %6058 = vmatprep.subr.bf16.mxu0 0
    %6059 = vmatpush1.bf16.msra.mxu0 %v5870
    %6060 = vmatprep.subr.bf16.mxu0 0
    %6061 = vmatpush1.bf16.msra.mxu0 %v5871
    %6062 = vmatprep.subr.bf16.mxu0 0
    %6063 = vmatpush1.bf16.msra.mxu0 %v5872
    %6064 = vmatprep.subr.bf16.mxu0 0
    %6065 = vmatpush1.bf16.msra.mxu0 %v5873
    %6066 = vmatprep.mubr.bf16.mxu0 %v2704
    %6067 = vmatmul.mubr.bf16.gmra.mrb[0].mxu0 %v2703
    %v6068 = vpop.f32.mrb[0].mxu0
    %v6069 = vadd.f32 %v6029, %v6068
    %v6070 = vpop.f32.mrb[0].mxu0
    %v6071 = vpop.f32.mrb[0].mxu0
    %v6072 = vpop.f32.mrb[0].mxu0
    %6073 = vdwg.mxu0
    %6074 = vmatprep.subr.bf16.mxu0 0
    %6075 = vmatpush1.bf16.msra.mxu0 %v5874
    %6076 = vmatprep.subr.bf16.mxu0 0
    %6077 = vmatpush1.bf16.msra.mxu0 %v5875
    %6078 = vmatprep.subr.bf16.mxu0 0
    %6079 = vmatpush1.bf16.msra.mxu0 %v5876
    %6080 = vmatprep.subr.bf16.mxu0 0
    %6081 = vmatpush1.bf16.msra.mxu0 %v5877
    %6082 = vmatprep.subr.bf16.mxu0 0
    %6083 = vmatpush1.bf16.msra.mxu0 %v5878
    %6084 = vmatprep.subr.bf16.mxu0 0
    %6085 = vmatpush1.bf16.msra.mxu0 %v5879
    %6086 = vmatprep.subr.bf16.mxu0 0
    %6087 = vmatpush1.bf16.msra.mxu0 %v5880
    %6088 = vmatprep.subr.bf16.mxu0 0
    %6089 = vmatpush1.bf16.msra.mxu0 %v5881
    %6090 = vmatprep.subr.bf16.mxu0 0
    %6091 = vmatpush1.bf16.msra.mxu0 %v5882
    %6092 = vmatprep.subr.bf16.mxu0 0
    %6093 = vmatpush1.bf16.msra.mxu0 %v5883
    %6094 = vmatprep.subr.bf16.mxu0 0
    %6095 = vmatpush1.bf16.msra.mxu0 %v5884
    %6096 = vmatprep.subr.bf16.mxu0 0
    %6097 = vmatpush1.bf16.msra.mxu0 %v5885
    %6098 = vmatprep.subr.bf16.mxu0 0
    %6099 = vmatpush1.bf16.msra.mxu0 %v5886
    %6100 = vmatprep.subr.bf16.mxu0 0
    %6101 = vmatpush1.bf16.msra.mxu0 %v5887
    %6102 = vmatprep.subr.bf16.mxu0 0
    %6103 = vmatpush1.bf16.msra.mxu0 %v5888
    %6104 = vmatprep.subr.bf16.mxu0 0
    %6105 = vmatpush1.bf16.msra.mxu0 %v5889
    %6106 = vmatprep.mubr.bf16.mxu0 %v2706
    %6107 = vmatmul.mubr.bf16.gmra.mrb[0].mxu0 %v2705
    %v6108 = vpop.f32.mrb[0].mxu0
    %v6109 = vadd.f32 %v6069, %v6108
    %v6110 = vpop.f32.mrb[0].mxu0
    %v6111 = vpop.f32.mrb[0].mxu0
    %v6112 = vpop.f32.mrb[0].mxu0
    %6113 = vdwg.mxu0
    %v6114 = vtanh.pop %v6109
    %v6115 = vpack.c.bf16 %v6114, %v6114
    %6116 = vst [vmem:[#allocation16 + $0x10] sm:$0xf] %v6115
    %v6117 = vld [vmem:[#allocation13 + $0x14] sm:$0xf]
    %v6118 = vld [vmem:[#allocation13 + $0x30] sm:$0xf]
    %v6119 = vld [vmem:[#allocation13 + $0x4c] sm:$0xf]
    %v6120 = vld [vmem:[#allocation13 + $0x68] sm:$0xf]
    %v6121 = vld [vmem:[#allocation13 + $0x84] sm:$0xf]
    %v6122 = vld [vmem:[#allocation13 + $0xa0] sm:$0xf]
    %v6123 = vld [vmem:[#allocation13 + $0xbc] sm:$0xf]
    %v6124 = vld [vmem:[#allocation13 + $0xd8] sm:$0xf]
    %v6125 = vld [vmem:[#allocation13 + $0xf4] sm:$0xf]
    %v6126 = vld [vmem:[#allocation13 + $0x110] sm:$0xf]
    %v6127 = vld [vmem:[#allocation13 + $0x12c] sm:$0xf]
    %v6128 = vld [vmem:[#allocation13 + $0x148] sm:$0xf]
    %v6129 = vld [vmem:[#allocation13 + $0x164] sm:$0xf]
    %v6130 = vld [vmem:[#allocation13 + $0x180] sm:$0xf]
    %v6131 = vld [vmem:[#allocation13 + $0x19c] sm:$0xf]
    %v6132 = vld [vmem:[#allocation13 + $0x1b8] sm:$0xf]
    %v6133 = vld [vmem:[#allocation13 + $0x1d4] sm:$0xf]
    %v6134 = vld [vmem:[#allocation13 + $0x1f0] sm:$0xf]
    %v6135 = vld [vmem:[#allocation13 + $0x20c] sm:$0xf]
    %v6136 = vld [vmem:[#allocation13 + $0x228] sm:$0xf]
    %v6137 = vld [vmem:[#allocation13 + $0x244] sm:$0xf]
    %v6138 = vld [vmem:[#allocation13 + $0x260] sm:$0xf]
    %v6139 = vld [vmem:[#allocation13 + $0x27c] sm:$0xf]
    %v6140 = vld [vmem:[#allocation13 + $0x298] sm:$0xf]
    %v6141 = vld [vmem:[#allocation13 + $0x2b4] sm:$0xf]
    %v6142 = vld [vmem:[#allocation13 + $0x2d0] sm:$0xf]
    %v6143 = vld [vmem:[#allocation13 + $0x2ec] sm:$0xf]
    %v6144 = vld [vmem:[#allocation13 + $0x308] sm:$0xf]
    %v6145 = vld [vmem:[#allocation13 + $0x324] sm:$0xf]
    %v6146 = vld [vmem:[#allocation13 + $0x340] sm:$0xf]
    %v6147 = vld [vmem:[#allocation13 + $0x35c] sm:$0xf]
    %v6148 = vld [vmem:[#allocation13 + $0x378] sm:$0xf]
    %v6149 = vld [vmem:[#allocation13 + $0x394] sm:$0xf]
    %v6150 = vld [vmem:[#allocation13 + $0x3b0] sm:$0xf]
    %v6151 = vld [vmem:[#allocation13 + $0x3cc] sm:$0xf]
    %v6152 = vld [vmem:[#allocation13 + $0x3e8] sm:$0xf]
    %v6153 = vld [vmem:[#allocation13 + $0x404] sm:$0xf]
    %v6154 = vld [vmem:[#allocation13 + $0x420] sm:$0xf]
    %v6155 = vld [vmem:[#allocation13 + $0x43c] sm:$0xf]
    %v6156 = vld [vmem:[#allocation13 + $0x458] sm:$0xf]
    %v6157 = vld [vmem:[#allocation13 + $0x474] sm:$0xf]
    %v6158 = vld [vmem:[#allocation13 + $0x490] sm:$0xf]
    %v6159 = vld [vmem:[#allocation13 + $0x4ac] sm:$0xf]
    %v6160 = vld [vmem:[#allocation13 + $0x4c8] sm:$0xf]
    %v6161 = vld [vmem:[#allocation13 + $0x4e4] sm:$0xf]
    %v6162 = vld [vmem:[#allocation13 + $0x500] sm:$0xf]
    %v6163 = vld [vmem:[#allocation13 + $0x51c] sm:$0xf]
    %v6164 = vld [vmem:[#allocation13 + $0x538] sm:$0xf]
    %v6165 = vld [vmem:[#allocation13 + $0x554] sm:$0xf]
    %v6166 = vld [vmem:[#allocation13 + $0x570] sm:$0xf]
    %v6167 = vld [vmem:[#allocation13 + $0x58c] sm:$0xf]
    %v6168 = vld [vmem:[#allocation13 + $0x5a8] sm:$0xf]
    %v6169 = vld [vmem:[#allocation13 + $0x5c4] sm:$0xf]
    %v6170 = vld [vmem:[#allocation13 + $0x5e0] sm:$0xf]
    %v6171 = vld [vmem:[#allocation13 + $0x5fc] sm:$0xf]
    %v6172 = vld [vmem:[#allocation13 + $0x618] sm:$0xf]
    %v6173 = vld [vmem:[#allocation13 + $0x634] sm:$0xf]
    %v6174 = vld [vmem:[#allocation13 + $0x650] sm:$0xf]
    %v6175 = vld [vmem:[#allocation13 + $0x66c] sm:$0xf]
    %v6176 = vld [vmem:[#allocation13 + $0x688] sm:$0xf]
    %v6177 = vld [vmem:[#allocation13 + $0x6a4] sm:$0xf]
    %v6178 = vld [vmem:[#allocation13 + $0x6c0] sm:$0xf]
    %v6179 = vld [vmem:[#allocation13 + $0x6dc] sm:$0xf]
    %v6180 = vld [vmem:[#allocation13 + $0x6f8] sm:$0xf]
    %v6181 = vld [vmem:[#allocation13 + $0x714] sm:$0xf]
    %v6182 = vld [vmem:[#allocation13 + $0x730] sm:$0xf]
    %v6183 = vld [vmem:[#allocation13 + $0x74c] sm:$0xf]
    %v6184 = vld [vmem:[#allocation13 + $0x768] sm:$0xf]
    %v6185 = vld [vmem:[#allocation13 + $0x784] sm:$0xf]
    %v6186 = vld [vmem:[#allocation13 + $0x7a0] sm:$0xf]
    %v6187 = vld [vmem:[#allocation13 + $0x7bc] sm:$0xf]
    %v6188 = vld [vmem:[#allocation13 + $0x7d8] sm:$0xf]
    %v6189 = vld [vmem:[#allocation13 + $0x7f4] sm:$0xf]
    %v6190 = vld [vmem:[#allocation13 + $0x810] sm:$0xf]
    %v6191 = vld [vmem:[#allocation13 + $0x82c] sm:$0xf]
    %v6192 = vld [vmem:[#allocation13 + $0x848] sm:$0xf]
    %v6193 = vld [vmem:[#allocation13 + $0x864] sm:$0xf]
    %v6194 = vld [vmem:[#allocation13 + $0x880] sm:$0xf]
    %v6195 = vld [vmem:[#allocation13 + $0x89c] sm:$0xf]
    %v6196 = vld [vmem:[#allocation13 + $0x8b8] sm:$0xf]
    %v6197 = vld [vmem:[#allocation13 + $0x8d4] sm:$0xf]
    %v6198 = vld [vmem:[#allocation13 + $0x8f0] sm:$0xf]
    %v6199 = vld [vmem:[#allocation13 + $0x90c] sm:$0xf]
    %v6200 = vld [vmem:[#allocation13 + $0x928] sm:$0xf]
    %v6201 = vld [vmem:[#allocation13 + $0x944] sm:$0xf]
    %v6202 = vld [vmem:[#allocation13 + $0x960] sm:$0xf]
    %v6203 = vld [vmem:[#allocation13 + $0x97c] sm:$0xf]
    %v6204 = vld [vmem:[#allocation13 + $0x998] sm:$0xf]
    %v6205 = vld [vmem:[#allocation13 + $0x9b4] sm:$0xf]
    %v6206 = vld [vmem:[#allocation13 + $0x9d0] sm:$0xf]
    %v6207 = vld [vmem:[#allocation13 + $0x9ec] sm:$0xf]
    %v6208 = vld [vmem:[#allocation13 + $0xa08] sm:$0xf]
    %v6209 = vld [vmem:[#allocation13 + $0xa24] sm:$0xf]
    %v6210 = vld [vmem:[#allocation13 + $0xa40] sm:$0xf]
    %v6211 = vld [vmem:[#allocation13 + $0xa5c] sm:$0xf]
    %v6212 = vld [vmem:[#allocation13 + $0xa78] sm:$0xf]
    %v6213 = vld [vmem:[#allocation13 + $0xa94] sm:$0xf]
    %v6214 = vld [vmem:[#allocation13 + $0xab0] sm:$0xf]
    %v6215 = vld [vmem:[#allocation13 + $0xacc] sm:$0xf]
    %v6216 = vld [vmem:[#allocation13 + $0xae8] sm:$0xf]
    %v6217 = vld [vmem:[#allocation13 + $0xb04] sm:$0xf]
    %v6218 = vld [vmem:[#allocation13 + $0xb20] sm:$0xf]
    %v6219 = vld [vmem:[#allocation13 + $0xb3c] sm:$0xf]
    %v6220 = vld [vmem:[#allocation13 + $0xb58] sm:$0xf]
    %v6221 = vld [vmem:[#allocation13 + $0xb74] sm:$0xf]
    %v6222 = vld [vmem:[#allocation13 + $0xb90] sm:$0xf]
    %v6223 = vld [vmem:[#allocation13 + $0xbac] sm:$0xf]
    %v6224 = vld [vmem:[#allocation13 + $0xbc8] sm:$0xf]
    %v6225 = vld [vmem:[#allocation13 + $0xbe4] sm:$0xf]
    %v6226 = vld [vmem:[#allocation13 + $0xc00] sm:$0xf]
    %v6227 = vld [vmem:[#allocation13 + $0xc1c] sm:$0xf]
    %v6228 = vld [vmem:[#allocation13 + $0xc38] sm:$0xf]
    %v6229 = vld [vmem:[#allocation13 + $0xc54] sm:$0xf]
    %v6230 = vld [vmem:[#allocation13 + $0xc70] sm:$0xf]
    %v6231 = vld [vmem:[#allocation13 + $0xc8c] sm:$0xf]
    %v6232 = vld [vmem:[#allocation13 + $0xca8] sm:$0xf]
    %v6233 = vld [vmem:[#allocation13 + $0xcc4] sm:$0xf]
    %v6234 = vld [vmem:[#allocation13 + $0xce0] sm:$0xf]
    %v6235 = vld [vmem:[#allocation13 + $0xcfc] sm:$0xf]
    %v6236 = vld [vmem:[#allocation13 + $0xd18] sm:$0xf]
    %v6237 = vld [vmem:[#allocation13 + $0xd34] sm:$0xf]
    %v6238 = vld [vmem:[#allocation13 + $0xd50] sm:$0xf]
    %v6239 = vld [vmem:[#allocation13 + $0xd6c] sm:$0xf]
    %v6240 = vld [vmem:[#allocation13 + $0xd88] sm:$0xf]
    %v6241 = vld [vmem:[#allocation13 + $0xda4] sm:$0xf]
    %v6242 = vld [vmem:[#allocation13 + $0xdc0] sm:$0xf]
    %v6243 = vld [vmem:[#allocation13 + $0xddc] sm:$0xf]
    %v6244 = vld [vmem:[#allocation13 + $0xdf8] sm:$0xf]
    %v6245 = vld [vmem:[#allocation14 + $0x5] sm:$0x1]
    %v6247 = vlaneseq
    %v6248 = vshrl.u32 %v6247, 7
    %v6249 = vsub.s32 0, %v6248
    %v6250 = vrot.slane %v6245, %v6249
    %v6380 = vunpack.c.l.b16 %v6117
    %v6381 = vunpack.c.l.b16 %v6118
    %v6382 = vunpack.c.l.b16 %v6119
    %v6383 = vunpack.c.l.b16 %v6120
    %v6384 = vunpack.c.l.b16 %v6121
    %v6385 = vunpack.c.l.b16 %v6122
    %v6386 = vunpack.c.l.b16 %v6123
    %v6387 = vunpack.c.l.b16 %v6124
    %v6388 = vunpack.c.l.b16 %v6125
    %v6389 = vunpack.c.l.b16 %v6126
    %v6390 = vunpack.c.l.b16 %v6127
    %v6391 = vunpack.c.l.b16 %v6128
    %v6392 = vunpack.c.l.b16 %v6129
    %v6393 = vunpack.c.l.b16 %v6130
    %v6394 = vunpack.c.l.b16 %v6131
    %v6395 = vunpack.c.l.b16 %v6132
    %v6396 = vunpack.c.l.b16 %v6133
    %v6397 = vunpack.c.l.b16 %v6134
    %v6398 = vunpack.c.l.b16 %v6135
    %v6399 = vunpack.c.l.b16 %v6136
    %v6400 = vunpack.c.l.b16 %v6137
    %v6401 = vunpack.c.l.b16 %v6138
    %v6402 = vunpack.c.l.b16 %v6139
    %v6403 = vunpack.c.l.b16 %v6140
    %v6404 = vunpack.c.l.b16 %v6141
    %v6405 = vunpack.c.l.b16 %v6142
    %v6406 = vunpack.c.l.b16 %v6143
    %v6407 = vunpack.c.l.b16 %v6144
    %v6408 = vunpack.c.l.b16 %v6145
    %v6409 = vunpack.c.l.b16 %v6146
    %v6410 = vunpack.c.l.b16 %v6147
    %v6411 = vunpack.c.l.b16 %v6148
    %v6412 = vunpack.c.l.b16 %v6149
    %v6413 = vunpack.c.l.b16 %v6150
    %v6414 = vunpack.c.l.b16 %v6151
    %v6415 = vunpack.c.l.b16 %v6152
    %v6416 = vunpack.c.l.b16 %v6153
    %v6417 = vunpack.c.l.b16 %v6154
    %v6418 = vunpack.c.l.b16 %v6155
    %v6419 = vunpack.c.l.b16 %v6156
    %v6420 = vunpack.c.l.b16 %v6157
    %v6421 = vunpack.c.l.b16 %v6158
    %v6422 = vunpack.c.l.b16 %v6159
    %v6423 = vunpack.c.l.b16 %v6160
    %v6424 = vunpack.c.l.b16 %v6161
    %v6425 = vunpack.c.l.b16 %v6162
    %v6426 = vunpack.c.l.b16 %v6163
    %v6427 = vunpack.c.l.b16 %v6164
    %v6428 = vunpack.c.l.b16 %v6165
    %v6429 = vunpack.c.l.b16 %v6166
    %v6430 = vunpack.c.l.b16 %v6167
    %v6431 = vunpack.c.l.b16 %v6168
    %v6432 = vunpack.c.l.b16 %v6169
    %v6433 = vunpack.c.l.b16 %v6170
    %v6434 = vunpack.c.l.b16 %v6171
    %v6435 = vunpack.c.l.b16 %v6172
    %v6436 = vunpack.c.l.b16 %v6173
    %v6437 = vunpack.c.l.b16 %v6174
    %v6438 = vunpack.c.l.b16 %v6175
    %v6439 = vunpack.c.l.b16 %v6176
    %v6440 = vunpack.c.l.b16 %v6177
    %v6441 = vunpack.c.l.b16 %v6178
    %v6442 = vunpack.c.l.b16 %v6179
    %v6443 = vunpack.c.l.b16 %v6180
    %v6444 = vunpack.c.l.b16 %v6181
    %v6445 = vunpack.c.l.b16 %v6182
    %v6446 = vunpack.c.l.b16 %v6183
    %v6447 = vunpack.c.l.b16 %v6184
    %v6448 = vunpack.c.l.b16 %v6185
    %v6449 = vunpack.c.l.b16 %v6186
    %v6450 = vunpack.c.l.b16 %v6187
    %v6451 = vunpack.c.l.b16 %v6188
    %v6452 = vunpack.c.l.b16 %v6189
    %v6453 = vunpack.c.l.b16 %v6190
    %v6454 = vunpack.c.l.b16 %v6191
    %v6455 = vunpack.c.l.b16 %v6192
    %v6456 = vunpack.c.l.b16 %v6193
    %v6457 = vunpack.c.l.b16 %v6194
    %v6458 = vunpack.c.l.b16 %v6195
    %v6459 = vunpack.c.l.b16 %v6196
    %v6460 = vunpack.c.l.b16 %v6197
    %v6461 = vunpack.c.l.b16 %v6198
    %v6462 = vunpack.c.l.b16 %v6199
    %v6463 = vunpack.c.l.b16 %v6200
    %v6464 = vunpack.c.l.b16 %v6201
    %v6465 = vunpack.c.l.b16 %v6202
    %v6466 = vunpack.c.l.b16 %v6203
    %v6467 = vunpack.c.l.b16 %v6204
    %v6468 = vunpack.c.l.b16 %v6205
    %v6469 = vunpack.c.l.b16 %v6206
    %v6470 = vunpack.c.l.b16 %v6207
    %v6471 = vunpack.c.l.b16 %v6208
    %v6472 = vunpack.c.l.b16 %v6209
    %v6473 = vunpack.c.l.b16 %v6210
    %v6474 = vunpack.c.l.b16 %v6211
    %v6475 = vunpack.c.l.b16 %v6212
    %v6476 = vunpack.c.l.b16 %v6213
    %v6477 = vunpack.c.l.b16 %v6214
    %v6478 = vunpack.c.l.b16 %v6215
    %v6479 = vunpack.c.l.b16 %v6216
    %v6480 = vunpack.c.l.b16 %v6217
    %v6481 = vunpack.c.l.b16 %v6218
    %v6482 = vunpack.c.l.b16 %v6219
    %v6483 = vunpack.c.l.b16 %v6220
    %v6484 = vunpack.c.l.b16 %v6221
    %v6485 = vunpack.c.l.b16 %v6222
    %v6486 = vunpack.c.l.b16 %v6223
    %v6487 = vunpack.c.l.b16 %v6224
    %v6488 = vunpack.c.l.b16 %v6225
    %v6489 = vunpack.c.l.b16 %v6226
    %v6490 = vunpack.c.l.b16 %v6227
    %v6491 = vunpack.c.l.b16 %v6228
    %v6492 = vunpack.c.l.b16 %v6229
    %v6493 = vunpack.c.l.b16 %v6230
    %v6494 = vunpack.c.l.b16 %v6231
    %v6495 = vunpack.c.l.b16 %v6232
    %v6496 = vunpack.c.l.b16 %v6233
    %v6497 = vunpack.c.l.b16 %v6234
    %v6498 = vunpack.c.l.b16 %v6235
    %v6499 = vunpack.c.l.b16 %v6236
    %v6500 = vunpack.c.l.b16 %v6237
    %v6501 = vunpack.c.l.b16 %v6238
    %v6502 = vunpack.c.l.b16 %v6239
    %v6503 = vunpack.c.l.b16 %v6240
    %v6504 = vunpack.c.l.b16 %v6241
    %v6505 = vunpack.c.l.b16 %v6242
    %v6506 = vunpack.c.l.b16 %v6243
    %v6507 = vunpack.c.l.b16 %v6244
    %v6508 = vpack.c.b16 %v6381, %v6380
    %v6509 = vpack.c.b16 %v6383, %v6382
    %v6510 = vpack.c.b16 %v6385, %v6384
    %v6511 = vpack.c.b16 %v6387, %v6386
    %v6512 = vpack.c.b16 %v6389, %v6388
    %v6513 = vpack.c.b16 %v6391, %v6390
    %v6514 = vpack.c.b16 %v6393, %v6392
    %v6515 = vpack.c.b16 %v6395, %v6394
    %v6516 = vpack.c.b16 %v6397, %v6396
    %v6517 = vpack.c.b16 %v6399, %v6398
    %v6518 = vpack.c.b16 %v6401, %v6400
    %v6519 = vpack.c.b16 %v6403, %v6402
    %v6520 = vpack.c.b16 %v6405, %v6404
    %v6521 = vpack.c.b16 %v6407, %v6406
    %v6522 = vpack.c.b16 %v6409, %v6408
    %v6523 = vpack.c.b16 %v6411, %v6410
    %v6524 = vpack.c.b16 %v6413, %v6412
    %v6525 = vpack.c.b16 %v6415, %v6414
    %v6526 = vpack.c.b16 %v6417, %v6416
    %v6527 = vpack.c.b16 %v6419, %v6418
    %v6528 = vpack.c.b16 %v6421, %v6420
    %v6529 = vpack.c.b16 %v6423, %v6422
    %v6530 = vpack.c.b16 %v6425, %v6424
    %v6531 = vpack.c.b16 %v6427, %v6426
    %v6532 = vpack.c.b16 %v6429, %v6428
    %v6533 = vpack.c.b16 %v6431, %v6430
    %v6534 = vpack.c.b16 %v6433, %v6432
    %v6535 = vpack.c.b16 %v6435, %v6434
    %v6536 = vpack.c.b16 %v6437, %v6436
    %v6537 = vpack.c.b16 %v6439, %v6438
    %v6538 = vpack.c.b16 %v6441, %v6440
    %v6539 = vpack.c.b16 %v6443, %v6442
    %v6540 = vpack.c.b16 %v6445, %v6444
    %v6541 = vpack.c.b16 %v6447, %v6446
    %v6542 = vpack.c.b16 %v6449, %v6448
    %v6543 = vpack.c.b16 %v6451, %v6450
    %v6544 = vpack.c.b16 %v6453, %v6452
    %v6545 = vpack.c.b16 %v6455, %v6454
    %v6546 = vpack.c.b16 %v6457, %v6456
    %v6547 = vpack.c.b16 %v6459, %v6458
    %v6548 = vpack.c.b16 %v6461, %v6460
    %v6549 = vpack.c.b16 %v6463, %v6462
    %v6550 = vpack.c.b16 %v6465, %v6464
    %v6551 = vpack.c.b16 %v6467, %v6466
    %v6552 = vpack.c.b16 %v6469, %v6468
    %v6553 = vpack.c.b16 %v6471, %v6470
    %v6554 = vpack.c.b16 %v6473, %v6472
    %v6555 = vpack.c.b16 %v6475, %v6474
    %v6556 = vpack.c.b16 %v6477, %v6476
    %v6557 = vpack.c.b16 %v6479, %v6478
    %v6558 = vpack.c.b16 %v6481, %v6480
    %v6559 = vpack.c.b16 %v6483, %v6482
    %v6560 = vpack.c.b16 %v6485, %v6484
    %v6561 = vpack.c.b16 %v6487, %v6486
    %v6562 = vpack.c.b16 %v6489, %v6488
    %v6563 = vpack.c.b16 %v6491, %v6490
    %v6564 = vpack.c.b16 %v6493, %v6492
    %v6565 = vpack.c.b16 %v6495, %v6494
    %v6566 = vpack.c.b16 %v6497, %v6496
    %v6567 = vpack.c.b16 %v6499, %v6498
    %v6568 = vpack.c.b16 %v6501, %v6500
    %v6569 = vpack.c.b16 %v6503, %v6502
    %v6570 = vpack.c.b16 %v6505, %v6504
    %v6571 = vpack.c.b16 %v6507, %v6506
    %6636 = vmatprep.subr.bf16.mxu0 0
    %6637 = vmatpush1.bf16.msra.mxu0 %v6508
    %6638 = vmatprep.subr.bf16.mxu0 0
    %6639 = vmatpush1.bf16.msra.mxu0 %v6509
    %6640 = vmatprep.subr.bf16.mxu0 0
    %6641 = vmatpush1.bf16.msra.mxu0 %v6510
    %6642 = vmatprep.subr.bf16.mxu0 0
    %6643 = vmatpush1.bf16.msra.mxu0 %v6511
    %6644 = vmatprep.subr.bf16.mxu0 0
    %6645 = vmatpush1.bf16.msra.mxu0 %v6512
    %6646 = vmatprep.subr.bf16.mxu0 0
    %6647 = vmatpush1.bf16.msra.mxu0 %v6513
    %6648 = vmatprep.subr.bf16.mxu0 0
    %6649 = vmatpush1.bf16.msra.mxu0 %v6514
    %6650 = vmatprep.subr.bf16.mxu0 0
    %6651 = vmatpush1.bf16.msra.mxu0 %v6515
    %6652 = vmatprep.subr.bf16.mxu0 0
    %6653 = vmatpush1.bf16.msra.mxu0 %v6516
    %6654 = vmatprep.subr.bf16.mxu0 0
    %6655 = vmatpush1.bf16.msra.mxu0 %v6517
    %6656 = vmatprep.subr.bf16.mxu0 0
    %6657 = vmatpush1.bf16.msra.mxu0 %v6518
    %6658 = vmatprep.subr.bf16.mxu0 0
    %6659 = vmatpush1.bf16.msra.mxu0 %v6519
    %6660 = vmatprep.subr.bf16.mxu0 0
    %6661 = vmatpush1.bf16.msra.mxu0 %v6520
    %6662 = vmatprep.subr.bf16.mxu0 0
    %6663 = vmatpush1.bf16.msra.mxu0 %v6521
    %6664 = vmatprep.subr.bf16.mxu0 0
    %6665 = vmatpush1.bf16.msra.mxu0 %v6522
    %6666 = vmatprep.subr.bf16.mxu0 0
    %6667 = vmatpush1.bf16.msra.mxu0 %v6523
    %6668 = vmatprep.mubr.bf16.mxu0 %v2700
    %6669 = vmatmul.mubr.bf16.gmra.mrb[0].mxu0 %v2699
    %v6670 = vpop.f32.mrb[0].mxu0
    %v6671 = vadd.f32 %v6250, %v6670
    %v6672 = vpop.f32.mrb[0].mxu0
    %v6673 = vpop.f32.mrb[0].mxu0
    %v6674 = vpop.f32.mrb[0].mxu0
    %6675 = vdwg.mxu0
    %6676 = vmatprep.subr.bf16.mxu0 0
    %6677 = vmatpush1.bf16.msra.mxu0 %v6524
    %6678 = vmatprep.subr.bf16.mxu0 0
    %6679 = vmatpush1.bf16.msra.mxu0 %v6525
    %6680 = vmatprep.subr.bf16.mxu0 0
    %6681 = vmatpush1.bf16.msra.mxu0 %v6526
    %6682 = vmatprep.subr.bf16.mxu0 0
    %6683 = vmatpush1.bf16.msra.mxu0 %v6527
    %6684 = vmatprep.subr.bf16.mxu0 0
    %6685 = vmatpush1.bf16.msra.mxu0 %v6528
    %6686 = vmatprep.subr.bf16.mxu0 0
    %6687 = vmatpush1.bf16.msra.mxu0 %v6529
    %6688 = vmatprep.subr.bf16.mxu0 0
    %6689 = vmatpush1.bf16.msra.mxu0 %v6530
    %6690 = vmatprep.subr.bf16.mxu0 0
    %6691 = vmatpush1.bf16.msra.mxu0 %v6531
    %6692 = vmatprep.subr.bf16.mxu0 0
    %6693 = vmatpush1.bf16.msra.mxu0 %v6532
    %6694 = vmatprep.subr.bf16.mxu0 0
    %6695 = vmatpush1.bf16.msra.mxu0 %v6533
    %6696 = vmatprep.subr.bf16.mxu0 0
    %6697 = vmatpush1.bf16.msra.mxu0 %v6534
    %6698 = vmatprep.subr.bf16.mxu0 0
    %6699 = vmatpush1.bf16.msra.mxu0 %v6535
    %6700 = vmatprep.subr.bf16.mxu0 0
    %6701 = vmatpush1.bf16.msra.mxu0 %v6536
    %6702 = vmatprep.subr.bf16.mxu0 0
    %6703 = vmatpush1.bf16.msra.mxu0 %v6537
    %6704 = vmatprep.subr.bf16.mxu0 0
    %6705 = vmatpush1.bf16.msra.mxu0 %v6538
    %6706 = vmatprep.subr.bf16.mxu0 0
    %6707 = vmatpush1.bf16.msra.mxu0 %v6539
    %6708 = vmatprep.mubr.bf16.mxu0 %v2702
    %6709 = vmatmul.mubr.bf16.gmra.mrb[0].mxu0 %v2701
    %v6710 = vpop.f32.mrb[0].mxu0
    %v6711 = vadd.f32 %v6671, %v6710
    %v6712 = vpop.f32.mrb[0].mxu0
    %v6713 = vpop.f32.mrb[0].mxu0
    %v6714 = vpop.f32.mrb[0].mxu0
    %6715 = vdwg.mxu0
    %6716 = vmatprep.subr.bf16.mxu0 0
    %6717 = vmatpush1.bf16.msra.mxu0 %v6540
    %6718 = vmatprep.subr.bf16.mxu0 0
    %6719 = vmatpush1.bf16.msra.mxu0 %v6541
    %6720 = vmatprep.subr.bf16.mxu0 0
    %6721 = vmatpush1.bf16.msra.mxu0 %v6542
    %6722 = vmatprep.subr.bf16.mxu0 0
    %6723 = vmatpush1.bf16.msra.mxu0 %v6543
    %6724 = vmatprep.subr.bf16.mxu0 0
    %6725 = vmatpush1.bf16.msra.mxu0 %v6544
    %6726 = vmatprep.subr.bf16.mxu0 0
    %6727 = vmatpush1.bf16.msra.mxu0 %v6545
    %6728 = vmatprep.subr.bf16.mxu0 0
    %6729 = vmatpush1.bf16.msra.mxu0 %v6546
    %6730 = vmatprep.subr.bf16.mxu0 0
    %6731 = vmatpush1.bf16.msra.mxu0 %v6547
    %6732 = vmatprep.subr.bf16.mxu0 0
    %6733 = vmatpush1.bf16.msra.mxu0 %v6548
    %6734 = vmatprep.subr.bf16.mxu0 0
    %6735 = vmatpush1.bf16.msra.mxu0 %v6549
    %6736 = vmatprep.subr.bf16.mxu0 0
    %6737 = vmatpush1.bf16.msra.mxu0 %v6550
    %6738 = vmatprep.subr.bf16.mxu0 0
    %6739 = vmatpush1.bf16.msra.mxu0 %v6551
    %6740 = vmatprep.subr.bf16.mxu0 0
    %6741 = vmatpush1.bf16.msra.mxu0 %v6552
    %6742 = vmatprep.subr.bf16.mxu0 0
    %6743 = vmatpush1.bf16.msra.mxu0 %v6553
    %6744 = vmatprep.subr.bf16.mxu0 0
    %6745 = vmatpush1.bf16.msra.mxu0 %v6554
    %6746 = vmatprep.subr.bf16.mxu0 0
    %6747 = vmatpush1.bf16.msra.mxu0 %v6555
    %6748 = vmatprep.mubr.bf16.mxu0 %v2704
    %6749 = vmatmul.mubr.bf16.gmra.mrb[0].mxu0 %v2703
    %v6750 = vpop.f32.mrb[0].mxu0
    %v6751 = vadd.f32 %v6711, %v6750
    %v6752 = vpop.f32.mrb[0].mxu0
    %v6753 = vpop.f32.mrb[0].mxu0
    %v6754 = vpop.f32.mrb[0].mxu0
    %6755 = vdwg.mxu0
    %6756 = vmatprep.subr.bf16.mxu0 0
    %6757 = vmatpush1.bf16.msra.mxu0 %v6556
    %6758 = vmatprep.subr.bf16.mxu0 0
    %6759 = vmatpush1.bf16.msra.mxu0 %v6557
    %6760 = vmatprep.subr.bf16.mxu0 0
    %6761 = vmatpush1.bf16.msra.mxu0 %v6558
    %6762 = vmatprep.subr.bf16.mxu0 0
    %6763 = vmatpush1.bf16.msra.mxu0 %v6559
    %6764 = vmatprep.subr.bf16.mxu0 0
    %6765 = vmatpush1.bf16.msra.mxu0 %v6560
    %6766 = vmatprep.subr.bf16.mxu0 0
    %6767 = vmatpush1.bf16.msra.mxu0 %v6561
    %6768 = vmatprep.subr.bf16.mxu0 0
    %6769 = vmatpush1.bf16.msra.mxu0 %v6562
    %6770 = vmatprep.subr.bf16.mxu0 0
    %6771 = vmatpush1.bf16.msra.mxu0 %v6563
    %6772 = vmatprep.subr.bf16.mxu0 0
    %6773 = vmatpush1.bf16.msra.mxu0 %v6564
    %6774 = vmatprep.subr.bf16.mxu0 0
    %6775 = vmatpush1.bf16.msra.mxu0 %v6565
    %6776 = vmatprep.subr.bf16.mxu0 0
    %6777 = vmatpush1.bf16.msra.mxu0 %v6566
    %6778 = vmatprep.subr.bf16.mxu0 0
    %6779 = vmatpush1.bf16.msra.mxu0 %v6567
    %6780 = vmatprep.subr.bf16.mxu0 0
    %6781 = vmatpush1.bf16.msra.mxu0 %v6568
    %6782 = vmatprep.subr.bf16.mxu0 0
    %6783 = vmatpush1.bf16.msra.mxu0 %v6569
    %6784 = vmatprep.subr.bf16.mxu0 0
    %6785 = vmatpush1.bf16.msra.mxu0 %v6570
    %6786 = vmatprep.subr.bf16.mxu0 0
    %6787 = vmatpush1.bf16.msra.mxu0 %v6571
    %6788 = vmatprep.mubr.bf16.mxu0 %v2706
    %6789 = vmatmul.mubr.bf16.gmra.mrb[0].mxu0 %v2705
    %v6790 = vpop.f32.mrb[0].mxu0
    %v6791 = vadd.f32 %v6751, %v6790
    %v6792 = vpop.f32.mrb[0].mxu0
    %v6793 = vpop.f32.mrb[0].mxu0
    %v6794 = vpop.f32.mrb[0].mxu0
    %6795 = vdwg.mxu0
    %v6796 = vtanh.pop %v6791
    %v6797 = vpack.c.bf16 %v6796, %v6796
    %6798 = vst [vmem:[#allocation16 + $0x14] sm:$0xf] %v6797
    %v6799 = vld [vmem:[#allocation13 + $0x18] sm:$0xf]
    %v6800 = vld [vmem:[#allocation13 + $0x34] sm:$0xf]
    %v6801 = vld [vmem:[#allocation13 + $0x50] sm:$0xf]
    %v6802 = vld [vmem:[#allocation13 + $0x6c] sm:$0xf]
    %v6803 = vld [vmem:[#allocation13 + $0x88] sm:$0xf]
    %v6804 = vld [vmem:[#allocation13 + $0xa4] sm:$0xf]
    %v6805 = vld [vmem:[#allocation13 + $0xc0] sm:$0xf]
    %v6806 = vld [vmem:[#allocation13 + $0xdc] sm:$0xf]
    %v6807 = vld [vmem:[#allocation13 + $0xf8] sm:$0xf]
    %v6808 = vld [vmem:[#allocation13 + $0x114] sm:$0xf]
    %v6809 = vld [vmem:[#allocation13 + $0x130] sm:$0xf]
    %v6810 = vld [vmem:[#allocation13 + $0x14c] sm:$0xf]
    %v6811 = vld [vmem:[#allocation13 + $0x168] sm:$0xf]
    %v6812 = vld [vmem:[#allocation13 + $0x184] sm:$0xf]
    %v6813 = vld [vmem:[#allocation13 + $0x1a0] sm:$0xf]
    %v6814 = vld [vmem:[#allocation13 + $0x1bc] sm:$0xf]
    %v6815 = vld [vmem:[#allocation13 + $0x1d8] sm:$0xf]
    %v6816 = vld [vmem:[#allocation13 + $0x1f4] sm:$0xf]
    %v6817 = vld [vmem:[#allocation13 + $0x210] sm:$0xf]
    %v6818 = vld [vmem:[#allocation13 + $0x22c] sm:$0xf]
    %v6819 = vld [vmem:[#allocation13 + $0x248] sm:$0xf]
    %v6820 = vld [vmem:[#allocation13 + $0x264] sm:$0xf]
    %v6821 = vld [vmem:[#allocation13 + $0x280] sm:$0xf]
    %v6822 = vld [vmem:[#allocation13 + $0x29c] sm:$0xf]
    %v6823 = vld [vmem:[#allocation13 + $0x2b8] sm:$0xf]
    %v6824 = vld [vmem:[#allocation13 + $0x2d4] sm:$0xf]
    %v6825 = vld [vmem:[#allocation13 + $0x2f0] sm:$0xf]
    %v6826 = vld [vmem:[#allocation13 + $0x30c] sm:$0xf]
    %v6827 = vld [vmem:[#allocation13 + $0x328] sm:$0xf]
    %v6828 = vld [vmem:[#allocation13 + $0x344] sm:$0xf]
    %v6829 = vld [vmem:[#allocation13 + $0x360] sm:$0xf]
    %v6830 = vld [vmem:[#allocation13 + $0x37c] sm:$0xf]
    %v6831 = vld [vmem:[#allocation13 + $0x398] sm:$0xf]
    %v6832 = vld [vmem:[#allocation13 + $0x3b4] sm:$0xf]
    %v6833 = vld [vmem:[#allocation13 + $0x3d0] sm:$0xf]
    %v6834 = vld [vmem:[#allocation13 + $0x3ec] sm:$0xf]
    %v6835 = vld [vmem:[#allocation13 + $0x408] sm:$0xf]
    %v6836 = vld [vmem:[#allocation13 + $0x424] sm:$0xf]
    %v6837 = vld [vmem:[#allocation13 + $0x440] sm:$0xf]
    %v6838 = vld [vmem:[#allocation13 + $0x45c] sm:$0xf]
    %v6839 = vld [vmem:[#allocation13 + $0x478] sm:$0xf]
    %v6840 = vld [vmem:[#allocation13 + $0x494] sm:$0xf]
    %v6841 = vld [vmem:[#allocation13 + $0x4b0] sm:$0xf]
    %v6842 = vld [vmem:[#allocation13 + $0x4cc] sm:$0xf]
    %v6843 = vld [vmem:[#allocation13 + $0x4e8] sm:$0xf]
    %v6844 = vld [vmem:[#allocation13 + $0x504] sm:$0xf]
    %v6845 = vld [vmem:[#allocation13 + $0x520] sm:$0xf]
    %v6846 = vld [vmem:[#allocation13 + $0x53c] sm:$0xf]
    %v6847 = vld [vmem:[#allocation13 + $0x558] sm:$0xf]
    %v6848 = vld [vmem:[#allocation13 + $0x574] sm:$0xf]
    %v6849 = vld [vmem:[#allocation13 + $0x590] sm:$0xf]
    %v6850 = vld [vmem:[#allocation13 + $0x5ac] sm:$0xf]
    %v6851 = vld [vmem:[#allocation13 + $0x5c8] sm:$0xf]
    %v6852 = vld [vmem:[#allocation13 + $0x5e4] sm:$0xf]
    %v6853 = vld [vmem:[#allocation13 + $0x600] sm:$0xf]
    %v6854 = vld [vmem:[#allocation13 + $0x61c] sm:$0xf]
    %v6855 = vld [vmem:[#allocation13 + $0x638] sm:$0xf]
    %v6856 = vld [vmem:[#allocation13 + $0x654] sm:$0xf]
    %v6857 = vld [vmem:[#allocation13 + $0x670] sm:$0xf]
    %v6858 = vld [vmem:[#allocation13 + $0x68c] sm:$0xf]
    %v6859 = vld [vmem:[#allocation13 + $0x6a8] sm:$0xf]
    %v6860 = vld [vmem:[#allocation13 + $0x6c4] sm:$0xf]
    %v6861 = vld [vmem:[#allocation13 + $0x6e0] sm:$0xf]
    %v6862 = vld [vmem:[#allocation13 + $0x6fc] sm:$0xf]
    %v6863 = vld [vmem:[#allocation13 + $0x718] sm:$0xf]
    %v6864 = vld [vmem:[#allocation13 + $0x734] sm:$0xf]
    %v6865 = vld [vmem:[#allocation13 + $0x750] sm:$0xf]
    %v6866 = vld [vmem:[#allocation13 + $0x76c] sm:$0xf]
    %v6867 = vld [vmem:[#allocation13 + $0x788] sm:$0xf]
    %v6868 = vld [vmem:[#allocation13 + $0x7a4] sm:$0xf]
    %v6869 = vld [vmem:[#allocation13 + $0x7c0] sm:$0xf]
    %v6870 = vld [vmem:[#allocation13 + $0x7dc] sm:$0xf]
    %v6871 = vld [vmem:[#allocation13 + $0x7f8] sm:$0xf]
    %v6872 = vld [vmem:[#allocation13 + $0x814] sm:$0xf]
    %v6873 = vld [vmem:[#allocation13 + $0x830] sm:$0xf]
    %v6874 = vld [vmem:[#allocation13 + $0x84c] sm:$0xf]
    %v6875 = vld [vmem:[#allocation13 + $0x868] sm:$0xf]
    %v6876 = vld [vmem:[#allocation13 + $0x884] sm:$0xf]
    %v6877 = vld [vmem:[#allocation13 + $0x8a0] sm:$0xf]
    %v6878 = vld [vmem:[#allocation13 + $0x8bc] sm:$0xf]
    %v6879 = vld [vmem:[#allocation13 + $0x8d8] sm:$0xf]
    %v6880 = vld [vmem:[#allocation13 + $0x8f4] sm:$0xf]
    %v6881 = vld [vmem:[#allocation13 + $0x910] sm:$0xf]
    %v6882 = vld [vmem:[#allocation13 + $0x92c] sm:$0xf]
    %v6883 = vld [vmem:[#allocation13 + $0x948] sm:$0xf]
    %v6884 = vld [vmem:[#allocation13 + $0x964] sm:$0xf]
    %v6885 = vld [vmem:[#allocation13 + $0x980] sm:$0xf]
    %v6886 = vld [vmem:[#allocation13 + $0x99c] sm:$0xf]
    %v6887 = vld [vmem:[#allocation13 + $0x9b8] sm:$0xf]
    %v6888 = vld [vmem:[#allocation13 + $0x9d4] sm:$0xf]
    %v6889 = vld [vmem:[#allocation13 + $0x9f0] sm:$0xf]
    %v6890 = vld [vmem:[#allocation13 + $0xa0c] sm:$0xf]
    %v6891 = vld [vmem:[#allocation13 + $0xa28] sm:$0xf]
    %v6892 = vld [vmem:[#allocation13 + $0xa44] sm:$0xf]
    %v6893 = vld [vmem:[#allocation13 + $0xa60] sm:$0xf]
    %v6894 = vld [vmem:[#allocation13 + $0xa7c] sm:$0xf]
    %v6895 = vld [vmem:[#allocation13 + $0xa98] sm:$0xf]
    %v6896 = vld [vmem:[#allocation13 + $0xab4] sm:$0xf]
    %v6897 = vld [vmem:[#allocation13 + $0xad0] sm:$0xf]
    %v6898 = vld [vmem:[#allocation13 + $0xaec] sm:$0xf]
    %v6899 = vld [vmem:[#allocation13 + $0xb08] sm:$0xf]
    %v6900 = vld [vmem:[#allocation13 + $0xb24] sm:$0xf]
    %v6901 = vld [vmem:[#allocation13 + $0xb40] sm:$0xf]
    %v6902 = vld [vmem:[#allocation13 + $0xb5c] sm:$0xf]
    %v6903 = vld [vmem:[#allocation13 + $0xb78] sm:$0xf]
    %v6904 = vld [vmem:[#allocation13 + $0xb94] sm:$0xf]
    %v6905 = vld [vmem:[#allocation13 + $0xbb0] sm:$0xf]
    %v6906 = vld [vmem:[#allocation13 + $0xbcc] sm:$0xf]
    %v6907 = vld [vmem:[#allocation13 + $0xbe8] sm:$0xf]
    %v6908 = vld [vmem:[#allocation13 + $0xc04] sm:$0xf]
    %v6909 = vld [vmem:[#allocation13 + $0xc20] sm:$0xf]
    %v6910 = vld [vmem:[#allocation13 + $0xc3c] sm:$0xf]
    %v6911 = vld [vmem:[#allocation13 + $0xc58] sm:$0xf]
    %v6912 = vld [vmem:[#allocation13 + $0xc74] sm:$0xf]
    %v6913 = vld [vmem:[#allocation13 + $0xc90] sm:$0xf]
    %v6914 = vld [vmem:[#allocation13 + $0xcac] sm:$0xf]
    %v6915 = vld [vmem:[#allocation13 + $0xcc8] sm:$0xf]
    %v6916 = vld [vmem:[#allocation13 + $0xce4] sm:$0xf]
    %v6917 = vld [vmem:[#allocation13 + $0xd00] sm:$0xf]
    %v6918 = vld [vmem:[#allocation13 + $0xd1c] sm:$0xf]
    %v6919 = vld [vmem:[#allocation13 + $0xd38] sm:$0xf]
    %v6920 = vld [vmem:[#allocation13 + $0xd54] sm:$0xf]
    %v6921 = vld [vmem:[#allocation13 + $0xd70] sm:$0xf]
    %v6922 = vld [vmem:[#allocation13 + $0xd8c] sm:$0xf]
    %v6923 = vld [vmem:[#allocation13 + $0xda8] sm:$0xf]
    %v6924 = vld [vmem:[#allocation13 + $0xdc4] sm:$0xf]
    %v6925 = vld [vmem:[#allocation13 + $0xde0] sm:$0xf]
    %v6926 = vld [vmem:[#allocation13 + $0xdfc] sm:$0xf]
    %v6927 = vld [vmem:[#allocation14 + $0x6] sm:$0x1]
    %v6929 = vlaneseq
    %v6930 = vshrl.u32 %v6929, 7
    %v6931 = vsub.s32 0, %v6930
    %v6932 = vrot.slane %v6927, %v6931
    %v7062 = vunpack.c.l.b16 %v6799
    %v7063 = vunpack.c.l.b16 %v6800
    %v7064 = vunpack.c.l.b16 %v6801
    %v7065 = vunpack.c.l.b16 %v6802
    %v7066 = vunpack.c.l.b16 %v6803
    %v7067 = vunpack.c.l.b16 %v6804
    %v7068 = vunpack.c.l.b16 %v6805
    %v7069 = vunpack.c.l.b16 %v6806
    %v7070 = vunpack.c.l.b16 %v6807
    %v7071 = vunpack.c.l.b16 %v6808
    %v7072 = vunpack.c.l.b16 %v6809
    %v7073 = vunpack.c.l.b16 %v6810
    %v7074 = vunpack.c.l.b16 %v6811
    %v7075 = vunpack.c.l.b16 %v6812
    %v7076 = vunpack.c.l.b16 %v6813
    %v7077 = vunpack.c.l.b16 %v6814
    %v7078 = vunpack.c.l.b16 %v6815
    %v7079 = vunpack.c.l.b16 %v6816
    %v7080 = vunpack.c.l.b16 %v6817
    %v7081 = vunpack.c.l.b16 %v6818
    %v7082 = vunpack.c.l.b16 %v6819
    %v7083 = vunpack.c.l.b16 %v6820
    %v7084 = vunpack.c.l.b16 %v6821
    %v7085 = vunpack.c.l.b16 %v6822
    %v7086 = vunpack.c.l.b16 %v6823
    %v7087 = vunpack.c.l.b16 %v6824
    %v7088 = vunpack.c.l.b16 %v6825
    %v7089 = vunpack.c.l.b16 %v6826
    %v7090 = vunpack.c.l.b16 %v6827
    %v7091 = vunpack.c.l.b16 %v6828
    %v7092 = vunpack.c.l.b16 %v6829
    %v7093 = vunpack.c.l.b16 %v6830
    %v7094 = vunpack.c.l.b16 %v6831
    %v7095 = vunpack.c.l.b16 %v6832
    %v7096 = vunpack.c.l.b16 %v6833
    %v7097 = vunpack.c.l.b16 %v6834
    %v7098 = vunpack.c.l.b16 %v6835
    %v7099 = vunpack.c.l.b16 %v6836
    %v7100 = vunpack.c.l.b16 %v6837
    %v7101 = vunpack.c.l.b16 %v6838
    %v7102 = vunpack.c.l.b16 %v6839
    %v7103 = vunpack.c.l.b16 %v6840
    %v7104 = vunpack.c.l.b16 %v6841
    %v7105 = vunpack.c.l.b16 %v6842
    %v7106 = vunpack.c.l.b16 %v6843
    %v7107 = vunpack.c.l.b16 %v6844
    %v7108 = vunpack.c.l.b16 %v6845
    %v7109 = vunpack.c.l.b16 %v6846
    %v7110 = vunpack.c.l.b16 %v6847
    %v7111 = vunpack.c.l.b16 %v6848
    %v7112 = vunpack.c.l.b16 %v6849
    %v7113 = vunpack.c.l.b16 %v6850
    %v7114 = vunpack.c.l.b16 %v6851
    %v7115 = vunpack.c.l.b16 %v6852
    %v7116 = vunpack.c.l.b16 %v6853
    %v7117 = vunpack.c.l.b16 %v6854
    %v7118 = vunpack.c.l.b16 %v6855
    %v7119 = vunpack.c.l.b16 %v6856
    %v7120 = vunpack.c.l.b16 %v6857
    %v7121 = vunpack.c.l.b16 %v6858
    %v7122 = vunpack.c.l.b16 %v6859
    %v7123 = vunpack.c.l.b16 %v6860
    %v7124 = vunpack.c.l.b16 %v6861
    %v7125 = vunpack.c.l.b16 %v6862
    %v7126 = vunpack.c.l.b16 %v6863
    %v7127 = vunpack.c.l.b16 %v6864
    %v7128 = vunpack.c.l.b16 %v6865
    %v7129 = vunpack.c.l.b16 %v6866
    %v7130 = vunpack.c.l.b16 %v6867
    %v7131 = vunpack.c.l.b16 %v6868
    %v7132 = vunpack.c.l.b16 %v6869
    %v7133 = vunpack.c.l.b16 %v6870
    %v7134 = vunpack.c.l.b16 %v6871
    %v7135 = vunpack.c.l.b16 %v6872
    %v7136 = vunpack.c.l.b16 %v6873
    %v7137 = vunpack.c.l.b16 %v6874
    %v7138 = vunpack.c.l.b16 %v6875
    %v7139 = vunpack.c.l.b16 %v6876
    %v7140 = vunpack.c.l.b16 %v6877
    %v7141 = vunpack.c.l.b16 %v6878
    %v7142 = vunpack.c.l.b16 %v6879
    %v7143 = vunpack.c.l.b16 %v6880
    %v7144 = vunpack.c.l.b16 %v6881
    %v7145 = vunpack.c.l.b16 %v6882
    %v7146 = vunpack.c.l.b16 %v6883
    %v7147 = vunpack.c.l.b16 %v6884
    %v7148 = vunpack.c.l.b16 %v6885
    %v7149 = vunpack.c.l.b16 %v6886
    %v7150 = vunpack.c.l.b16 %v6887
    %v7151 = vunpack.c.l.b16 %v6888
    %v7152 = vunpack.c.l.b16 %v6889
    %v7153 = vunpack.c.l.b16 %v6890
    %v7154 = vunpack.c.l.b16 %v6891
    %v7155 = vunpack.c.l.b16 %v6892
    %v7156 = vunpack.c.l.b16 %v6893
    %v7157 = vunpack.c.l.b16 %v6894
    %v7158 = vunpack.c.l.b16 %v6895
    %v7159 = vunpack.c.l.b16 %v6896
    %v7160 = vunpack.c.l.b16 %v6897
    %v7161 = vunpack.c.l.b16 %v6898
    %v7162 = vunpack.c.l.b16 %v6899
    %v7163 = vunpack.c.l.b16 %v6900
    %v7164 = vunpack.c.l.b16 %v6901
    %v7165 = vunpack.c.l.b16 %v6902
    %v7166 = vunpack.c.l.b16 %v6903
    %v7167 = vunpack.c.l.b16 %v6904
    %v7168 = vunpack.c.l.b16 %v6905
    %v7169 = vunpack.c.l.b16 %v6906
    %v7170 = vunpack.c.l.b16 %v6907
    %v7171 = vunpack.c.l.b16 %v6908
    %v7172 = vunpack.c.l.b16 %v6909
    %v7173 = vunpack.c.l.b16 %v6910
    %v7174 = vunpack.c.l.b16 %v6911
    %v7175 = vunpack.c.l.b16 %v6912
    %v7176 = vunpack.c.l.b16 %v6913
    %v7177 = vunpack.c.l.b16 %v6914
    %v7178 = vunpack.c.l.b16 %v6915
    %v7179 = vunpack.c.l.b16 %v6916
    %v7180 = vunpack.c.l.b16 %v6917
    %v7181 = vunpack.c.l.b16 %v6918
    %v7182 = vunpack.c.l.b16 %v6919
    %v7183 = vunpack.c.l.b16 %v6920
    %v7184 = vunpack.c.l.b16 %v6921
    %v7185 = vunpack.c.l.b16 %v6922
    %v7186 = vunpack.c.l.b16 %v6923
    %v7187 = vunpack.c.l.b16 %v6924
    %v7188 = vunpack.c.l.b16 %v6925
    %v7189 = vunpack.c.l.b16 %v6926
    %v7190 = vpack.c.b16 %v7063, %v7062
    %v7191 = vpack.c.b16 %v7065, %v7064
    %v7192 = vpack.c.b16 %v7067, %v7066
    %v7193 = vpack.c.b16 %v7069, %v7068
    %v7194 = vpack.c.b16 %v7071, %v7070
    %v7195 = vpack.c.b16 %v7073, %v7072
    %v7196 = vpack.c.b16 %v7075, %v7074
    %v7197 = vpack.c.b16 %v7077, %v7076
    %v7198 = vpack.c.b16 %v7079, %v7078
    %v7199 = vpack.c.b16 %v7081, %v7080
    %v7200 = vpack.c.b16 %v7083, %v7082
    %v7201 = vpack.c.b16 %v7085, %v7084
    %v7202 = vpack.c.b16 %v7087, %v7086
    %v7203 = vpack.c.b16 %v7089, %v7088
    %v7204 = vpack.c.b16 %v7091, %v7090
    %v7205 = vpack.c.b16 %v7093, %v7092
    %v7206 = vpack.c.b16 %v7095, %v7094
    %v7207 = vpack.c.b16 %v7097, %v7096
    %v7208 = vpack.c.b16 %v7099, %v7098
    %v7209 = vpack.c.b16 %v7101, %v7100
    %v7210 = vpack.c.b16 %v7103, %v7102
    %v7211 = vpack.c.b16 %v7105, %v7104
    %v7212 = vpack.c.b16 %v7107, %v7106
    %v7213 = vpack.c.b16 %v7109, %v7108
    %v7214 = vpack.c.b16 %v7111, %v7110
    %v7215 = vpack.c.b16 %v7113, %v7112
    %v7216 = vpack.c.b16 %v7115, %v7114
    %v7217 = vpack.c.b16 %v7117, %v7116
    %v7218 = vpack.c.b16 %v7119, %v7118
    %v7219 = vpack.c.b16 %v7121, %v7120
    %v7220 = vpack.c.b16 %v7123, %v7122
    %v7221 = vpack.c.b16 %v7125, %v7124
    %v7222 = vpack.c.b16 %v7127, %v7126
    %v7223 = vpack.c.b16 %v7129, %v7128
    %v7224 = vpack.c.b16 %v7131, %v7130
    %v7225 = vpack.c.b16 %v7133, %v7132
    %v7226 = vpack.c.b16 %v7135, %v7134
    %v7227 = vpack.c.b16 %v7137, %v7136
    %v7228 = vpack.c.b16 %v7139, %v7138
    %v7229 = vpack.c.b16 %v7141, %v7140
    %v7230 = vpack.c.b16 %v7143, %v7142
    %v7231 = vpack.c.b16 %v7145, %v7144
    %v7232 = vpack.c.b16 %v7147, %v7146
    %v7233 = vpack.c.b16 %v7149, %v7148
    %v7234 = vpack.c.b16 %v7151, %v7150
    %v7235 = vpack.c.b16 %v7153, %v7152
    %v7236 = vpack.c.b16 %v7155, %v7154
    %v7237 = vpack.c.b16 %v7157, %v7156
    %v7238 = vpack.c.b16 %v7159, %v7158
    %v7239 = vpack.c.b16 %v7161, %v7160
    %v7240 = vpack.c.b16 %v7163, %v7162
    %v7241 = vpack.c.b16 %v7165, %v7164
    %v7242 = vpack.c.b16 %v7167, %v7166
    %v7243 = vpack.c.b16 %v7169, %v7168
    %v7244 = vpack.c.b16 %v7171, %v7170
    %v7245 = vpack.c.b16 %v7173, %v7172
    %v7246 = vpack.c.b16 %v7175, %v7174
    %v7247 = vpack.c.b16 %v7177, %v7176
    %v7248 = vpack.c.b16 %v7179, %v7178
    %v7249 = vpack.c.b16 %v7181, %v7180
    %v7250 = vpack.c.b16 %v7183, %v7182
    %v7251 = vpack.c.b16 %v7185, %v7184
    %v7252 = vpack.c.b16 %v7187, %v7186
    %v7253 = vpack.c.b16 %v7189, %v7188
    %7318 = vmatprep.subr.bf16.mxu0 0
    %7319 = vmatpush1.bf16.msra.mxu0 %v7190
    %7320 = vmatprep.subr.bf16.mxu0 0
    %7321 = vmatpush1.bf16.msra.mxu0 %v7191
    %7322 = vmatprep.subr.bf16.mxu0 0
    %7323 = vmatpush1.bf16.msra.mxu0 %v7192
    %7324 = vmatprep.subr.bf16.mxu0 0
    %7325 = vmatpush1.bf16.msra.mxu0 %v7193
    %7326 = vmatprep.subr.bf16.mxu0 0
    %7327 = vmatpush1.bf16.msra.mxu0 %v7194
    %7328 = vmatprep.subr.bf16.mxu0 0
    %7329 = vmatpush1.bf16.msra.mxu0 %v7195
    %7330 = vmatprep.subr.bf16.mxu0 0
    %7331 = vmatpush1.bf16.msra.mxu0 %v7196
    %7332 = vmatprep.subr.bf16.mxu0 0
    %7333 = vmatpush1.bf16.msra.mxu0 %v7197
    %7334 = vmatprep.subr.bf16.mxu0 0
    %7335 = vmatpush1.bf16.msra.mxu0 %v7198
    %7336 = vmatprep.subr.bf16.mxu0 0
    %7337 = vmatpush1.bf16.msra.mxu0 %v7199
    %7338 = vmatprep.subr.bf16.mxu0 0
    %7339 = vmatpush1.bf16.msra.mxu0 %v7200
    %7340 = vmatprep.subr.bf16.mxu0 0
    %7341 = vmatpush1.bf16.msra.mxu0 %v7201
    %7342 = vmatprep.subr.bf16.mxu0 0
    %7343 = vmatpush1.bf16.msra.mxu0 %v7202
    %7344 = vmatprep.subr.bf16.mxu0 0
    %7345 = vmatpush1.bf16.msra.mxu0 %v7203
    %7346 = vmatprep.subr.bf16.mxu0 0
    %7347 = vmatpush1.bf16.msra.mxu0 %v7204
    %7348 = vmatprep.subr.bf16.mxu0 0
    %7349 = vmatpush1.bf16.msra.mxu0 %v7205
    %7350 = vmatprep.mubr.bf16.mxu0 %v2700
    %7351 = vmatmul.mubr.bf16.gmra.mrb[0].mxu0 %v2699
    %v7352 = vpop.f32.mrb[0].mxu0
    %v7353 = vadd.f32 %v6932, %v7352
    %v7354 = vpop.f32.mrb[0].mxu0
    %v7355 = vpop.f32.mrb[0].mxu0
    %v7356 = vpop.f32.mrb[0].mxu0
    %7357 = vdwg.mxu0
    %7358 = vmatprep.subr.bf16.mxu0 0
    %7359 = vmatpush1.bf16.msra.mxu0 %v7206
    %7360 = vmatprep.subr.bf16.mxu0 0
    %7361 = vmatpush1.bf16.msra.mxu0 %v7207
    %7362 = vmatprep.subr.bf16.mxu0 0
    %7363 = vmatpush1.bf16.msra.mxu0 %v7208
    %7364 = vmatprep.subr.bf16.mxu0 0
    %7365 = vmatpush1.bf16.msra.mxu0 %v7209
    %7366 = vmatprep.subr.bf16.mxu0 0
    %7367 = vmatpush1.bf16.msra.mxu0 %v7210
    %7368 = vmatprep.subr.bf16.mxu0 0
    %7369 = vmatpush1.bf16.msra.mxu0 %v7211
    %7370 = vmatprep.subr.bf16.mxu0 0
    %7371 = vmatpush1.bf16.msra.mxu0 %v7212
    %7372 = vmatprep.subr.bf16.mxu0 0
    %7373 = vmatpush1.bf16.msra.mxu0 %v7213
    %7374 = vmatprep.subr.bf16.mxu0 0
    %7375 = vmatpush1.bf16.msra.mxu0 %v7214
    %7376 = vmatprep.subr.bf16.mxu0 0
    %7377 = vmatpush1.bf16.msra.mxu0 %v7215
    %7378 = vmatprep.subr.bf16.mxu0 0
    %7379 = vmatpush1.bf16.msra.mxu0 %v7216
    %7380 = vmatprep.subr.bf16.mxu0 0
    %7381 = vmatpush1.bf16.msra.mxu0 %v7217
    %7382 = vmatprep.subr.bf16.mxu0 0
    %7383 = vmatpush1.bf16.msra.mxu0 %v7218
    %7384 = vmatprep.subr.bf16.mxu0 0
    %7385 = vmatpush1.bf16.msra.mxu0 %v7219
    %7386 = vmatprep.subr.bf16.mxu0 0
    %7387 = vmatpush1.bf16.msra.mxu0 %v7220
    %7388 = vmatprep.subr.bf16.mxu0 0
    %7389 = vmatpush1.bf16.msra.mxu0 %v7221
    %7390 = vmatprep.mubr.bf16.mxu0 %v2702
    %7391 = vmatmul.mubr.bf16.gmra.mrb[0].mxu0 %v2701
    %v7392 = vpop.f32.mrb[0].mxu0
    %v7393 = vadd.f32 %v7353, %v7392
    %v7394 = vpop.f32.mrb[0].mxu0
    %v7395 = vpop.f32.mrb[0].mxu0
    %v7396 = vpop.f32.mrb[0].mxu0
    %7397 = vdwg.mxu0
    %7398 = vmatprep.subr.bf16.mxu0 0
    %7399 = vmatpush1.bf16.msra.mxu0 %v7222
    %7400 = vmatprep.subr.bf16.mxu0 0
    %7401 = vmatpush1.bf16.msra.mxu0 %v7223
    %7402 = vmatprep.subr.bf16.mxu0 0
    %7403 = vmatpush1.bf16.msra.mxu0 %v7224
    %7404 = vmatprep.subr.bf16.mxu0 0
    %7405 = vmatpush1.bf16.msra.mxu0 %v7225
    %7406 = vmatprep.subr.bf16.mxu0 0
    %7407 = vmatpush1.bf16.msra.mxu0 %v7226
    %7408 = vmatprep.subr.bf16.mxu0 0
    %7409 = vmatpush1.bf16.msra.mxu0 %v7227
    %7410 = vmatprep.subr.bf16.mxu0 0
    %7411 = vmatpush1.bf16.msra.mxu0 %v7228
    %7412 = vmatprep.subr.bf16.mxu0 0
    %7413 = vmatpush1.bf16.msra.mxu0 %v7229
    %7414 = vmatprep.subr.bf16.mxu0 0
    %7415 = vmatpush1.bf16.msra.mxu0 %v7230
    %7416 = vmatprep.subr.bf16.mxu0 0
    %7417 = vmatpush1.bf16.msra.mxu0 %v7231
    %7418 = vmatprep.subr.bf16.mxu0 0
    %7419 = vmatpush1.bf16.msra.mxu0 %v7232
    %7420 = vmatprep.subr.bf16.mxu0 0
    %7421 = vmatpush1.bf16.msra.mxu0 %v7233
    %7422 = vmatprep.subr.bf16.mxu0 0
    %7423 = vmatpush1.bf16.msra.mxu0 %v7234
    %7424 = vmatprep.subr.bf16.mxu0 0
    %7425 = vmatpush1.bf16.msra.mxu0 %v7235
    %7426 = vmatprep.subr.bf16.mxu0 0
    %7427 = vmatpush1.bf16.msra.mxu0 %v7236
    %7428 = vmatprep.subr.bf16.mxu0 0
    %7429 = vmatpush1.bf16.msra.mxu0 %v7237
    %7430 = vmatprep.mubr.bf16.mxu0 %v2704
    %7431 = vmatmul.mubr.bf16.gmra.mrb[0].mxu0 %v2703
    %v7432 = vpop.f32.mrb[0].mxu0
    %v7433 = vadd.f32 %v7393, %v7432
    %v7434 = vpop.f32.mrb[0].mxu0
    %v7435 = vpop.f32.mrb[0].mxu0
    %v7436 = vpop.f32.mrb[0].mxu0
    %7437 = vdwg.mxu0
    %7438 = vmatprep.subr.bf16.mxu0 0
    %7439 = vmatpush1.bf16.msra.mxu0 %v7238
    %7440 = vmatprep.subr.bf16.mxu0 0
    %7441 = vmatpush1.bf16.msra.mxu0 %v7239
    %7442 = vmatprep.subr.bf16.mxu0 0
    %7443 = vmatpush1.bf16.msra.mxu0 %v7240
    %7444 = vmatprep.subr.bf16.mxu0 0
    %7445 = vmatpush1.bf16.msra.mxu0 %v7241
    %7446 = vmatprep.subr.bf16.mxu0 0
    %7447 = vmatpush1.bf16.msra.mxu0 %v7242
    %7448 = vmatprep.subr.bf16.mxu0 0
    %7449 = vmatpush1.bf16.msra.mxu0 %v7243
    %7450 = vmatprep.subr.bf16.mxu0 0
    %7451 = vmatpush1.bf16.msra.mxu0 %v7244
    %7452 = vmatprep.subr.bf16.mxu0 0
    %7453 = vmatpush1.bf16.msra.mxu0 %v7245
    %7454 = vmatprep.subr.bf16.mxu0 0
    %7455 = vmatpush1.bf16.msra.mxu0 %v7246
    %7456 = vmatprep.subr.bf16.mxu0 0
    %7457 = vmatpush1.bf16.msra.mxu0 %v7247
    %7458 = vmatprep.subr.bf16.mxu0 0
    %7459 = vmatpush1.bf16.msra.mxu0 %v7248
    %7460 = vmatprep.subr.bf16.mxu0 0
    %7461 = vmatpush1.bf16.msra.mxu0 %v7249
    %7462 = vmatprep.subr.bf16.mxu0 0
    %7463 = vmatpush1.bf16.msra.mxu0 %v7250
    %7464 = vmatprep.subr.bf16.mxu0 0
    %7465 = vmatpush1.bf16.msra.mxu0 %v7251
    %7466 = vmatprep.subr.bf16.mxu0 0
    %7467 = vmatpush1.bf16.msra.mxu0 %v7252
    %7468 = vmatprep.subr.bf16.mxu0 0
    %7469 = vmatpush1.bf16.msra.mxu0 %v7253
    %7470 = vmatprep.mubr.bf16.mxu0 %v2706
    %7471 = vmatmul.mubr.bf16.gmra.mrb[0].mxu0 %v2705
    %v7472 = vpop.f32.mrb[0].mxu0
    %v7473 = vadd.f32 %v7433, %v7472
    %v7474 = vpop.f32.mrb[0].mxu0
    %v7475 = vpop.f32.mrb[0].mxu0
    %v7476 = vpop.f32.mrb[0].mxu0
    %7477 = vdwg.mxu0
    %v7478 = vtanh.pop %v7473
    %v7479 = vpack.c.bf16 %v7478, %v7478
    %7480 = vst [vmem:[#allocation16 + $0x18] sm:$0xf] %v7479
    // Predicated region
    $region70: #{generator_forward_padded.1} parent=1 // pred_check
      _
    $region71: #{generator_forward_padded.1} parent=1 // pred_check_branch
      %7482 = sbr.rel (0) target = $region73
    $region72: #{generator_forward_padded.1} parent=1 // pred_region
      %s7484 = ssub.s32 448, 448
      %7485 = vsyncadd [#allocation4], %s7484
      %s7487 = sshll.u32 [#allocation16], 4
      %s7488 = int_to_ptr.vmem [resolvable:$true] %s7487
      %7490 = dma.vmem_to_hbm [thread:$0]  %s7488, 448, %s9, [#allocation4]
    $region73: #{generator_forward_padded.1} parent=1 // pred_fallthru
      _
    // Predicated region
    $region74: #{generator_forward_padded.1} parent=1 // pred_check
      _
    $region75: #{generator_forward_padded.1} parent=1 // pred_check_branch
      %7492 = sbr.rel (0) target = $region77
    $region76: #{generator_forward_padded.1} parent=1 // pred_region
      %7493 = dma.done [#allocation4], 448
    $region77: #{generator_forward_padded.1} parent=1 // pred_fallthru
      _
    %7494 = vsyncpa [#allocation3], 1
    %7495 = vsyncpa [#allocation6], 1
    %7496 = vsyncpa [#allocation9], 1
    %7497 = vsyncpa [#allocation12], 1
    %7498 = vsyncpa [#allocation15], 1
    %7499 = vsyncpa [#allocation4], 1

</llo_original>
